<compile_context>
chip_gen: v7x
topology: tpu7x:2x2x1
jax: 0.10.0
libtpu: 0.0.40
codegen_flags: <defaults>
</compile_context>

<pallas_src>
import functools
import math

import jax
import jax.numpy as jnp
from jax import lax
from jax.experimental import pallas as pl
from jax.experimental.pallas import tpu as pltpu


# ---------------------------------------------------------------------------
# Kernel: conv3x3 (stride 1, pad 1, no bias) [+ per-channel affine] + ReLU
#         [+ MaxPool2d(pool)] for one batch tile of Bt images.
# ---------------------------------------------------------------------------
def _convbn_kernel(*refs, H, W, Cin, Cout, pool, affine):
    if affine:
        x_ref, w_ref, scale_ref, bias_ref, o_ref, xpad_ref, col_ref = refs
    else:
        x_ref, w_ref, o_ref, xpad_ref, col_ref = refs
        scale_ref = bias_ref = None

    Bt = x_ref.shape[0]

    # ---- in-kernel zero padding (pad=1); no separate XLA pad pass over HBM.
    # Re-zero every step: correct even when the parallel grid axis is split
    # across TensorCores (each core has its own scratch).
    xpad_ref[...] = jnp.zeros_like(xpad_ref)
    xpad_ref[:, 1:H + 1, 1:W + 1, :] = x_ref[...]

    # ---- build the im2col patch buffer once: (Bt, H, W, 9*Cin) bf16.
    for kh in range(3):
        for kw in range(3):
            t = kh * 3 + kw
            col_ref[:, :, :, t * Cin:(t + 1) * Cin] = (
                xpad_ref[:, kh:kh + H, kw:kw + W, :])

    patches = col_ref[...].reshape(Bt * H * W, 9 * Cin)     # bf16, K = 9*Cin

    # ---- single MXU dot, bf16 x bf16 -> f32 accumulation.
    acc = jnp.dot(patches, w_ref[...], preferred_element_type=jnp.float32)

    if affine:                                              # eval-mode BN fold
        acc = acc * scale_ref[...] + bias_ref[...]

    out = jnp.maximum(acc, 0.0).reshape(Bt, H, W, Cout)     # ReLU (f32)

    if pool > 1:                                            # MaxPool2d(pool)
        Ho, Wo = H // pool, W // pool
        # H pooling: splits a non-tiled axis -> plane-wise VPU max, no relayout.
        out = jnp.max(out.reshape(Bt, Ho, pool, W, Cout), axis=2)
        # W pooling: single second-minor split (one relayout instead of two).
        out = jnp.max(out.reshape(Bt, Ho, Wo, pool, Cout), axis=3)

    o_ref[...] = out.astype(o_ref.dtype)


# ---------------------------------------------------------------------------
# Batch-tile selection: fill MXU rows (M >= 256) while keeping >= 2 grid steps
# (dual-TC v7x) and a conservative per-block VMEM budget (v7x: 64 MiB VMEM).
# ---------------------------------------------------------------------------
def _pick_batch_tile(B, H, W, Cin, Cout):
    bytes_per_b = (
        (H + 2) * (W + 2) * Cin * 2        # padded-input scratch (bf16)
        + H * W * 9 * Cin * 2              # im2col scratch (bf16)
        + 2 * H * W * Cin * 2              # double-buffered input block (bf16)
        + 2 * H * W * Cout * 4             # double-buffered output block (f32)
    )
    budget = 8 * 1024 * 1024               # well under every generation's VMEM
    best = 1
    for bt in range(1, B + 1):
        if B % bt:
            continue
        if bt * bytes_per_b > budget:
            break
        if B >= 2 and B // bt < 2:
            break                          # keep >= 2 parallel grid steps
        best = bt
        if bt * H * W >= 256:
            break                          # M already fills the MXU row tile
    return best


# ---------------------------------------------------------------------------
# Wrapper: ConvBN.forward
# ---------------------------------------------------------------------------
def convbn_forward(x_nchw, w_oihw, *, pool=None, do_batchnorm=False,
                   bn_gamma=None, bn_beta=None, bn_mean=None, bn_var=None,
                   bn_eps=1e-5):
    """ConvBN forward.  x: (B, Cin, H, W), w: (Cout, Cin, 3, 3).  NCHW out."""
    B, Cin, H, W = x_nchw.shape
    Cout = w_oihw.shape[0]
    assert w_oihw.shape == (Cout, Cin, 3, 3)
    pool = 1 if pool is None else int(pool)
    assert H % pool == 0 and W % pool == 0
    Ho, Wo = H // pool, W // pool

    # NHWC activations (channels on lanes); bf16 MXU inputs (halves DMA bytes).
    x = jnp.transpose(x_nchw, (0, 2, 3, 1)).astype(jnp.bfloat16)
    # (Cout, Cin, 3, 3) -> (3, 3, Cin, Cout) -> (9*Cin, Cout) bf16: matches the
    # im2col column ordering [(kh, kw) major, cin minor] used in the kernel.
    w = jnp.transpose(w_oihw, (2, 3, 1, 0)).reshape(9 * Cin, Cout)
    w = w.astype(jnp.bfloat16)

    Bt = _pick_batch_tile(B, H, W, Cin, Cout)
    grid = (B // Bt,)

    in_specs = [
        pl.BlockSpec((Bt, H, W, Cin), lambda b: (b, 0, 0, 0)),
        pl.BlockSpec((9 * Cin, Cout), lambda b: (0, 0)),     # resident weights
    ]
    args = [x, w]

    if do_batchnorm:
        # Eval-mode BatchNorm folded into a per-channel affine (scale, bias).
        # TODO(synk): training-mode BN (batch statistics) needs a cross-batch
        # reduction pass and is not implemented here.
        gamma = bn_gamma.astype(jnp.float32)
        inv = lax.rsqrt(bn_var.astype(jnp.float32) + bn_eps)
        scale = (gamma * inv).reshape(1, Cout)
        bias = (bn_beta.astype(jnp.float32)
                - bn_mean.astype(jnp.float32) * gamma * inv).reshape(1, Cout)
        in_specs += [pl.BlockSpec((1, Cout), lambda b: (0, 0)),
                     pl.BlockSpec((1, Cout), lambda b: (0, 0))]
        args += [scale, bias]

    kernel = functools.partial(_convbn_kernel, H=H, W=W, Cin=Cin, Cout=Cout,
                               pool=pool, affine=do_batchnorm)

    out = pl.pallas_call(
        kernel,
        out_shape=jax.ShapeDtypeStruct((B, Ho, Wo, Cout), jnp.float32),
        grid=grid,
        in_specs=in_specs,
        out_specs=pl.BlockSpec((Bt, Ho, Wo, Cout), lambda b: (b, 0, 0, 0)),
        scratch_shapes=[
            pltpu.VMEM((Bt, H + 2, W + 2, Cin), jnp.bfloat16),   # padded input
            pltpu.VMEM((Bt, H, W, 9 * Cin), jnp.bfloat16),       # im2col buffer
        ],
        compiler_params=pltpu.CompilerParams(
            dimension_semantics=("parallel",),
            vmem_limit_bytes=32 * 1024 * 1024,
        ),
    )(*args)

    return jnp.transpose(out, (0, 3, 1, 2))                 # NHWC -> NCHW


# ---------------------------------------------------------------------------
# Pure-JAX reference (same bf16-rounded inputs) for a tolerance check.
# ---------------------------------------------------------------------------
def convbn_reference(x_nchw, w_oihw, *, pool=None, do_batchnorm=False,
                     bn_gamma=None, bn_beta=None, bn_mean=None, bn_var=None,
                     bn_eps=1e-5):
    x = x_nchw.astype(jnp.bfloat16).astype(jnp.float32)
    w = w_oihw.astype(jnp.bfloat16).astype(jnp.float32)
    out = lax.conv_general_dilated(
        x, w, window_strides=(1, 1), padding=((1, 1), (1, 1)),
        dimension_numbers=('NCHW', 'OIHW', 'NCHW'),
        precision=lax.Precision.HIGHEST)
    if do_batchnorm:
        inv = lax.rsqrt(bn_var + bn_eps)
        scale = (bn_gamma * inv).reshape(1, -1, 1, 1)
        bias = (bn_beta - bn_mean * bn_gamma * inv).reshape(1, -1, 1, 1)
        out = out * scale + bias
    out = jnp.maximum(out, 0.0)
    if pool:
        p = int(pool)
        B, C, H, W = out.shape
        out = out.reshape(B, C, H // p, p, W // p, p).max(axis=(3, 5))
    return out


if __name__ == "__main__":
    key = jax.random.PRNGKey(0)
    configs = [
        # (B, Cin, Cout, H, W, pool, do_batchnorm)
        (4, 8, 128, 16, 16, 2, False),   # ConvBN(do_batchnorm=False) + MaxPool2d(2)
        (4, 16, 32, 8, 8, None, True),   # BN(eval) path, batch-packed grid (Bt=2)
    ]
    for cfg_i, (B, Cin, Cout, H, W, pool, do_bn) in enumerate(configs):
        k0, k1, k2, k3, key = jax.random.split(key, 5)
        x = jax.random.normal(k0, (B, Cin, H, W), jnp.float32)
        std = math.sqrt(2.0 / (Cout * 9))          # kaiming_normal_ fan_out relu
        w = jax.random.normal(k1, (Cout, Cin, 3, 3), jnp.float32) * std
        bn_kwargs = {}
        if do_bn:
            bn_kwargs = dict(
                bn_gamma=jnp.ones((Cout,), jnp.float32),     # bn_weight_init=1.0
                bn_beta=0.1 * jax.random.normal(k2, (Cout,), jnp.float32),
                bn_mean=0.1 * jax.random.normal(k3, (Cout,), jnp.float32),
                bn_var=0.9 * jnp.ones((Cout,), jnp.float32),
            )

        fwd = jax.jit(functools.partial(convbn_forward, pool=pool,
                                        do_batchnorm=do_bn))
        got = jax.block_until_ready(fwd(x, w, **bn_kwargs))
        want = convbn_reference(x, w, pool=pool, do_batchnorm=do_bn, **bn_kwargs)

        assert got.shape == want.shape, (got.shape, want.shape)
        err = float(jnp.max(jnp.abs(got - want)))
        assert err < 5e-3, f"config {cfg_i}: max abs err {err}"
    print("KERNEL_OK")
</pallas_src>

<mosaic_0001>
module attributes {stable_mosaic.version = 11 : i64} {
  func.func @_convbn_kernel(%arg0: i32, %arg1: memref<1x16x16x8xbf16, #tpu.memory_space<vmem>>, %arg2: memref<72x128xbf16, #tpu.memory_space<vmem>>, %arg3: memref<1x8x8x128xf32, #tpu.memory_space<vmem>>, %arg4: memref<1x18x18x8xbf16, #tpu.memory_space<vmem>>, %arg5: memref<1x16x16x72xbf16, #tpu.memory_space<vmem>>) attributes {dimension_semantics = [#tpu.dimension_semantics<parallel>], iteration_bounds = array<i64: 4>, scalar_prefetch = 0 : i64, scratch_operands = 2 : i64, tpu.core_type = #tpu.core_type<tc>, window_params = [{transform_indices = @transform_0, window_bounds = array<i64: 1, 16, 16, 8>}, {pipeline_mode = #tpu.pipeline_mode<synchronous>, transform_indices = @transform_1, window_bounds = array<i64: 72, 128>}, {transform_indices = @transform_2, window_bounds = array<i64: 1, 8, 8, 128>}]} {
    %cst = arith.constant 0.000000e+00 : bf16
    %0 = vector.broadcast %cst : bf16 to vector<1x18x18x8xbf16>
    %c0 = arith.constant 0 : index
    %c0_0 = arith.constant 0 : index
    %c0_1 = arith.constant 0 : index
    %c0_2 = arith.constant 0 : index
    %1 = vector.load %arg4[%c0, %c0_0, %c0_1, %c0_2] : memref<1x18x18x8xbf16, #tpu.memory_space<vmem>>, vector<1x18x18x8xbf16>
    tpu.vector_store %arg4[%c0, %c0_0, %c0_1, %c0_2], %0 {strides = array<i32>} : memref<1x18x18x8xbf16, #tpu.memory_space<vmem>>, vector<1x18x18x8xbf16>,
    %c0_3 = arith.constant 0 : index
    %c0_4 = arith.constant 0 : index
    %c0_5 = arith.constant 0 : index
    %c0_6 = arith.constant 0 : index
    %2 = vector.load %arg1[%c0_3, %c0_4, %c0_5, %c0_6] : memref<1x16x16x8xbf16, #tpu.memory_space<vmem>>, vector<1x16x16x8xbf16>
    %c0_7 = arith.constant 0 : index
    %c1 = arith.constant 1 : index
    %c1_8 = arith.constant 1 : index
    %c0_9 = arith.constant 0 : index
    %3 = vector.load %arg4[%c0_7, %c1, %c1_8, %c0_9] : memref<1x18x18x8xbf16, #tpu.memory_space<vmem>>, vector<1x16x16x8xbf16>
    tpu.vector_store %arg4[%c0_7, %c1, %c1_8, %c0_9], %2 {strides = array<i32>} : memref<1x18x18x8xbf16, #tpu.memory_space<vmem>>, vector<1x16x16x8xbf16>,
    %c0_10 = arith.constant 0 : index
    %c0_11 = arith.constant 0 : index
    %c0_12 = arith.constant 0 : index
    %c0_13 = arith.constant 0 : index
    %4 = vector.load %arg4[%c0_10, %c0_11, %c0_12, %c0_13] : memref<1x18x18x8xbf16, #tpu.memory_space<vmem>>, vector<1x16x16x8xbf16>
    %c0_14 = arith.constant 0 : index
    %c0_15 = arith.constant 0 : index
    %c0_16 = arith.constant 0 : index
    %c0_17 = arith.constant 0 : index
    %5 = vector.load %arg5[%c0_14, %c0_15, %c0_16, %c0_17] : memref<1x16x16x72xbf16, #tpu.memory_space<vmem>>, vector<1x16x16x8xbf16>
    tpu.vector_store %arg5[%c0_14, %c0_15, %c0_16, %c0_17], %4 {strides = array<i32>} : memref<1x16x16x72xbf16, #tpu.memory_space<vmem>>, vector<1x16x16x8xbf16>,
    %c0_18 = arith.constant 0 : index
    %c0_19 = arith.constant 0 : index
    %c1_20 = arith.constant 1 : index
    %c0_21 = arith.constant 0 : index
    %6 = vector.load %arg4[%c0_18, %c0_19, %c1_20, %c0_21] : memref<1x18x18x8xbf16, #tpu.memory_space<vmem>>, vector<1x16x16x8xbf16>
    %c0_22 = arith.constant 0 : index
    %c0_23 = arith.constant 0 : index
    %c0_24 = arith.constant 0 : index
    %c8 = arith.constant 8 : index
    %7 = vector.load %arg5[%c0_22, %c0_23, %c0_24, %c8] : memref<1x16x16x72xbf16, #tpu.memory_space<vmem>>, vector<1x16x16x8xbf16>
    tpu.vector_store %arg5[%c0_22, %c0_23, %c0_24, %c8], %6 {strides = array<i32>} : memref<1x16x16x72xbf16, #tpu.memory_space<vmem>>, vector<1x16x16x8xbf16>,
    %c0_25 = arith.constant 0 : index
    %c0_26 = arith.constant 0 : index
    %c2 = arith.constant 2 : index
    %c0_27 = arith.constant 0 : index
    %8 = vector.load %arg4[%c0_25, %c0_26, %c2, %c0_27] : memref<1x18x18x8xbf16, #tpu.memory_space<vmem>>, vector<1x16x16x8xbf16>
    %c0_28 = arith.constant 0 : index
    %c0_29 = arith.constant 0 : index
    %c0_30 = arith.constant 0 : index
    %c16 = arith.constant 16 : index
    %9 = vector.load %arg5[%c0_28, %c0_29, %c0_30, %c16] : memref<1x16x16x72xbf16, #tpu.memory_space<vmem>>, vector<1x16x16x8xbf16>
    tpu.vector_store %arg5[%c0_28, %c0_29, %c0_30, %c16], %8 {strides = array<i32>} : memref<1x16x16x72xbf16, #tpu.memory_space<vmem>>, vector<1x16x16x8xbf16>,
    %c0_31 = arith.constant 0 : index
    %c1_32 = arith.constant 1 : index
    %c0_33 = arith.constant 0 : index
    %c0_34 = arith.constant 0 : index
    %10 = vector.load %arg4[%c0_31, %c1_32, %c0_33, %c0_34] : memref<1x18x18x8xbf16, #tpu.memory_space<vmem>>, vector<1x16x16x8xbf16>
    %c0_35 = arith.constant 0 : index
    %c0_36 = arith.constant 0 : index
    %c0_37 = arith.constant 0 : index
    %c24 = arith.constant 24 : index
    %11 = vector.load %arg5[%c0_35, %c0_36, %c0_37, %c24] : memref<1x16x16x72xbf16, #tpu.memory_space<vmem>>, vector<1x16x16x8xbf16>
    tpu.vector_store %arg5[%c0_35, %c0_36, %c0_37, %c24], %10 {strides = array<i32>} : memref<1x16x16x72xbf16, #tpu.memory_space<vmem>>, vector<1x16x16x8xbf16>,
    %c0_38 = arith.constant 0 : index
    %c1_39 = arith.constant 1 : index
    %c1_40 = arith.constant 1 : index
    %c0_41 = arith.constant 0 : index
    %12 = vector.load %arg4[%c0_38, %c1_39, %c1_40, %c0_41] : memref<1x18x18x8xbf16, #tpu.memory_space<vmem>>, vector<1x16x16x8xbf16>
    %c0_42 = arith.constant 0 : index
    %c0_43 = arith.constant 0 : index
    %c0_44 = arith.constant 0 : index
    %c32 = arith.constant 32 : index
    %13 = vector.load %arg5[%c0_42, %c0_43, %c0_44, %c32] : memref<1x16x16x72xbf16, #tpu.memory_space<vmem>>, vector<1x16x16x8xbf16>
    tpu.vector_store %arg5[%c0_42, %c0_43, %c0_44, %c32], %12 {strides = array<i32>} : memref<1x16x16x72xbf16, #tpu.memory_space<vmem>>, vector<1x16x16x8xbf16>,
    %c0_45 = arith.constant 0 : index
    %c1_46 = arith.constant 1 : index
    %c2_47 = arith.constant 2 : index
    %c0_48 = arith.constant 0 : index
    %14 = vector.load %arg4[%c0_45, %c1_46, %c2_47, %c0_48] : memref<1x18x18x8xbf16, #tpu.memory_space<vmem>>, vector<1x16x16x8xbf16>
    %c0_49 = arith.constant 0 : index
    %c0_50 = arith.constant 0 : index
    %c0_51 = arith.constant 0 : index
    %c40 = arith.constant 40 : index
    %15 = vector.load %arg5[%c0_49, %c0_50, %c0_51, %c40] : memref<1x16x16x72xbf16, #tpu.memory_space<vmem>>, vector<1x16x16x8xbf16>
    tpu.vector_store %arg5[%c0_49, %c0_50, %c0_51, %c40], %14 {strides = array<i32>} : memref<1x16x16x72xbf16, #tpu.memory_space<vmem>>, vector<1x16x16x8xbf16>,
    %c0_52 = arith.constant 0 : index
    %c2_53 = arith.constant 2 : index
    %c0_54 = arith.constant 0 : index
    %c0_55 = arith.constant 0 : index
    %16 = vector.load %arg4[%c0_52, %c2_53, %c0_54, %c0_55] : memref<1x18x18x8xbf16, #tpu.memory_space<vmem>>, vector<1x16x16x8xbf16>
    %c0_56 = arith.constant 0 : index
    %c0_57 = arith.constant 0 : index
    %c0_58 = arith.constant 0 : index
    %c48 = arith.constant 48 : index
    %17 = vector.load %arg5[%c0_56, %c0_57, %c0_58, %c48] : memref<1x16x16x72xbf16, #tpu.memory_space<vmem>>, vector<1x16x16x8xbf16>
    tpu.vector_store %arg5[%c0_56, %c0_57, %c0_58, %c48], %16 {strides = array<i32>} : memref<1x16x16x72xbf16, #tpu.memory_space<vmem>>, vector<1x16x16x8xbf16>,
    %c0_59 = arith.constant 0 : index
    %c2_60 = arith.constant 2 : index
    %c1_61 = arith.constant 1 : index
    %c0_62 = arith.constant 0 : index
    %18 = vector.load %arg4[%c0_59, %c2_60, %c1_61, %c0_62] : memref<1x18x18x8xbf16, #tpu.memory_space<vmem>>, vector<1x16x16x8xbf16>
    %c0_63 = arith.constant 0 : index
    %c0_64 = arith.constant 0 : index
    %c0_65 = arith.constant 0 : index
    %c56 = arith.constant 56 : index
    %19 = vector.load %arg5[%c0_63, %c0_64, %c0_65, %c56] : memref<1x16x16x72xbf16, #tpu.memory_space<vmem>>, vector<1x16x16x8xbf16>
    tpu.vector_store %arg5[%c0_63, %c0_64, %c0_65, %c56], %18 {strides = array<i32>} : memref<1x16x16x72xbf16, #tpu.memory_space<vmem>>, vector<1x16x16x8xbf16>,
    %c0_66 = arith.constant 0 : index
    %c2_67 = arith.constant 2 : index
    %c2_68 = arith.constant 2 : index
    %c0_69 = arith.constant 0 : index
    %20 = vector.load %arg4[%c0_66, %c2_67, %c2_68, %c0_69] : memref<1x18x18x8xbf16, #tpu.memory_space<vmem>>, vector<1x16x16x8xbf16>
    %c0_70 = arith.constant 0 : index
    %c0_71 = arith.constant 0 : index
    %c0_72 = arith.constant 0 : index
    %c64 = arith.constant 64 : index
    %21 = vector.load %arg5[%c0_70, %c0_71, %c0_72, %c64] : memref<1x16x16x72xbf16, #tpu.memory_space<vmem>>, vector<1x16x16x8xbf16>
    tpu.vector_store %arg5[%c0_70, %c0_71, %c0_72, %c64], %20 {strides = array<i32>} : memref<1x16x16x72xbf16, #tpu.memory_space<vmem>>, vector<1x16x16x8xbf16>,
    %c0_73 = arith.constant 0 : index
    %c0_74 = arith.constant 0 : index
    %c0_75 = arith.constant 0 : index
    %c0_76 = arith.constant 0 : index
    %22 = vector.load %arg5[%c0_73, %c0_74, %c0_75, %c0_76] : memref<1x16x16x72xbf16, #tpu.memory_space<vmem>>, vector<1x16x16x72xbf16>
    %23 = vector.shape_cast %22 : vector<1x16x16x72xbf16> to vector<256x72xbf16>
    %c0_77 = arith.constant 0 : index
    %c0_78 = arith.constant 0 : index
    %24 = vector.load %arg2[%c0_77, %c0_78] : memref<72x128xbf16, #tpu.memory_space<vmem>>, vector<72x128xbf16>
    %cst_79 = arith.constant dense<0.000000e+00> : vector<256x128xf32>
    %25 = tpu.matmul %23, %24, %cst_79 {dimension_numbers = #tpu.dot_dimension_numbers<[1], [0], [0], [1], [0, 0, 1, 1], [], []>} : vector<256x72xbf16>, vector<72x128xbf16>, vector<256x128xf32> -> vector<256x128xf32>
    %cst_80 = arith.constant 0.000000e+00 : f32
    %26 = vector.broadcast %cst_80 : f32 to vector<256x128xf32>
    %27 = arith.maximumf %25, %26 : vector<256x128xf32>
    %28 = vector.shape_cast %27 : vector<256x128xf32> to vector<1x16x16x128xf32>
    %29 = vector.shape_cast %28 : vector<1x16x16x128xf32> to vector<1x8x2x16x128xf32>
    %cst_81 = arith.constant dense<0xFF800000> : vector<1x8x16x128xf32>
    %30 = vector.multi_reduction <maximumf>, %29, %cst_81 [2] : vector<1x8x2x16x128xf32> to vector<1x8x16x128xf32>
    %31 = vector.shape_cast %30 : vector<1x8x16x128xf32> to vector<1x8x8x2x128xf32>
    %cst_82 = arith.constant dense<0xFF800000> : vector<1x8x8x128xf32>
    %32 = vector.multi_reduction <maximumf>, %31, %cst_82 [3] : vector<1x8x8x2x128xf32> to vector<1x8x8x128xf32>
    %c0_83 = arith.constant 0 : index
    %c0_84 = arith.constant 0 : index
    %c0_85 = arith.constant 0 : index
    %c0_86 = arith.constant 0 : index
    %33 = vector.load %arg3[%c0_83, %c0_84, %c0_85, %c0_86] : memref<1x8x8x128xf32, #tpu.memory_space<vmem>>, vector<1x8x8x128xf32>
    tpu.vector_store %arg3[%c0_83, %c0_84, %c0_85, %c0_86], %32 {strides = array<i32>} : memref<1x8x8x128xf32, #tpu.memory_space<vmem>>, vector<1x8x8x128xf32>,
    return
  }
  func.func @transform_0(%arg0: i32) -> (i32, i32, i32, i32) {
    %c0_i32 = arith.constant 0 : i32
    %c0_i32_0 = arith.constant 0 : i32
    %c0_i32_1 = arith.constant 0 : i32
    %c0_i32_2 = arith.constant 0 : i32
    return %arg0, %c0_i32, %c0_i32_0, %c0_i32_1 : i32, i32, i32, i32
  }
  func.func @transform_1(%arg0: i32) -> (i32, i32) {
    %c0_i32 = arith.constant 0 : i32
    %c0_i32_0 = arith.constant 0 : i32
    %c0_i32_1 = arith.constant 0 : i32
    return %c0_i32, %c0_i32_0 : i32, i32
  }
  func.func @transform_2(%arg0: i32) -> (i32, i32, i32, i32) {
    %c0_i32 = arith.constant 0 : i32
    %c0_i32_0 = arith.constant 0 : i32
    %c0_i32_1 = arith.constant 0 : i32
    %c0_i32_2 = arith.constant 0 : i32
    return %arg0, %c0_i32, %c0_i32_0, %c0_i32_1 : i32, i32, i32, i32
  }
}

</mosaic_0001>

<llo_original>
// kernel: convbn_forward.1
$region0: #{convbn_forward.1}
  #allocation0 [shape = 'u32[]', space=smem, size = 0x4, offset = 0x4, fixed_abs, tag = 'smem constant byte address 0x4 - core index']
  #allocation1 [shape = 'u32[144,128]{1,0:T(1,128)}', space=vmem, size = 0x12000, scoped, tag = 'internal scratch']
  #allocation2 [shape = 'bf16[1,18,18,8]{3,2,1,0:T(8,128)(2,1)}', space=vmem, size = 0x1b000, scoped, tag = 'scratch operand']
  #allocation3 [shape = 'bf16[1,16,16,72]{3,2,1,0:T(16,128)(2,1)}', space=vmem, size = 0x10000, scoped, tag = 'scratch operand']
  %s0 = inlined_call_operand.vmem [shape: bf16[4,16,16,8], index: 0, kind: input, shape index: {}]
  %s1 = inlined_call_operand.vmem [shape: bf16[72,128], index: 1, kind: input, shape index: {}]
  %s2 = inlined_call_operand.hbm [shape: f32[4,8,8,128], index: 2, kind: output, shape index: {}]
  %s3 = sld [smem:[#allocation0]]
  $region41: #{convbn_forward.1} parent=0
    _
  %s5 = ssub.s32 1, %s3
  %s6 = scalar_select 0, %s5, %s3
  $region1: #{convbn_forward.1} parent=0
    #allocation4 [shape = 'u8[65536]{0}', space=vmem, size = 0x10000, scoped, tag = 'output window, operand 0']
    #allocation5 [shape = 's32[2]{0}', space=sflag, size = 0x8, scoped, tag = 'scoped memory for convbn_forward.1']
    %7 = vsyncpa [#allocation5], 0
    %s8 = scalar_lea.sflag [#allocation5], 1
    %9 = vsyncpa %s8, 0
    loop: start=0, step=1, limit=6
    $region2: #{convbn_forward.1} parent=1 // loop_pre_header
      _
    $region3: #{convbn_forward.1} parent=1 // loop_header
      %s11 = sphi 0, %s15
      %p12 = scmp.ge.s32.totalorder %s11, 6
      %s21 = sphi 0, %s23
      %s24 = sphi 0, %s21
      %s25 = sphi 0, %s24
      %s41 = sphi 0, %s25
      %s45 = sphi 0, %s45
      %s47 = sphi 0, %s45
      %s48 = sphi 0, %s47
      %s62 = sphi 0, %s48
      %s68 = sphi 0, %s70
      %s71 = sphi 0, %s68
      %s72 = sphi 0, %s71
      %s88 = sphi 0, %s72
    $region4: #{convbn_forward.1} parent=1 // loop_header_branch
      %14 = sbr.rel (%p12) target = $region8
    $region5: #{convbn_forward.1} parent=1 // loop_body
      %s16 = ssub.s32 %s11, 1
      %s17 = ssub.s32 %s11, 2
      %s18 = sadd.s32 %s11, 1
      %s19 = ssub.s32 %s11, %s18
      %p20 = scmp.eq.s32.totalorder %s19, 0
      %s22 = sadd.s32 %s21, 1
      %s23 = scalar_select %p20, %s21, %s22
      %p26 = pneg %p20
      %p27 = scmp.eq.s32.totalorder %s11, 3
      %p28 = por %p26, %p27
      %p29 = scmp.ne.s32.totalorder %s21, %s24
      %p30 = scmp.eq.s32.totalorder %s11, 0
      %p31 = por %p29, %p30
      %p32 = scmp.ne.s32.totalorder %s21, %s24
      %p33 = scmp.eq.s32.totalorder %s16, 3
      %p34 = por %p32, %p33
      %p35 = scmp.ne.s32.totalorder %s24, %s25
      %p36 = scmp.eq.s32.totalorder %s16, 0
      %p37 = por %p35, %p36
      %p38 = scmp.ne.s32.totalorder %s24, %s25
      %p39 = scmp.eq.s32.totalorder %s17, 3
      %p40 = por %p38, %p39
      %p42 = scmp.ne.s32.totalorder %s25, %s41
      %p43 = scmp.eq.s32.totalorder %s17, 0
      %p44 = por %p42, %p43
      %s46 = sadd.s32 %s45, 1
      %p49 = scmp.eq.s32.totalorder %s11, 3
      %p50 = scmp.ne.s32.totalorder %s45, %s47
      %p51 = scmp.eq.s32.totalorder %s11, 0
      %p52 = por %p50, %p51
      %p53 = scmp.ne.s32.totalorder %s45, %s47
      %p54 = scmp.eq.s32.totalorder %s16, 3
      %p55 = por %p53, %p54
      %p56 = scmp.ne.s32.totalorder %s47, %s48
      %p57 = scmp.eq.s32.totalorder %s16, 0
      %p58 = por %p56, %p57
      %p59 = scmp.ne.s32.totalorder %s47, %s48
      %p60 = scmp.eq.s32.totalorder %s17, 3
      %p61 = por %p59, %p60
      %p63 = scmp.ne.s32.totalorder %s48, %s62
      %p64 = scmp.eq.s32.totalorder %s17, 0
      %p65 = por %p63, %p64
      %s66 = ssub.s32 %s11, %s18
      %p67 = scmp.eq.s32.totalorder %s66, 0
      %s69 = sadd.s32 %s68, 1
      %s70 = scalar_select %p67, %s68, %s69
      %p73 = pneg %p67
      %p74 = scmp.eq.s32.totalorder %s11, 3
      %p75 = por %p73, %p74
      %p76 = scmp.ne.s32.totalorder %s68, %s71
      %p77 = scmp.eq.s32.totalorder %s11, 0
      %p78 = por %p76, %p77
      %p79 = scmp.ne.s32.totalorder %s68, %s71
      %p80 = scmp.eq.s32.totalorder %s16, 3
      %p81 = por %p79, %p80
      %p82 = scmp.ne.s32.totalorder %s71, %s72
      %p83 = scmp.eq.s32.totalorder %s16, 0
      %p84 = por %p82, %p83
      %p85 = scmp.ne.s32.totalorder %s71, %s72
      %p86 = scmp.eq.s32.totalorder %s17, 3
      %p87 = por %p85, %p86
      %p89 = scmp.ne.s32.totalorder %s72, %s88
      %p90 = scmp.eq.s32.totalorder %s17, 0
      %p91 = por %p89, %p90
      %p92 = scmp.le.s32.totalorder 1, %s11
      %p93 = scmp.lt.s32.totalorder %s11, 5
      %p94 = pnand %p92, %p93
      %p95 = pneg %p94
      // Predicated region
      $region9: #{convbn_forward.1} parent=5 // pred_check
        _
      $region10: #{convbn_forward.1} parent=5 // pred_check_branch
        %97 = sbr.rel (%p94) target = $region12
      $region11: #{convbn_forward.1} parent=5 // pred_region
        %s98 = ssub.s32 %s11, 1
        // Predicated region
        $region13: #{convbn_forward.1} parent=11 // pred_check
          %p99 = pneg %p58
        $region14: #{convbn_forward.1} parent=11 // pred_check_branch
          %101 = sbr.rel (%p99) target = $region16
        $region15: #{convbn_forward.1} parent=11 // pred_region
          _
        $region16: #{convbn_forward.1} parent=11 // pred_fallthru
          _
      $region12: #{convbn_forward.1} parent=5 // pred_fallthru
        _
      %p102 = scmp.lt.s32.totalorder %s11, 4
      // Predicated region
      $region17: #{convbn_forward.1} parent=5 // pred_check
        %p103 = pneg %p102
      $region18: #{convbn_forward.1} parent=5 // pred_check_branch
        %105 = sbr.rel (%p103) target = $region20
      $region19: #{convbn_forward.1} parent=5 // pred_region
        // Predicated region
        $region21: #{convbn_forward.1} parent=19 // pred_check
          %p106 = pneg %p31
        $region22: #{convbn_forward.1} parent=19 // pred_check_branch
          %108 = sbr.rel (%p106) target = $region24
        $region23: #{convbn_forward.1} parent=19 // pred_region
          %p109 = scmp.lt.s32.totalorder %s11, 3
          %s110 = scalar_select %p109, %s11, 3
          %s111 = smul.addr %s110, 32
          %s112 = smul.addr %s111, 4
          %s113 = scalar_lea.vmem %s0, %s112
        $region24: #{convbn_forward.1} parent=19 // pred_fallthru
          _
      $region20: #{convbn_forward.1} parent=5 // pred_fallthru
        _
      %p114 = scmp.le.s32.totalorder 1, %s11
      %p115 = scmp.lt.s32.totalorder %s11, 5
      %p116 = pnand %p114, %p115
      %p117 = pneg %p116
      // Predicated region
      $region25: #{convbn_forward.1} parent=5 // pred_check
        _
      $region26: #{convbn_forward.1} parent=5 // pred_check_branch
        %119 = sbr.rel (%p116) target = $region28
      $region27: #{convbn_forward.1} parent=5 // pred_region
        %s120 = ssub.s32 %s11, 1
        %p121 = scmp.lt.s32.totalorder %s16, 3
        %s122 = scalar_select %p121, %s16, 3
        %s123 = smul.addr %s122, 32
        %s124 = smul.addr %s123, 4
        %s125 = scalar_lea.vmem %s0, %s124
        %p126 = pneg %p37
        %p127 = pneg %p34
        %p128 = pneg %p58
        %p129 = pneg %p55
        %p130 = pneg %p84
        %p131 = pneg %p81
        %s132 = sand.u32 %s71, 1
        %s133 = scalar_lea.sflag [#allocation5], %s132
        %s134 = sand.u32 %s71, 1
        %s135 = smul.addr %s134, 64
        %s136 = scalar_lea.vmem [#allocation4], %s135
        %p137 = scmp.lt.s32.totalorder %s16, 3
        %s138 = scalar_select %p137, %s16, 3
        %s139 = smul.addr %s138, 32
        %s140 = smul.addr %s139, 4
        %s141 = scalar_lea.vmem %s0, %s140
        %vm143 = vcmask 60416
        %144 = vst.msk [vmem:[#allocation2] sm:$0xf] %vm143, 0
        %145 = vst.msk [vmem:[#allocation2 + $0x4] sm:$0xf] %vm143, 0
        %vm146 = vcmask 57344
        %147 = vst.msk [vmem:[#allocation2 + $0x8] sm:$0x1] %vm146, 0
        %148 = vst.msk [vmem:[#allocation2 + $0xc] sm:$0xf] %vm143, 0
        %149 = vst.msk [vmem:[#allocation2 + $0x10] sm:$0xf] %vm143, 0
        %150 = vst.msk [vmem:[#allocation2 + $0x14] sm:$0x1] %vm146, 0
        %151 = vst.msk [vmem:[#allocation2 + $0x18] sm:$0xf] %vm143, 0
        %152 = vst.msk [vmem:[#allocation2 + $0x1c] sm:$0xf] %vm143, 0
        %153 = vst.msk [vmem:[#allocation2 + $0x20] sm:$0x1] %vm146, 0
        %154 = vst.msk [vmem:[#allocation2 + $0x24] sm:$0xf] %vm143, 0
        %155 = vst.msk [vmem:[#allocation2 + $0x28] sm:$0xf] %vm143, 0
        %156 = vst.msk [vmem:[#allocation2 + $0x2c] sm:$0x1] %vm146, 0
        %157 = vst.msk [vmem:[#allocation2 + $0x30] sm:$0xf] %vm143, 0
        %158 = vst.msk [vmem:[#allocation2 + $0x34] sm:$0xf] %vm143, 0
        %159 = vst.msk [vmem:[#allocation2 + $0x38] sm:$0x1] %vm146, 0
        %160 = vst.msk [vmem:[#allocation2 + $0x3c] sm:$0xf] %vm143, 0
        %161 = vst.msk [vmem:[#allocation2 + $0x40] sm:$0xf] %vm143, 0
        %162 = vst.msk [vmem:[#allocation2 + $0x44] sm:$0x1] %vm146, 0
        %163 = vst.msk [vmem:[#allocation2 + $0x48] sm:$0xf] %vm143, 0
        %164 = vst.msk [vmem:[#allocation2 + $0x4c] sm:$0xf] %vm143, 0
        %165 = vst.msk [vmem:[#allocation2 + $0x50] sm:$0x1] %vm146, 0
        %166 = vst.msk [vmem:[#allocation2 + $0x54] sm:$0xf] %vm143, 0
        %167 = vst.msk [vmem:[#allocation2 + $0x58] sm:$0xf] %vm143, 0
        %168 = vst.msk [vmem:[#allocation2 + $0x5c] sm:$0x1] %vm146, 0
        %169 = vst.msk [vmem:[#allocation2 + $0x60] sm:$0xf] %vm143, 0
        %170 = vst.msk [vmem:[#allocation2 + $0x64] sm:$0xf] %vm143, 0
        %171 = vst.msk [vmem:[#allocation2 + $0x68] sm:$0x1] %vm146, 0
        %172 = vst.msk [vmem:[#allocation2 + $0x6c] sm:$0xf] %vm143, 0
        %173 = vst.msk [vmem:[#allocation2 + $0x70] sm:$0xf] %vm143, 0
        %174 = vst.msk [vmem:[#allocation2 + $0x74] sm:$0x1] %vm146, 0
        %175 = vst.msk [vmem:[#allocation2 + $0x78] sm:$0xf] %vm143, 0
        %176 = vst.msk [vmem:[#allocation2 + $0x7c] sm:$0xf] %vm143, 0
        %177 = vst.msk [vmem:[#allocation2 + $0x80] sm:$0x1] %vm146, 0
        %178 = vst.msk [vmem:[#allocation2 + $0x84] sm:$0xf] %vm143, 0
        %179 = vst.msk [vmem:[#allocation2 + $0x88] sm:$0xf] %vm143, 0
        %180 = vst.msk [vmem:[#allocation2 + $0x8c] sm:$0x1] %vm146, 0
        %181 = vst.msk [vmem:[#allocation2 + $0x90] sm:$0xf] %vm143, 0
        %182 = vst.msk [vmem:[#allocation2 + $0x94] sm:$0xf] %vm143, 0
        %183 = vst.msk [vmem:[#allocation2 + $0x98] sm:$0x1] %vm146, 0
        %184 = vst.msk [vmem:[#allocation2 + $0x9c] sm:$0xf] %vm143, 0
        %185 = vst.msk [vmem:[#allocation2 + $0xa0] sm:$0xf] %vm143, 0
        %186 = vst.msk [vmem:[#allocation2 + $0xa4] sm:$0x1] %vm146, 0
        %187 = vst.msk [vmem:[#allocation2 + $0xa8] sm:$0xf] %vm143, 0
        %188 = vst.msk [vmem:[#allocation2 + $0xac] sm:$0xf] %vm143, 0
        %189 = vst.msk [vmem:[#allocation2 + $0xb0] sm:$0x1] %vm146, 0
        %190 = vst.msk [vmem:[#allocation2 + $0xb4] sm:$0xf] %vm143, 0
        %191 = vst.msk [vmem:[#allocation2 + $0xb8] sm:$0xf] %vm143, 0
        %192 = vst.msk [vmem:[#allocation2 + $0xbc] sm:$0x1] %vm146, 0
        %193 = vst.msk [vmem:[#allocation2 + $0xc0] sm:$0xf] %vm143, 0
        %194 = vst.msk [vmem:[#allocation2 + $0xc4] sm:$0xf] %vm143, 0
        %195 = vst.msk [vmem:[#allocation2 + $0xc8] sm:$0x1] %vm146, 0
        %196 = vst.msk [vmem:[#allocation2 + $0xcc] sm:$0xf] %vm143, 0
        %197 = vst.msk [vmem:[#allocation2 + $0xd0] sm:$0xf] %vm143, 0
        %198 = vst.msk [vmem:[#allocation2 + $0xd4] sm:$0x1] %vm146, 0
        %v199 = vld [vmem:[%s141] sm:$0xf]
        %v200 = vld [vmem:[%s141 + $0x4] sm:$0xf]
        %v201 = vld [vmem:[%s141 + $0x8] sm:$0xf]
        %v202 = vld [vmem:[%s141 + $0xc] sm:$0xf]
        %v203 = vld [vmem:[%s141 + $0x10] sm:$0xf]
        %v204 = vld [vmem:[%s141 + $0x14] sm:$0xf]
        %v205 = vld [vmem:[%s141 + $0x18] sm:$0xf]
        %v206 = vld [vmem:[%s141 + $0x1c] sm:$0xf]
        %v207 = vld [vmem:[%s141 + $0x20] sm:$0xf]
        %v208 = vld [vmem:[%s141 + $0x24] sm:$0xf]
        %v209 = vld [vmem:[%s141 + $0x28] sm:$0xf]
        %v210 = vld [vmem:[%s141 + $0x2c] sm:$0xf]
        %v211 = vld [vmem:[%s141 + $0x30] sm:$0xf]
        %v212 = vld [vmem:[%s141 + $0x34] sm:$0xf]
        %v213 = vld [vmem:[%s141 + $0x38] sm:$0xf]
        %v214 = vld [vmem:[%s141 + $0x3c] sm:$0xf]
        %v215 = vld [vmem:[%s141 + $0x40] sm:$0xf]
        %v216 = vld [vmem:[%s141 + $0x44] sm:$0xf]
        %v217 = vld [vmem:[%s141 + $0x48] sm:$0xf]
        %v218 = vld [vmem:[%s141 + $0x4c] sm:$0xf]
        %v219 = vld [vmem:[%s141 + $0x50] sm:$0xf]
        %v220 = vld [vmem:[%s141 + $0x54] sm:$0xf]
        %v221 = vld [vmem:[%s141 + $0x58] sm:$0xf]
        %v222 = vld [vmem:[%s141 + $0x5c] sm:$0xf]
        %v223 = vld [vmem:[%s141 + $0x60] sm:$0xf]
        %v224 = vld [vmem:[%s141 + $0x64] sm:$0xf]
        %v225 = vld [vmem:[%s141 + $0x68] sm:$0xf]
        %v226 = vld [vmem:[%s141 + $0x6c] sm:$0xf]
        %v227 = vld [vmem:[%s141 + $0x70] sm:$0xf]
        %v228 = vld [vmem:[%s141 + $0x74] sm:$0xf]
        %v229 = vld [vmem:[%s141 + $0x78] sm:$0xf]
        %v230 = vld [vmem:[%s141 + $0x7c] sm:$0xf]
        %vm231 = vsmask.f32 256
        %vm232 = vsmask.f32 4368
        %vm233 = vmor %vm231, %vm232
        %v235 = vshrl.u32 %v199, 16
        %v237 = vrot.slane %v235, 7
        %v238 = vshll.u32 %v199, 16
        %v240 = vor.u32 %v237, %v238
        %v241 = vrot.slane %v237, 4
        %v243 = vshrl.u32 %v200, 16
        %v245 = vrot.slane %v243, 7
        %v246 = vshll.u32 %v200, 16
        %v248 = vor.u32 %v245, %v246
        %v249 = vsel %vm233, %v241, %v248
        %v250 = vrot.slane %v245, 4
        %v252 = vshrl.u32 %v201, 16
        %v254 = vrot.slane %v252, 7
        %v255 = vshll.u32 %v201, 16
        %v257 = vor.u32 %v254, %v255
        %v258 = vrot.slane %v254, 4
        %v260 = vshrl.u32 %v202, 16
        %v262 = vrot.slane %v260, 7
        %v263 = vshll.u32 %v202, 16
        %v265 = vor.u32 %v262, %v263
        %v266 = vsel %vm233, %v258, %v265
        %v267 = vrot.slane %v262, 4
        %v269 = vshrl.u32 %v203, 16
        %v271 = vrot.slane %v269, 7
        %v272 = vshll.u32 %v203, 16
        %v274 = vor.u32 %v271, %v272
        %v275 = vrot.slane %v271, 4
        %v277 = vshrl.u32 %v204, 16
        %v279 = vrot.slane %v277, 7
        %v280 = vshll.u32 %v204, 16
        %v282 = vor.u32 %v279, %v280
        %v283 = vsel %vm233, %v275, %v282
        %v284 = vrot.slane %v279, 4
        %v286 = vshrl.u32 %v205, 16
        %v288 = vrot.slane %v286, 7
        %v289 = vshll.u32 %v205, 16
        %v291 = vor.u32 %v288, %v289
        %v292 = vrot.slane %v288, 4
        %v294 = vshrl.u32 %v206, 16
        %v296 = vrot.slane %v294, 7
        %v297 = vshll.u32 %v206, 16
        %v299 = vor.u32 %v296, %v297
        %v300 = vsel %vm233, %v292, %v299
        %v301 = vrot.slane %v296, 4
        %v303 = vshrl.u32 %v207, 16
        %v305 = vrot.slane %v303, 7
        %v306 = vshll.u32 %v207, 16
        %v308 = vor.u32 %v305, %v306
        %v309 = vrot.slane %v305, 4
        %v311 = vshrl.u32 %v208, 16
        %v313 = vrot.slane %v311, 7
        %v314 = vshll.u32 %v208, 16
        %v316 = vor.u32 %v313, %v314
        %v317 = vsel %vm233, %v309, %v316
        %v318 = vrot.slane %v313, 4
        %v320 = vshrl.u32 %v209, 16
        %v322 = vrot.slane %v320, 7
        %v323 = vshll.u32 %v209, 16
        %v325 = vor.u32 %v322, %v323
        %v326 = vrot.slane %v322, 4
        %v328 = vshrl.u32 %v210, 16
        %v330 = vrot.slane %v328, 7
        %v331 = vshll.u32 %v210, 16
        %v333 = vor.u32 %v330, %v331
        %v334 = vsel %vm233, %v326, %v333
        %v335 = vrot.slane %v330, 4
        %v337 = vshrl.u32 %v211, 16
        %v339 = vrot.slane %v337, 7
        %v340 = vshll.u32 %v211, 16
        %v342 = vor.u32 %v339, %v340
        %v343 = vrot.slane %v339, 4
        %v345 = vshrl.u32 %v212, 16
        %v347 = vrot.slane %v345, 7
        %v348 = vshll.u32 %v212, 16
        %v350 = vor.u32 %v347, %v348
        %v351 = vsel %vm233, %v343, %v350
        %v352 = vrot.slane %v347, 4
        %v354 = vshrl.u32 %v213, 16
        %v356 = vrot.slane %v354, 7
        %v357 = vshll.u32 %v213, 16
        %v359 = vor.u32 %v356, %v357
        %v360 = vrot.slane %v356, 4
        %v362 = vshrl.u32 %v214, 16
        %v364 = vrot.slane %v362, 7
        %v365 = vshll.u32 %v214, 16
        %v367 = vor.u32 %v364, %v365
        %v368 = vsel %vm233, %v360, %v367
        %v369 = vrot.slane %v364, 4
        %v371 = vshrl.u32 %v215, 16
        %v373 = vrot.slane %v371, 7
        %v374 = vshll.u32 %v215, 16
        %v376 = vor.u32 %v373, %v374
        %v377 = vrot.slane %v373, 4
        %v379 = vshrl.u32 %v216, 16
        %v381 = vrot.slane %v379, 7
        %v382 = vshll.u32 %v216, 16
        %v384 = vor.u32 %v381, %v382
        %v385 = vsel %vm233, %v377, %v384
        %v386 = vrot.slane %v381, 4
        %v388 = vshrl.u32 %v217, 16
        %v390 = vrot.slane %v388, 7
        %v391 = vshll.u32 %v217, 16
        %v393 = vor.u32 %v390, %v391
        %v394 = vrot.slane %v390, 4
        %v396 = vshrl.u32 %v218, 16
        %v398 = vrot.slane %v396, 7
        %v399 = vshll.u32 %v218, 16
        %v401 = vor.u32 %v398, %v399
        %v402 = vsel %vm233, %v394, %v401
        %v403 = vrot.slane %v398, 4
        %v405 = vshrl.u32 %v219, 16
        %v407 = vrot.slane %v405, 7
        %v408 = vshll.u32 %v219, 16
        %v410 = vor.u32 %v407, %v408
        %v411 = vrot.slane %v407, 4
        %v413 = vshrl.u32 %v220, 16
        %v415 = vrot.slane %v413, 7
        %v416 = vshll.u32 %v220, 16
        %v418 = vor.u32 %v415, %v416
        %v419 = vsel %vm233, %v411, %v418
        %v420 = vrot.slane %v415, 4
        %v422 = vshrl.u32 %v221, 16
        %v424 = vrot.slane %v422, 7
        %v425 = vshll.u32 %v221, 16
        %v427 = vor.u32 %v424, %v425
        %v428 = vrot.slane %v424, 4
        %v430 = vshrl.u32 %v222, 16
        %v432 = vrot.slane %v430, 7
        %v433 = vshll.u32 %v222, 16
        %v435 = vor.u32 %v432, %v433
        %v436 = vsel %vm233, %v428, %v435
        %v437 = vrot.slane %v432, 4
        %v439 = vshrl.u32 %v223, 16
        %v441 = vrot.slane %v439, 7
        %v442 = vshll.u32 %v223, 16
        %v444 = vor.u32 %v441, %v442
        %v445 = vrot.slane %v441, 4
        %v447 = vshrl.u32 %v224, 16
        %v449 = vrot.slane %v447, 7
        %v450 = vshll.u32 %v224, 16
        %v452 = vor.u32 %v449, %v450
        %v453 = vsel %vm233, %v445, %v452
        %v454 = vrot.slane %v449, 4
        %v456 = vshrl.u32 %v225, 16
        %v458 = vrot.slane %v456, 7
        %v459 = vshll.u32 %v225, 16
        %v461 = vor.u32 %v458, %v459
        %v462 = vrot.slane %v458, 4
        %v464 = vshrl.u32 %v226, 16
        %v466 = vrot.slane %v464, 7
        %v467 = vshll.u32 %v226, 16
        %v469 = vor.u32 %v466, %v467
        %v470 = vsel %vm233, %v462, %v469
        %v471 = vrot.slane %v466, 4
        %v473 = vshrl.u32 %v227, 16
        %v475 = vrot.slane %v473, 7
        %v476 = vshll.u32 %v227, 16
        %v478 = vor.u32 %v475, %v476
        %v479 = vrot.slane %v475, 4
        %v481 = vshrl.u32 %v228, 16
        %v483 = vrot.slane %v481, 7
        %v484 = vshll.u32 %v228, 16
        %v486 = vor.u32 %v483, %v484
        %v487 = vsel %vm233, %v479, %v486
        %v488 = vrot.slane %v483, 4
        %v490 = vshrl.u32 %v229, 16
        %v492 = vrot.slane %v490, 7
        %v493 = vshll.u32 %v229, 16
        %v495 = vor.u32 %v492, %v493
        %v496 = vrot.slane %v492, 4
        %v498 = vshrl.u32 %v230, 16
        %v500 = vrot.slane %v498, 7
        %v501 = vshll.u32 %v230, 16
        %v503 = vor.u32 %v500, %v501
        %v504 = vsel %vm233, %v496, %v503
        %v505 = vrot.slane %v500, 4
        %s554 = scalar_lea.vmem [#allocation2], 12
        %vm555 = vcmask 60416
        %vm556 = vsmask.f32 7938
        %vm557 = vmand %vm555, %vm556
        %v558 = vld [vmem:[%s554] sm:$0xf]
        %v559 = vsel %vm557, %v240, %v558
        %560 = vst [vmem:[%s554] sm:$0xf] %v559
        %561 = vst.msk [vmem:[%s554 + $0x4] sm:$0xf] %vm143, %v249
        %vm562 = vcmask 57344
        %vm563 = vmand %vm562, %vm231
        %v564 = vld [vmem:[%s554 + $0x8] sm:$0x1]
        %v565 = vsel %vm563, %v250, %v564
        %566 = vst [vmem:[%s554 + $0x8] sm:$0x1] %v565
        %v567 = vld [vmem:[%s554 + $0xc] sm:$0xf]
        %v568 = vsel %vm557, %v257, %v567
        %569 = vst [vmem:[%s554 + $0xc] sm:$0xf] %v568
        %570 = vst.msk [vmem:[%s554 + $0x10] sm:$0xf] %vm143, %v266
        %v571 = vld [vmem:[%s554 + $0x14] sm:$0x1]
        %v572 = vsel %vm563, %v267, %v571
        %573 = vst [vmem:[%s554 + $0x14] sm:$0x1] %v572
        %v574 = vld [vmem:[%s554 + $0x18] sm:$0xf]
        %v575 = vsel %vm557, %v274, %v574
        %576 = vst [vmem:[%s554 + $0x18] sm:$0xf] %v575
        %577 = vst.msk [vmem:[%s554 + $0x1c] sm:$0xf] %vm143, %v283
        %v578 = vld [vmem:[%s554 + $0x20] sm:$0x1]
        %v579 = vsel %vm563, %v284, %v578
        %580 = vst [vmem:[%s554 + $0x20] sm:$0x1] %v579
        %v581 = vld [vmem:[%s554 + $0x24] sm:$0xf]
        %v582 = vsel %vm557, %v291, %v581
        %583 = vst [vmem:[%s554 + $0x24] sm:$0xf] %v582
        %584 = vst.msk [vmem:[%s554 + $0x28] sm:$0xf] %vm143, %v300
        %v585 = vld [vmem:[%s554 + $0x2c] sm:$0x1]
        %v586 = vsel %vm563, %v301, %v585
        %587 = vst [vmem:[%s554 + $0x2c] sm:$0x1] %v586
        %v588 = vld [vmem:[%s554 + $0x30] sm:$0xf]
        %v589 = vsel %vm557, %v308, %v588
        %590 = vst [vmem:[%s554 + $0x30] sm:$0xf] %v589
        %591 = vst.msk [vmem:[%s554 + $0x34] sm:$0xf] %vm143, %v317
        %v592 = vld [vmem:[%s554 + $0x38] sm:$0x1]
        %v593 = vsel %vm563, %v318, %v592
        %594 = vst [vmem:[%s554 + $0x38] sm:$0x1] %v593
        %v595 = vld [vmem:[%s554 + $0x3c] sm:$0xf]
        %v596 = vsel %vm557, %v325, %v595
        %597 = vst [vmem:[%s554 + $0x3c] sm:$0xf] %v596
        %598 = vst.msk [vmem:[%s554 + $0x40] sm:$0xf] %vm143, %v334
        %v599 = vld [vmem:[%s554 + $0x44] sm:$0x1]
        %v600 = vsel %vm563, %v335, %v599
        %601 = vst [vmem:[%s554 + $0x44] sm:$0x1] %v600
        %v602 = vld [vmem:[%s554 + $0x48] sm:$0xf]
        %v603 = vsel %vm557, %v342, %v602
        %604 = vst [vmem:[%s554 + $0x48] sm:$0xf] %v603
        %605 = vst.msk [vmem:[%s554 + $0x4c] sm:$0xf] %vm143, %v351
        %v606 = vld [vmem:[%s554 + $0x50] sm:$0x1]
        %v607 = vsel %vm563, %v352, %v606
        %608 = vst [vmem:[%s554 + $0x50] sm:$0x1] %v607
        %v609 = vld [vmem:[%s554 + $0x54] sm:$0xf]
        %v610 = vsel %vm557, %v359, %v609
        %611 = vst [vmem:[%s554 + $0x54] sm:$0xf] %v610
        %612 = vst.msk [vmem:[%s554 + $0x58] sm:$0xf] %vm143, %v368
        %v613 = vld [vmem:[%s554 + $0x5c] sm:$0x1]
        %v614 = vsel %vm563, %v369, %v613
        %615 = vst [vmem:[%s554 + $0x5c] sm:$0x1] %v614
        %v616 = vld [vmem:[%s554 + $0x60] sm:$0xf]
        %v617 = vsel %vm557, %v376, %v616
        %618 = vst [vmem:[%s554 + $0x60] sm:$0xf] %v617
        %619 = vst.msk [vmem:[%s554 + $0x64] sm:$0xf] %vm143, %v385
        %v620 = vld [vmem:[%s554 + $0x68] sm:$0x1]
        %v621 = vsel %vm563, %v386, %v620
        %622 = vst [vmem:[%s554 + $0x68] sm:$0x1] %v621
        %v623 = vld [vmem:[%s554 + $0x6c] sm:$0xf]
        %v624 = vsel %vm557, %v393, %v623
        %625 = vst [vmem:[%s554 + $0x6c] sm:$0xf] %v624
        %626 = vst.msk [vmem:[%s554 + $0x70] sm:$0xf] %vm143, %v402
        %v627 = vld [vmem:[%s554 + $0x74] sm:$0x1]
        %v628 = vsel %vm563, %v403, %v627
        %629 = vst [vmem:[%s554 + $0x74] sm:$0x1] %v628
        %v630 = vld [vmem:[%s554 + $0x78] sm:$0xf]
        %v631 = vsel %vm557, %v410, %v630
        %632 = vst [vmem:[%s554 + $0x78] sm:$0xf] %v631
        %633 = vst.msk [vmem:[%s554 + $0x7c] sm:$0xf] %vm143, %v419
        %v634 = vld [vmem:[%s554 + $0x80] sm:$0x1]
        %v635 = vsel %vm563, %v420, %v634
        %636 = vst [vmem:[%s554 + $0x80] sm:$0x1] %v635
        %v637 = vld [vmem:[%s554 + $0x84] sm:$0xf]
        %v638 = vsel %vm557, %v427, %v637
        %639 = vst [vmem:[%s554 + $0x84] sm:$0xf] %v638
        %640 = vst.msk [vmem:[%s554 + $0x88] sm:$0xf] %vm143, %v436
        %v641 = vld [vmem:[%s554 + $0x8c] sm:$0x1]
        %v642 = vsel %vm563, %v437, %v641
        %643 = vst [vmem:[%s554 + $0x8c] sm:$0x1] %v642
        %v644 = vld [vmem:[%s554 + $0x90] sm:$0xf]
        %v645 = vsel %vm557, %v444, %v644
        %646 = vst [vmem:[%s554 + $0x90] sm:$0xf] %v645
        %647 = vst.msk [vmem:[%s554 + $0x94] sm:$0xf] %vm143, %v453
        %v648 = vld [vmem:[%s554 + $0x98] sm:$0x1]
        %v649 = vsel %vm563, %v454, %v648
        %650 = vst [vmem:[%s554 + $0x98] sm:$0x1] %v649
        %v651 = vld [vmem:[%s554 + $0x9c] sm:$0xf]
        %v652 = vsel %vm557, %v461, %v651
        %653 = vst [vmem:[%s554 + $0x9c] sm:$0xf] %v652
        %654 = vst.msk [vmem:[%s554 + $0xa0] sm:$0xf] %vm143, %v470
        %v655 = vld [vmem:[%s554 + $0xa4] sm:$0x1]
        %v656 = vsel %vm563, %v471, %v655
        %657 = vst [vmem:[%s554 + $0xa4] sm:$0x1] %v656
        %v658 = vld [vmem:[%s554 + $0xa8] sm:$0xf]
        %v659 = vsel %vm557, %v478, %v658
        %660 = vst [vmem:[%s554 + $0xa8] sm:$0xf] %v659
        %661 = vst.msk [vmem:[%s554 + $0xac] sm:$0xf] %vm143, %v487
        %v662 = vld [vmem:[%s554 + $0xb0] sm:$0x1]
        %v663 = vsel %vm563, %v488, %v662
        %664 = vst [vmem:[%s554 + $0xb0] sm:$0x1] %v663
        %v665 = vld [vmem:[%s554 + $0xb4] sm:$0xf]
        %v666 = vsel %vm557, %v495, %v665
        %667 = vst [vmem:[%s554 + $0xb4] sm:$0xf] %v666
        %668 = vst.msk [vmem:[%s554 + $0xb8] sm:$0xf] %vm143, %v504
        %v669 = vld [vmem:[%s554 + $0xbc] sm:$0x1]
        %v670 = vsel %vm563, %v505, %v669
        %671 = vst [vmem:[%s554 + $0xbc] sm:$0x1] %v670
        %v672 = vld [vmem:[#allocation2] sm:$0xf]
        %v673 = vld [vmem:[#allocation2 + $0x4] sm:$0xf]
        %v674 = vld [vmem:[#allocation2 + $0xc] sm:$0xf]
        %v675 = vld [vmem:[#allocation2 + $0x10] sm:$0xf]
        %v676 = vld [vmem:[#allocation2 + $0x18] sm:$0xf]
        %v677 = vld [vmem:[#allocation2 + $0x1c] sm:$0xf]
        %v678 = vld [vmem:[#allocation2 + $0x24] sm:$0xf]
        %v679 = vld [vmem:[#allocation2 + $0x28] sm:$0xf]
        %v680 = vld [vmem:[#allocation2 + $0x30] sm:$0xf]
        %v681 = vld [vmem:[#allocation2 + $0x34] sm:$0xf]
        %v682 = vld [vmem:[#allocation2 + $0x3c] sm:$0xf]
        %v683 = vld [vmem:[#allocation2 + $0x40] sm:$0xf]
        %v684 = vld [vmem:[#allocation2 + $0x48] sm:$0xf]
        %v685 = vld [vmem:[#allocation2 + $0x4c] sm:$0xf]
        %v686 = vld [vmem:[#allocation2 + $0x54] sm:$0xf]
        %v687 = vld [vmem:[#allocation2 + $0x58] sm:$0xf]
        %v688 = vld [vmem:[#allocation2 + $0x60] sm:$0xf]
        %v689 = vld [vmem:[#allocation2 + $0x64] sm:$0xf]
        %v690 = vld [vmem:[#allocation2 + $0x6c] sm:$0xf]
        %v691 = vld [vmem:[#allocation2 + $0x70] sm:$0xf]
        %v692 = vld [vmem:[#allocation2 + $0x78] sm:$0xf]
        %v693 = vld [vmem:[#allocation2 + $0x7c] sm:$0xf]
        %v694 = vld [vmem:[#allocation2 + $0x84] sm:$0xf]
        %v695 = vld [vmem:[#allocation2 + $0x88] sm:$0xf]
        %v696 = vld [vmem:[#allocation2 + $0x90] sm:$0xf]
        %v697 = vld [vmem:[#allocation2 + $0x94] sm:$0xf]
        %v698 = vld [vmem:[#allocation2 + $0x9c] sm:$0xf]
        %v699 = vld [vmem:[#allocation2 + $0xa0] sm:$0xf]
        %v700 = vld [vmem:[#allocation2 + $0xa8] sm:$0xf]
        %v701 = vld [vmem:[#allocation2 + $0xac] sm:$0xf]
        %v702 = vld [vmem:[#allocation2 + $0xb4] sm:$0xf]
        %v703 = vld [vmem:[#allocation2 + $0xb8] sm:$0xf]
        %v736 = vunpack.c.l.b16 %v672
        %v737 = vunpack.c.l.b16 %v673
        %v738 = vunpack.c.l.b16 %v674
        %v739 = vunpack.c.l.b16 %v675
        %v740 = vunpack.c.l.b16 %v676
        %v741 = vunpack.c.l.b16 %v677
        %v742 = vunpack.c.l.b16 %v678
        %v743 = vunpack.c.l.b16 %v679
        %v744 = vunpack.c.l.b16 %v680
        %v745 = vunpack.c.l.b16 %v681
        %v746 = vunpack.c.l.b16 %v682
        %v747 = vunpack.c.l.b16 %v683
        %v748 = vunpack.c.l.b16 %v684
        %v749 = vunpack.c.l.b16 %v685
        %v750 = vunpack.c.l.b16 %v686
        %v751 = vunpack.c.l.b16 %v687
        %v752 = vunpack.c.l.b16 %v688
        %v753 = vunpack.c.l.b16 %v689
        %v754 = vunpack.c.l.b16 %v690
        %v755 = vunpack.c.l.b16 %v691
        %v756 = vunpack.c.l.b16 %v692
        %v757 = vunpack.c.l.b16 %v693
        %v758 = vunpack.c.l.b16 %v694
        %v759 = vunpack.c.l.b16 %v695
        %v760 = vunpack.c.l.b16 %v696
        %v761 = vunpack.c.l.b16 %v697
        %v762 = vunpack.c.l.b16 %v698
        %v763 = vunpack.c.l.b16 %v699
        %v764 = vunpack.c.l.b16 %v700
        %v765 = vunpack.c.l.b16 %v701
        %v766 = vunpack.c.l.b16 %v702
        %v767 = vunpack.c.l.b16 %v703
        %v768 = vpack.c.b16 %v737, %v736
        %v769 = vpack.c.b16 %v739, %v738
        %v770 = vpack.c.b16 %v741, %v740
        %v771 = vpack.c.b16 %v743, %v742
        %v772 = vpack.c.b16 %v745, %v744
        %v773 = vpack.c.b16 %v747, %v746
        %v774 = vpack.c.b16 %v749, %v748
        %v775 = vpack.c.b16 %v751, %v750
        %v776 = vpack.c.b16 %v753, %v752
        %v777 = vpack.c.b16 %v755, %v754
        %v778 = vpack.c.b16 %v757, %v756
        %v779 = vpack.c.b16 %v759, %v758
        %v780 = vpack.c.b16 %v761, %v760
        %v781 = vpack.c.b16 %v763, %v762
        %v782 = vpack.c.b16 %v765, %v764
        %v783 = vpack.c.b16 %v767, %v766
        %vm800 = vcmask 64512
        %801 = vst.msk [vmem:[#allocation3] sm:$0xff] %vm800, %v768
        %802 = vst.msk [vmem:[#allocation3 + $0x8] sm:$0xff] %vm800, %v769
        %803 = vst.msk [vmem:[#allocation3 + $0x10] sm:$0xff] %vm800, %v770
        %804 = vst.msk [vmem:[#allocation3 + $0x18] sm:$0xff] %vm800, %v771
        %805 = vst.msk [vmem:[#allocation3 + $0x20] sm:$0xff] %vm800, %v772
        %806 = vst.msk [vmem:[#allocation3 + $0x28] sm:$0xff] %vm800, %v773
        %807 = vst.msk [vmem:[#allocation3 + $0x30] sm:$0xff] %vm800, %v774
        %808 = vst.msk [vmem:[#allocation3 + $0x38] sm:$0xff] %vm800, %v775
        %809 = vst.msk [vmem:[#allocation3 + $0x40] sm:$0xff] %vm800, %v776
        %810 = vst.msk [vmem:[#allocation3 + $0x48] sm:$0xff] %vm800, %v777
        %811 = vst.msk [vmem:[#allocation3 + $0x50] sm:$0xff] %vm800, %v778
        %812 = vst.msk [vmem:[#allocation3 + $0x58] sm:$0xff] %vm800, %v779
        %813 = vst.msk [vmem:[#allocation3 + $0x60] sm:$0xff] %vm800, %v780
        %814 = vst.msk [vmem:[#allocation3 + $0x68] sm:$0xff] %vm800, %v781
        %815 = vst.msk [vmem:[#allocation3 + $0x70] sm:$0xff] %vm800, %v782
        %816 = vst.msk [vmem:[#allocation3 + $0x78] sm:$0xff] %vm800, %v783
        %v817 = vld [vmem:[#allocation2] sm:$0xf]
        %v818 = vld [vmem:[#allocation2 + $0x4] sm:$0xf]
        %v819 = vld [vmem:[#allocation2 + $0x8] sm:$0x1]
        %v820 = vld [vmem:[#allocation2 + $0xc] sm:$0xf]
        %v821 = vld [vmem:[#allocation2 + $0x10] sm:$0xf]
        %v822 = vld [vmem:[#allocation2 + $0x14] sm:$0x1]
        %v823 = vld [vmem:[#allocation2 + $0x18] sm:$0xf]
        %v824 = vld [vmem:[#allocation2 + $0x1c] sm:$0xf]
        %v825 = vld [vmem:[#allocation2 + $0x20] sm:$0x1]
        %v826 = vld [vmem:[#allocation2 + $0x24] sm:$0xf]
        %v827 = vld [vmem:[#allocation2 + $0x28] sm:$0xf]
        %v828 = vld [vmem:[#allocation2 + $0x2c] sm:$0x1]
        %v829 = vld [vmem:[#allocation2 + $0x30] sm:$0xf]
        %v830 = vld [vmem:[#allocation2 + $0x34] sm:$0xf]
        %v831 = vld [vmem:[#allocation2 + $0x38] sm:$0x1]
        %v832 = vld [vmem:[#allocation2 + $0x3c] sm:$0xf]
        %v833 = vld [vmem:[#allocation2 + $0x40] sm:$0xf]
        %v834 = vld [vmem:[#allocation2 + $0x44] sm:$0x1]
        %v835 = vld [vmem:[#allocation2 + $0x48] sm:$0xf]
        %v836 = vld [vmem:[#allocation2 + $0x4c] sm:$0xf]
        %v837 = vld [vmem:[#allocation2 + $0x50] sm:$0x1]
        %v838 = vld [vmem:[#allocation2 + $0x54] sm:$0xf]
        %v839 = vld [vmem:[#allocation2 + $0x58] sm:$0xf]
        %v840 = vld [vmem:[#allocation2 + $0x5c] sm:$0x1]
        %v841 = vld [vmem:[#allocation2 + $0x60] sm:$0xf]
        %v842 = vld [vmem:[#allocation2 + $0x64] sm:$0xf]
        %v843 = vld [vmem:[#allocation2 + $0x68] sm:$0x1]
        %v844 = vld [vmem:[#allocation2 + $0x6c] sm:$0xf]
        %v845 = vld [vmem:[#allocation2 + $0x70] sm:$0xf]
        %v846 = vld [vmem:[#allocation2 + $0x74] sm:$0x1]
        %v847 = vld [vmem:[#allocation2 + $0x78] sm:$0xf]
        %v848 = vld [vmem:[#allocation2 + $0x7c] sm:$0xf]
        %v849 = vld [vmem:[#allocation2 + $0x80] sm:$0x1]
        %v850 = vld [vmem:[#allocation2 + $0x84] sm:$0xf]
        %v851 = vld [vmem:[#allocation2 + $0x88] sm:$0xf]
        %v852 = vld [vmem:[#allocation2 + $0x8c] sm:$0x1]
        %v853 = vld [vmem:[#allocation2 + $0x90] sm:$0xf]
        %v854 = vld [vmem:[#allocation2 + $0x94] sm:$0xf]
        %v855 = vld [vmem:[#allocation2 + $0x98] sm:$0x1]
        %v856 = vld [vmem:[#allocation2 + $0x9c] sm:$0xf]
        %v857 = vld [vmem:[#allocation2 + $0xa0] sm:$0xf]
        %v858 = vld [vmem:[#allocation2 + $0xa4] sm:$0x1]
        %v859 = vld [vmem:[#allocation2 + $0xa8] sm:$0xf]
        %v860 = vld [vmem:[#allocation2 + $0xac] sm:$0xf]
        %v861 = vld [vmem:[#allocation2 + $0xb0] sm:$0x1]
        %v862 = vld [vmem:[#allocation2 + $0xb4] sm:$0xf]
        %v863 = vld [vmem:[#allocation2 + $0xb8] sm:$0xf]
        %v864 = vld [vmem:[#allocation2 + $0xbc] sm:$0x1]
        %v913 = vunpack.c.l.b16 %v817
        %v914 = vunpack.c.l.b16 %v818
        %v915 = vunpack.c.l.b16 %v819
        %v916 = vunpack.c.l.b16 %v820
        %v917 = vunpack.c.l.b16 %v821
        %v918 = vunpack.c.l.b16 %v822
        %v919 = vunpack.c.l.b16 %v823
        %v920 = vunpack.c.l.b16 %v824
        %v921 = vunpack.c.l.b16 %v825
        %v922 = vunpack.c.l.b16 %v826
        %v923 = vunpack.c.l.b16 %v827
        %v924 = vunpack.c.l.b16 %v828
        %v925 = vunpack.c.l.b16 %v829
        %v926 = vunpack.c.l.b16 %v830
        %v927 = vunpack.c.l.b16 %v831
        %v928 = vunpack.c.l.b16 %v832
        %v929 = vunpack.c.l.b16 %v833
        %v930 = vunpack.c.l.b16 %v834
        %v931 = vunpack.c.l.b16 %v835
        %v932 = vunpack.c.l.b16 %v836
        %v933 = vunpack.c.l.b16 %v837
        %v934 = vunpack.c.l.b16 %v838
        %v935 = vunpack.c.l.b16 %v839
        %v936 = vunpack.c.l.b16 %v840
        %v937 = vunpack.c.l.b16 %v841
        %v938 = vunpack.c.l.b16 %v842
        %v939 = vunpack.c.l.b16 %v843
        %v940 = vunpack.c.l.b16 %v844
        %v941 = vunpack.c.l.b16 %v845
        %v942 = vunpack.c.l.b16 %v846
        %v943 = vunpack.c.l.b16 %v847
        %v944 = vunpack.c.l.b16 %v848
        %v945 = vunpack.c.l.b16 %v849
        %v946 = vunpack.c.l.b16 %v850
        %v947 = vunpack.c.l.b16 %v851
        %v948 = vunpack.c.l.b16 %v852
        %v949 = vunpack.c.l.b16 %v853
        %v950 = vunpack.c.l.b16 %v854
        %v951 = vunpack.c.l.b16 %v855
        %v952 = vunpack.c.l.b16 %v856
        %v953 = vunpack.c.l.b16 %v857
        %v954 = vunpack.c.l.b16 %v858
        %v955 = vunpack.c.l.b16 %v859
        %v956 = vunpack.c.l.b16 %v860
        %v957 = vunpack.c.l.b16 %v861
        %v958 = vunpack.c.l.b16 %v862
        %v959 = vunpack.c.l.b16 %v863
        %v960 = vunpack.c.l.b16 %v864
        %v961 = vpack.c.b16 %v914, %v913
        %v962 = vpack.c.b16 %v915, %v915
        %v963 = vpack.c.b16 %v917, %v916
        %v964 = vpack.c.b16 %v918, %v918
        %v965 = vpack.c.b16 %v920, %v919
        %v966 = vpack.c.b16 %v921, %v921
        %v967 = vpack.c.b16 %v923, %v922
        %v968 = vpack.c.b16 %v924, %v924
        %v969 = vpack.c.b16 %v926, %v925
        %v970 = vpack.c.b16 %v927, %v927
        %v971 = vpack.c.b16 %v929, %v928
        %v972 = vpack.c.b16 %v930, %v930
        %v973 = vpack.c.b16 %v932, %v931
        %v974 = vpack.c.b16 %v933, %v933
        %v975 = vpack.c.b16 %v935, %v934
        %v976 = vpack.c.b16 %v936, %v936
        %v977 = vpack.c.b16 %v938, %v937
        %v978 = vpack.c.b16 %v939, %v939
        %v979 = vpack.c.b16 %v941, %v940
        %v980 = vpack.c.b16 %v942, %v942
        %v981 = vpack.c.b16 %v944, %v943
        %v982 = vpack.c.b16 %v945, %v945
        %v983 = vpack.c.b16 %v947, %v946
        %v984 = vpack.c.b16 %v948, %v948
        %v985 = vpack.c.b16 %v950, %v949
        %v986 = vpack.c.b16 %v951, %v951
        %v987 = vpack.c.b16 %v953, %v952
        %v988 = vpack.c.b16 %v954, %v954
        %v989 = vpack.c.b16 %v956, %v955
        %v990 = vpack.c.b16 %v957, %v957
        %v991 = vpack.c.b16 %v959, %v958
        %v992 = vpack.c.b16 %v960, %v960
        %vm993 = vsmask.f32 7424
        %v995 = vshrl.u32 %v961, 16
        %v997 = vshll.u32 %v961, 16
        %v999 = vrot.slane %v997, 1
        %v1000 = vor.u32 %v995, %v999
        %v1002 = vshll.u32 %v962, 16
        %v1004 = vrot.slane %v1002, 1
        %v1005 = vsel %vm993, %v1000, %v1004
        %v1007 = vshrl.u32 %v963, 16
        %v1009 = vshll.u32 %v963, 16
        %v1011 = vrot.slane %v1009, 1
        %v1012 = vor.u32 %v1007, %v1011
        %v1014 = vshll.u32 %v964, 16
        %v1016 = vrot.slane %v1014, 1
        %v1017 = vsel %vm993, %v1012, %v1016
        %v1019 = vshrl.u32 %v965, 16
        %v1021 = vshll.u32 %v965, 16
        %v1023 = vrot.slane %v1021, 1
        %v1024 = vor.u32 %v1019, %v1023
        %v1026 = vshll.u32 %v966, 16
        %v1028 = vrot.slane %v1026, 1
        %v1029 = vsel %vm993, %v1024, %v1028
        %v1031 = vshrl.u32 %v967, 16
        %v1033 = vshll.u32 %v967, 16
        %v1035 = vrot.slane %v1033, 1
        %v1036 = vor.u32 %v1031, %v1035
        %v1038 = vshll.u32 %v968, 16
        %v1040 = vrot.slane %v1038, 1
        %v1041 = vsel %vm993, %v1036, %v1040
        %v1043 = vshrl.u32 %v969, 16
        %v1045 = vshll.u32 %v969, 16
        %v1047 = vrot.slane %v1045, 1
        %v1048 = vor.u32 %v1043, %v1047
        %v1050 = vshll.u32 %v970, 16
        %v1052 = vrot.slane %v1050, 1
        %v1053 = vsel %vm993, %v1048, %v1052
        %v1055 = vshrl.u32 %v971, 16
        %v1057 = vshll.u32 %v971, 16
        %v1059 = vrot.slane %v1057, 1
        %v1060 = vor.u32 %v1055, %v1059
        %v1062 = vshll.u32 %v972, 16
        %v1064 = vrot.slane %v1062, 1
        %v1065 = vsel %vm993, %v1060, %v1064
        %v1067 = vshrl.u32 %v973, 16
        %v1069 = vshll.u32 %v973, 16
        %v1071 = vrot.slane %v1069, 1
        %v1072 = vor.u32 %v1067, %v1071
        %v1074 = vshll.u32 %v974, 16
        %v1076 = vrot.slane %v1074, 1
        %v1077 = vsel %vm993, %v1072, %v1076
        %v1079 = vshrl.u32 %v975, 16
        %v1081 = vshll.u32 %v975, 16
        %v1083 = vrot.slane %v1081, 1
        %v1084 = vor.u32 %v1079, %v1083
        %v1086 = vshll.u32 %v976, 16
        %v1088 = vrot.slane %v1086, 1
        %v1089 = vsel %vm993, %v1084, %v1088
        %v1091 = vshrl.u32 %v977, 16
        %v1093 = vshll.u32 %v977, 16
        %v1095 = vrot.slane %v1093, 1
        %v1096 = vor.u32 %v1091, %v1095
        %v1098 = vshll.u32 %v978, 16
        %v1100 = vrot.slane %v1098, 1
        %v1101 = vsel %vm993, %v1096, %v1100
        %v1103 = vshrl.u32 %v979, 16
        %v1105 = vshll.u32 %v979, 16
        %v1107 = vrot.slane %v1105, 1
        %v1108 = vor.u32 %v1103, %v1107
        %v1110 = vshll.u32 %v980, 16
        %v1112 = vrot.slane %v1110, 1
        %v1113 = vsel %vm993, %v1108, %v1112
        %v1115 = vshrl.u32 %v981, 16
        %v1117 = vshll.u32 %v981, 16
        %v1119 = vrot.slane %v1117, 1
        %v1120 = vor.u32 %v1115, %v1119
        %v1122 = vshll.u32 %v982, 16
        %v1124 = vrot.slane %v1122, 1
        %v1125 = vsel %vm993, %v1120, %v1124
        %v1127 = vshrl.u32 %v983, 16
        %v1129 = vshll.u32 %v983, 16
        %v1131 = vrot.slane %v1129, 1
        %v1132 = vor.u32 %v1127, %v1131
        %v1134 = vshll.u32 %v984, 16
        %v1136 = vrot.slane %v1134, 1
        %v1137 = vsel %vm993, %v1132, %v1136
        %v1139 = vshrl.u32 %v985, 16
        %v1141 = vshll.u32 %v985, 16
        %v1143 = vrot.slane %v1141, 1
        %v1144 = vor.u32 %v1139, %v1143
        %v1146 = vshll.u32 %v986, 16
        %v1148 = vrot.slane %v1146, 1
        %v1149 = vsel %vm993, %v1144, %v1148
        %v1151 = vshrl.u32 %v987, 16
        %v1153 = vshll.u32 %v987, 16
        %v1155 = vrot.slane %v1153, 1
        %v1156 = vor.u32 %v1151, %v1155
        %v1158 = vshll.u32 %v988, 16
        %v1160 = vrot.slane %v1158, 1
        %v1161 = vsel %vm993, %v1156, %v1160
        %v1163 = vshrl.u32 %v989, 16
        %v1165 = vshll.u32 %v989, 16
        %v1167 = vrot.slane %v1165, 1
        %v1168 = vor.u32 %v1163, %v1167
        %v1170 = vshll.u32 %v990, 16
        %v1172 = vrot.slane %v1170, 1
        %v1173 = vsel %vm993, %v1168, %v1172
        %v1175 = vshrl.u32 %v991, 16
        %v1177 = vshll.u32 %v991, 16
        %v1179 = vrot.slane %v1177, 1
        %v1180 = vor.u32 %v1175, %v1179
        %v1182 = vshll.u32 %v992, 16
        %v1184 = vrot.slane %v1182, 1
        %v1185 = vsel %vm993, %v1180, %v1184
        %1186 = vrot.lane.b32.xlu0 %v1005, 8
        %v1187 = vpop.permute.xlu0 %1186
        %1188 = vrot.lane.b32.xlu0 %v1017, 8
        %v1189 = vpop.permute.xlu0 %1188
        %1190 = vrot.lane.b32.xlu0 %v1029, 8
        %v1191 = vpop.permute.xlu0 %1190
        %1192 = vrot.lane.b32.xlu0 %v1041, 8
        %v1193 = vpop.permute.xlu0 %1192
        %1194 = vrot.lane.b32.xlu0 %v1053, 8
        %v1195 = vpop.permute.xlu0 %1194
        %1196 = vrot.lane.b32.xlu0 %v1065, 8
        %v1197 = vpop.permute.xlu0 %1196
        %1198 = vrot.lane.b32.xlu0 %v1077, 8
        %v1199 = vpop.permute.xlu0 %1198
        %1200 = vrot.lane.b32.xlu0 %v1089, 8
        %v1201 = vpop.permute.xlu0 %1200
        %1202 = vrot.lane.b32.xlu0 %v1101, 8
        %v1203 = vpop.permute.xlu0 %1202
        %1204 = vrot.lane.b32.xlu0 %v1113, 8
        %v1205 = vpop.permute.xlu0 %1204
        %1206 = vrot.lane.b32.xlu0 %v1125, 8
        %v1207 = vpop.permute.xlu0 %1206
        %1208 = vrot.lane.b32.xlu0 %v1137, 8
        %v1209 = vpop.permute.xlu0 %1208
        %1210 = vrot.lane.b32.xlu0 %v1149, 8
        %v1211 = vpop.permute.xlu0 %1210
        %1212 = vrot.lane.b32.xlu0 %v1161, 8
        %v1213 = vpop.permute.xlu0 %1212
        %1214 = vrot.lane.b32.xlu0 %v1173, 8
        %v1215 = vpop.permute.xlu0 %1214
        %1216 = vrot.lane.b32.xlu0 %v1185, 8
        %v1217 = vpop.permute.xlu0 %1216
        %vm1234 = vcmask 130112
        %1235 = vst.msk [vmem:[#allocation3] sm:$0xff] %vm1234, %v1187
        %1236 = vst.msk [vmem:[#allocation3 + $0x8] sm:$0xff] %vm1234, %v1189
        %1237 = vst.msk [vmem:[#allocation3 + $0x10] sm:$0xff] %vm1234, %v1191
        %1238 = vst.msk [vmem:[#allocation3 + $0x18] sm:$0xff] %vm1234, %v1193
        %1239 = vst.msk [vmem:[#allocation3 + $0x20] sm:$0xff] %vm1234, %v1195
        %1240 = vst.msk [vmem:[#allocation3 + $0x28] sm:$0xff] %vm1234, %v1197
        %1241 = vst.msk [vmem:[#allocation3 + $0x30] sm:$0xff] %vm1234, %v1199
        %1242 = vst.msk [vmem:[#allocation3 + $0x38] sm:$0xff] %vm1234, %v1201
        %1243 = vst.msk [vmem:[#allocation3 + $0x40] sm:$0xff] %vm1234, %v1203
        %1244 = vst.msk [vmem:[#allocation3 + $0x48] sm:$0xff] %vm1234, %v1205
        %1245 = vst.msk [vmem:[#allocation3 + $0x50] sm:$0xff] %vm1234, %v1207
        %1246 = vst.msk [vmem:[#allocation3 + $0x58] sm:$0xff] %vm1234, %v1209
        %1247 = vst.msk [vmem:[#allocation3 + $0x60] sm:$0xff] %vm1234, %v1211
        %1248 = vst.msk [vmem:[#allocation3 + $0x68] sm:$0xff] %vm1234, %v1213
        %1249 = vst.msk [vmem:[#allocation3 + $0x70] sm:$0xff] %vm1234, %v1215
        %1250 = vst.msk [vmem:[#allocation3 + $0x78] sm:$0xff] %vm1234, %v1217
        %v1251 = vld [vmem:[#allocation2] sm:$0xe]
        %v1252 = vld [vmem:[#allocation2 + $0x4] sm:$0xf]
        %v1253 = vld [vmem:[#allocation2 + $0x8] sm:$0x1]
        %v1254 = vld [vmem:[#allocation2 + $0xc] sm:$0xe]
        %v1255 = vld [vmem:[#allocation2 + $0x10] sm:$0xf]
        %v1256 = vld [vmem:[#allocation2 + $0x14] sm:$0x1]
        %v1257 = vld [vmem:[#allocation2 + $0x18] sm:$0xe]
        %v1258 = vld [vmem:[#allocation2 + $0x1c] sm:$0xf]
        %v1259 = vld [vmem:[#allocation2 + $0x20] sm:$0x1]
        %v1260 = vld [vmem:[#allocation2 + $0x24] sm:$0xe]
        %v1261 = vld [vmem:[#allocation2 + $0x28] sm:$0xf]
        %v1262 = vld [vmem:[#allocation2 + $0x2c] sm:$0x1]
        %v1263 = vld [vmem:[#allocation2 + $0x30] sm:$0xe]
        %v1264 = vld [vmem:[#allocation2 + $0x34] sm:$0xf]
        %v1265 = vld [vmem:[#allocation2 + $0x38] sm:$0x1]
        %v1266 = vld [vmem:[#allocation2 + $0x3c] sm:$0xe]
        %v1267 = vld [vmem:[#allocation2 + $0x40] sm:$0xf]
        %v1268 = vld [vmem:[#allocation2 + $0x44] sm:$0x1]
        %v1269 = vld [vmem:[#allocation2 + $0x48] sm:$0xe]
        %v1270 = vld [vmem:[#allocation2 + $0x4c] sm:$0xf]
        %v1271 = vld [vmem:[#allocation2 + $0x50] sm:$0x1]
        %v1272 = vld [vmem:[#allocation2 + $0x54] sm:$0xe]
        %v1273 = vld [vmem:[#allocation2 + $0x58] sm:$0xf]
        %v1274 = vld [vmem:[#allocation2 + $0x5c] sm:$0x1]
        %v1275 = vld [vmem:[#allocation2 + $0x60] sm:$0xe]
        %v1276 = vld [vmem:[#allocation2 + $0x64] sm:$0xf]
        %v1277 = vld [vmem:[#allocation2 + $0x68] sm:$0x1]
        %v1278 = vld [vmem:[#allocation2 + $0x6c] sm:$0xe]
        %v1279 = vld [vmem:[#allocation2 + $0x70] sm:$0xf]
        %v1280 = vld [vmem:[#allocation2 + $0x74] sm:$0x1]
        %v1281 = vld [vmem:[#allocation2 + $0x78] sm:$0xe]
        %v1282 = vld [vmem:[#allocation2 + $0x7c] sm:$0xf]
        %v1283 = vld [vmem:[#allocation2 + $0x80] sm:$0x1]
        %v1284 = vld [vmem:[#allocation2 + $0x84] sm:$0xe]
        %v1285 = vld [vmem:[#allocation2 + $0x88] sm:$0xf]
        %v1286 = vld [vmem:[#allocation2 + $0x8c] sm:$0x1]
        %v1287 = vld [vmem:[#allocation2 + $0x90] sm:$0xe]
        %v1288 = vld [vmem:[#allocation2 + $0x94] sm:$0xf]
        %v1289 = vld [vmem:[#allocation2 + $0x98] sm:$0x1]
        %v1290 = vld [vmem:[#allocation2 + $0x9c] sm:$0xe]
        %v1291 = vld [vmem:[#allocation2 + $0xa0] sm:$0xf]
        %v1292 = vld [vmem:[#allocation2 + $0xa4] sm:$0x1]
        %v1293 = vld [vmem:[#allocation2 + $0xa8] sm:$0xe]
        %v1294 = vld [vmem:[#allocation2 + $0xac] sm:$0xf]
        %v1295 = vld [vmem:[#allocation2 + $0xb0] sm:$0x1]
        %v1296 = vld [vmem:[#allocation2 + $0xb4] sm:$0xe]
        %v1297 = vld [vmem:[#allocation2 + $0xb8] sm:$0xf]
        %v1298 = vld [vmem:[#allocation2 + $0xbc] sm:$0x1]
        %v1347 = vunpack.c.l.b16 %v1251
        %v1348 = vunpack.c.l.b16 %v1252
        %v1349 = vunpack.c.l.b16 %v1253
        %v1350 = vunpack.c.l.b16 %v1254
        %v1351 = vunpack.c.l.b16 %v1255
        %v1352 = vunpack.c.l.b16 %v1256
        %v1353 = vunpack.c.l.b16 %v1257
        %v1354 = vunpack.c.l.b16 %v1258
        %v1355 = vunpack.c.l.b16 %v1259
        %v1356 = vunpack.c.l.b16 %v1260
        %v1357 = vunpack.c.l.b16 %v1261
        %v1358 = vunpack.c.l.b16 %v1262
        %v1359 = vunpack.c.l.b16 %v1263
        %v1360 = vunpack.c.l.b16 %v1264
        %v1361 = vunpack.c.l.b16 %v1265
        %v1362 = vunpack.c.l.b16 %v1266
        %v1363 = vunpack.c.l.b16 %v1267
        %v1364 = vunpack.c.l.b16 %v1268
        %v1365 = vunpack.c.l.b16 %v1269
        %v1366 = vunpack.c.l.b16 %v1270
        %v1367 = vunpack.c.l.b16 %v1271
        %v1368 = vunpack.c.l.b16 %v1272
        %v1369 = vunpack.c.l.b16 %v1273
        %v1370 = vunpack.c.l.b16 %v1274
        %v1371 = vunpack.c.l.b16 %v1275
        %v1372 = vunpack.c.l.b16 %v1276
        %v1373 = vunpack.c.l.b16 %v1277
        %v1374 = vunpack.c.l.b16 %v1278
        %v1375 = vunpack.c.l.b16 %v1279
        %v1376 = vunpack.c.l.b16 %v1280
        %v1377 = vunpack.c.l.b16 %v1281
        %v1378 = vunpack.c.l.b16 %v1282
        %v1379 = vunpack.c.l.b16 %v1283
        %v1380 = vunpack.c.l.b16 %v1284
        %v1381 = vunpack.c.l.b16 %v1285
        %v1382 = vunpack.c.l.b16 %v1286
        %v1383 = vunpack.c.l.b16 %v1287
        %v1384 = vunpack.c.l.b16 %v1288
        %v1385 = vunpack.c.l.b16 %v1289
        %v1386 = vunpack.c.l.b16 %v1290
        %v1387 = vunpack.c.l.b16 %v1291
        %v1388 = vunpack.c.l.b16 %v1292
        %v1389 = vunpack.c.l.b16 %v1293
        %v1390 = vunpack.c.l.b16 %v1294
        %v1391 = vunpack.c.l.b16 %v1295
        %v1392 = vunpack.c.l.b16 %v1296
        %v1393 = vunpack.c.l.b16 %v1297
        %v1394 = vunpack.c.l.b16 %v1298
        %v1395 = vpack.c.b16 %v1348, %v1347
        %v1396 = vpack.c.b16 %v1349, %v1349
        %v1397 = vpack.c.b16 %v1351, %v1350
        %v1398 = vpack.c.b16 %v1352, %v1352
        %v1399 = vpack.c.b16 %v1354, %v1353
        %v1400 = vpack.c.b16 %v1355, %v1355
        %v1401 = vpack.c.b16 %v1357, %v1356
        %v1402 = vpack.c.b16 %v1358, %v1358
        %v1403 = vpack.c.b16 %v1360, %v1359
        %v1404 = vpack.c.b16 %v1361, %v1361
        %v1405 = vpack.c.b16 %v1363, %v1362
        %v1406 = vpack.c.b16 %v1364, %v1364
        %v1407 = vpack.c.b16 %v1366, %v1365
        %v1408 = vpack.c.b16 %v1367, %v1367
        %v1409 = vpack.c.b16 %v1369, %v1368
        %v1410 = vpack.c.b16 %v1370, %v1370
        %v1411 = vpack.c.b16 %v1372, %v1371
        %v1412 = vpack.c.b16 %v1373, %v1373
        %v1413 = vpack.c.b16 %v1375, %v1374
        %v1414 = vpack.c.b16 %v1376, %v1376
        %v1415 = vpack.c.b16 %v1378, %v1377
        %v1416 = vpack.c.b16 %v1379, %v1379
        %v1417 = vpack.c.b16 %v1381, %v1380
        %v1418 = vpack.c.b16 %v1382, %v1382
        %v1419 = vpack.c.b16 %v1384, %v1383
        %v1420 = vpack.c.b16 %v1385, %v1385
        %v1421 = vpack.c.b16 %v1387, %v1386
        %v1422 = vpack.c.b16 %v1388, %v1388
        %v1423 = vpack.c.b16 %v1390, %v1389
        %v1424 = vpack.c.b16 %v1391, %v1391
        %v1425 = vpack.c.b16 %v1393, %v1392
        %v1426 = vpack.c.b16 %v1394, %v1394
        %vm1427 = vcmask 1046528
        %v1428 = vrot.slane %v1395, 1
        %v1429 = vrot.slane %v1396, 1
        %v1430 = vsel %vm1427, %v1428, %v1429
        %v1431 = vrot.slane %v1397, 1
        %v1432 = vrot.slane %v1398, 1
        %v1433 = vsel %vm1427, %v1431, %v1432
        %v1434 = vrot.slane %v1399, 1
        %v1435 = vrot.slane %v1400, 1
        %v1436 = vsel %vm1427, %v1434, %v1435
        %v1437 = vrot.slane %v1401, 1
        %v1438 = vrot.slane %v1402, 1
        %v1439 = vsel %vm1427, %v1437, %v1438
        %v1440 = vrot.slane %v1403, 1
        %v1441 = vrot.slane %v1404, 1
        %v1442 = vsel %vm1427, %v1440, %v1441
        %v1443 = vrot.slane %v1405, 1
        %v1444 = vrot.slane %v1406, 1
        %v1445 = vsel %vm1427, %v1443, %v1444
        %v1446 = vrot.slane %v1407, 1
        %v1447 = vrot.slane %v1408, 1
        %v1448 = vsel %vm1427, %v1446, %v1447
        %v1449 = vrot.slane %v1409, 1
        %v1450 = vrot.slane %v1410, 1
        %v1451 = vsel %vm1427, %v1449, %v1450
        %v1452 = vrot.slane %v1411, 1
        %v1453 = vrot.slane %v1412, 1
        %v1454 = vsel %vm1427, %v1452, %v1453
        %v1455 = vrot.slane %v1413, 1
        %v1456 = vrot.slane %v1414, 1
        %v1457 = vsel %vm1427, %v1455, %v1456
        %v1458 = vrot.slane %v1415, 1
        %v1459 = vrot.slane %v1416, 1
        %v1460 = vsel %vm1427, %v1458, %v1459
        %v1461 = vrot.slane %v1417, 1
        %v1462 = vrot.slane %v1418, 1
        %v1463 = vsel %vm1427, %v1461, %v1462
        %v1464 = vrot.slane %v1419, 1
        %v1465 = vrot.slane %v1420, 1
        %v1466 = vsel %vm1427, %v1464, %v1465
        %v1467 = vrot.slane %v1421, 1
        %v1468 = vrot.slane %v1422, 1
        %v1469 = vsel %vm1427, %v1467, %v1468
        %v1470 = vrot.slane %v1423, 1
        %v1471 = vrot.slane %v1424, 1
        %v1472 = vsel %vm1427, %v1470, %v1471
        %v1473 = vrot.slane %v1425, 1
        %v1474 = vrot.slane %v1426, 1
        %v1475 = vsel %vm1427, %v1473, %v1474
        %1476 = vrot.lane.b32.xlu0 %v1430, 16
        %v1477 = vpop.permute.xlu0 %1476
        %1478 = vrot.lane.b32.xlu0 %v1433, 16
        %v1479 = vpop.permute.xlu0 %1478
        %1480 = vrot.lane.b32.xlu0 %v1436, 16
        %v1481 = vpop.permute.xlu0 %1480
        %1482 = vrot.lane.b32.xlu0 %v1439, 16
        %v1483 = vpop.permute.xlu0 %1482
        %1484 = vrot.lane.b32.xlu0 %v1442, 16
        %v1485 = vpop.permute.xlu0 %1484
        %1486 = vrot.lane.b32.xlu0 %v1445, 16
        %v1487 = vpop.permute.xlu0 %1486
        %1488 = vrot.lane.b32.xlu0 %v1448, 16
        %v1489 = vpop.permute.xlu0 %1488
        %1490 = vrot.lane.b32.xlu0 %v1451, 16
        %v1491 = vpop.permute.xlu0 %1490
        %1492 = vrot.lane.b32.xlu0 %v1454, 16
        %v1493 = vpop.permute.xlu0 %1492
        %1494 = vrot.lane.b32.xlu0 %v1457, 16
        %v1495 = vpop.permute.xlu0 %1494
        %1496 = vrot.lane.b32.xlu0 %v1460, 16
        %v1497 = vpop.permute.xlu0 %1496
        %1498 = vrot.lane.b32.xlu0 %v1463, 16
        %v1499 = vpop.permute.xlu0 %1498
        %1500 = vrot.lane.b32.xlu0 %v1466, 16
        %v1501 = vpop.permute.xlu0 %1500
        %1502 = vrot.lane.b32.xlu0 %v1469, 16
        %v1503 = vpop.permute.xlu0 %1502
        %1504 = vrot.lane.b32.xlu0 %v1472, 16
        %v1505 = vpop.permute.xlu0 %1504
        %1506 = vrot.lane.b32.xlu0 %v1475, 16
        %v1507 = vpop.permute.xlu0 %1506
        %vm1524 = vcmask 195712
        %1525 = vst.msk [vmem:[#allocation3] sm:$0xff] %vm1524, %v1477
        %1526 = vst.msk [vmem:[#allocation3 + $0x8] sm:$0xff] %vm1524, %v1479
        %1527 = vst.msk [vmem:[#allocation3 + $0x10] sm:$0xff] %vm1524, %v1481
        %1528 = vst.msk [vmem:[#allocation3 + $0x18] sm:$0xff] %vm1524, %v1483
        %1529 = vst.msk [vmem:[#allocation3 + $0x20] sm:$0xff] %vm1524, %v1485
        %1530 = vst.msk [vmem:[#allocation3 + $0x28] sm:$0xff] %vm1524, %v1487
        %1531 = vst.msk [vmem:[#allocation3 + $0x30] sm:$0xff] %vm1524, %v1489
        %1532 = vst.msk [vmem:[#allocation3 + $0x38] sm:$0xff] %vm1524, %v1491
        %1533 = vst.msk [vmem:[#allocation3 + $0x40] sm:$0xff] %vm1524, %v1493
        %1534 = vst.msk [vmem:[#allocation3 + $0x48] sm:$0xff] %vm1524, %v1495
        %1535 = vst.msk [vmem:[#allocation3 + $0x50] sm:$0xff] %vm1524, %v1497
        %1536 = vst.msk [vmem:[#allocation3 + $0x58] sm:$0xff] %vm1524, %v1499
        %1537 = vst.msk [vmem:[#allocation3 + $0x60] sm:$0xff] %vm1524, %v1501
        %1538 = vst.msk [vmem:[#allocation3 + $0x68] sm:$0xff] %vm1524, %v1503
        %1539 = vst.msk [vmem:[#allocation3 + $0x70] sm:$0xff] %vm1524, %v1505
        %1540 = vst.msk [vmem:[#allocation3 + $0x78] sm:$0xff] %vm1524, %v1507
        %v1541 = vld [vmem:[%s554] sm:$0xf]
        %v1542 = vld [vmem:[%s554 + $0x4] sm:$0xf]
        %v1543 = vld [vmem:[%s554 + $0xc] sm:$0xf]
        %v1544 = vld [vmem:[%s554 + $0x10] sm:$0xf]
        %v1545 = vld [vmem:[%s554 + $0x18] sm:$0xf]
        %v1546 = vld [vmem:[%s554 + $0x1c] sm:$0xf]
        %v1547 = vld [vmem:[%s554 + $0x24] sm:$0xf]
        %v1548 = vld [vmem:[%s554 + $0x28] sm:$0xf]
        %v1549 = vld [vmem:[%s554 + $0x30] sm:$0xf]
        %v1550 = vld [vmem:[%s554 + $0x34] sm:$0xf]
        %v1551 = vld [vmem:[%s554 + $0x3c] sm:$0xf]
        %v1552 = vld [vmem:[%s554 + $0x40] sm:$0xf]
        %v1553 = vld [vmem:[%s554 + $0x48] sm:$0xf]
        %v1554 = vld [vmem:[%s554 + $0x4c] sm:$0xf]
        %v1555 = vld [vmem:[%s554 + $0x54] sm:$0xf]
        %v1556 = vld [vmem:[%s554 + $0x58] sm:$0xf]
        %v1557 = vld [vmem:[%s554 + $0x60] sm:$0xf]
        %v1558 = vld [vmem:[%s554 + $0x64] sm:$0xf]
        %v1559 = vld [vmem:[%s554 + $0x6c] sm:$0xf]
        %v1560 = vld [vmem:[%s554 + $0x70] sm:$0xf]
        %v1561 = vld [vmem:[%s554 + $0x78] sm:$0xf]
        %v1562 = vld [vmem:[%s554 + $0x7c] sm:$0xf]
        %v1563 = vld [vmem:[%s554 + $0x84] sm:$0xf]
        %v1564 = vld [vmem:[%s554 + $0x88] sm:$0xf]
        %v1565 = vld [vmem:[%s554 + $0x90] sm:$0xf]
        %v1566 = vld [vmem:[%s554 + $0x94] sm:$0xf]
        %v1567 = vld [vmem:[%s554 + $0x9c] sm:$0xf]
        %v1568 = vld [vmem:[%s554 + $0xa0] sm:$0xf]
        %v1569 = vld [vmem:[%s554 + $0xa8] sm:$0xf]
        %v1570 = vld [vmem:[%s554 + $0xac] sm:$0xf]
        %v1571 = vld [vmem:[%s554 + $0xb4] sm:$0xf]
        %v1572 = vld [vmem:[%s554 + $0xb8] sm:$0xf]
        %v1605 = vunpack.c.l.b16 %v1541
        %v1606 = vunpack.c.l.b16 %v1542
        %v1607 = vunpack.c.l.b16 %v1543
        %v1608 = vunpack.c.l.b16 %v1544
        %v1609 = vunpack.c.l.b16 %v1545
        %v1610 = vunpack.c.l.b16 %v1546
        %v1611 = vunpack.c.l.b16 %v1547
        %v1612 = vunpack.c.l.b16 %v1548
        %v1613 = vunpack.c.l.b16 %v1549
        %v1614 = vunpack.c.l.b16 %v1550
        %v1615 = vunpack.c.l.b16 %v1551
        %v1616 = vunpack.c.l.b16 %v1552
        %v1617 = vunpack.c.l.b16 %v1553
        %v1618 = vunpack.c.l.b16 %v1554
        %v1619 = vunpack.c.l.b16 %v1555
        %v1620 = vunpack.c.l.b16 %v1556
        %v1621 = vunpack.c.l.b16 %v1557
        %v1622 = vunpack.c.l.b16 %v1558
        %v1623 = vunpack.c.l.b16 %v1559
        %v1624 = vunpack.c.l.b16 %v1560
        %v1625 = vunpack.c.l.b16 %v1561
        %v1626 = vunpack.c.l.b16 %v1562
        %v1627 = vunpack.c.l.b16 %v1563
        %v1628 = vunpack.c.l.b16 %v1564
        %v1629 = vunpack.c.l.b16 %v1565
        %v1630 = vunpack.c.l.b16 %v1566
        %v1631 = vunpack.c.l.b16 %v1567
        %v1632 = vunpack.c.l.b16 %v1568
        %v1633 = vunpack.c.l.b16 %v1569
        %v1634 = vunpack.c.l.b16 %v1570
        %v1635 = vunpack.c.l.b16 %v1571
        %v1636 = vunpack.c.l.b16 %v1572
        %v1637 = vpack.c.b16 %v1606, %v1605
        %v1638 = vpack.c.b16 %v1608, %v1607
        %v1639 = vpack.c.b16 %v1610, %v1609
        %v1640 = vpack.c.b16 %v1612, %v1611
        %v1641 = vpack.c.b16 %v1614, %v1613
        %v1642 = vpack.c.b16 %v1616, %v1615
        %v1643 = vpack.c.b16 %v1618, %v1617
        %v1644 = vpack.c.b16 %v1620, %v1619
        %v1645 = vpack.c.b16 %v1622, %v1621
        %v1646 = vpack.c.b16 %v1624, %v1623
        %v1647 = vpack.c.b16 %v1626, %v1625
        %v1648 = vpack.c.b16 %v1628, %v1627
        %v1649 = vpack.c.b16 %v1630, %v1629
        %v1650 = vpack.c.b16 %v1632, %v1631
        %v1651 = vpack.c.b16 %v1634, %v1633
        %v1652 = vpack.c.b16 %v1636, %v1635
        %1653 = vrot.lane.b32.xlu0 %v1637, 24
        %v1654 = vpop.permute.xlu0 %1653
        %1655 = vrot.lane.b32.xlu0 %v1638, 24
        %v1656 = vpop.permute.xlu0 %1655
        %1657 = vrot.lane.b32.xlu0 %v1639, 24
        %v1658 = vpop.permute.xlu0 %1657
        %1659 = vrot.lane.b32.xlu0 %v1640, 24
        %v1660 = vpop.permute.xlu0 %1659
        %1661 = vrot.lane.b32.xlu0 %v1641, 24
        %v1662 = vpop.permute.xlu0 %1661
        %1663 = vrot.lane.b32.xlu0 %v1642, 24
        %v1664 = vpop.permute.xlu0 %1663
        %1665 = vrot.lane.b32.xlu0 %v1643, 24
        %v1666 = vpop.permute.xlu0 %1665
        %1667 = vrot.lane.b32.xlu0 %v1644, 24
        %v1668 = vpop.permute.xlu0 %1667
        %1669 = vrot.lane.b32.xlu0 %v1645, 24
        %v1670 = vpop.permute.xlu0 %1669
        %1671 = vrot.lane.b32.xlu0 %v1646, 24
        %v1672 = vpop.permute.xlu0 %1671
        %1673 = vrot.lane.b32.xlu0 %v1647, 24
        %v1674 = vpop.permute.xlu0 %1673
        %1675 = vrot.lane.b32.xlu0 %v1648, 24
        %v1676 = vpop.permute.xlu0 %1675
        %1677 = vrot.lane.b32.xlu0 %v1649, 24
        %v1678 = vpop.permute.xlu0 %1677
        %1679 = vrot.lane.b32.xlu0 %v1650, 24
        %v1680 = vpop.permute.xlu0 %1679
        %1681 = vrot.lane.b32.xlu0 %v1651, 24
        %v1682 = vpop.permute.xlu0 %1681
        %1683 = vrot.lane.b32.xlu0 %v1652, 24
        %v1684 = vpop.permute.xlu0 %1683
        %vm1701 = vcmask 261312
        %1702 = vst.msk [vmem:[#allocation3] sm:$0xff] %vm1701, %v1654
        %1703 = vst.msk [vmem:[#allocation3 + $0x8] sm:$0xff] %vm1701, %v1656
        %1704 = vst.msk [vmem:[#allocation3 + $0x10] sm:$0xff] %vm1701, %v1658
        %1705 = vst.msk [vmem:[#allocation3 + $0x18] sm:$0xff] %vm1701, %v1660
        %1706 = vst.msk [vmem:[#allocation3 + $0x20] sm:$0xff] %vm1701, %v1662
        %1707 = vst.msk [vmem:[#allocation3 + $0x28] sm:$0xff] %vm1701, %v1664
        %1708 = vst.msk [vmem:[#allocation3 + $0x30] sm:$0xff] %vm1701, %v1666
        %1709 = vst.msk [vmem:[#allocation3 + $0x38] sm:$0xff] %vm1701, %v1668
        %1710 = vst.msk [vmem:[#allocation3 + $0x40] sm:$0xff] %vm1701, %v1670
        %1711 = vst.msk [vmem:[#allocation3 + $0x48] sm:$0xff] %vm1701, %v1672
        %1712 = vst.msk [vmem:[#allocation3 + $0x50] sm:$0xff] %vm1701, %v1674
        %1713 = vst.msk [vmem:[#allocation3 + $0x58] sm:$0xff] %vm1701, %v1676
        %1714 = vst.msk [vmem:[#allocation3 + $0x60] sm:$0xff] %vm1701, %v1678
        %1715 = vst.msk [vmem:[#allocation3 + $0x68] sm:$0xff] %vm1701, %v1680
        %1716 = vst.msk [vmem:[#allocation3 + $0x70] sm:$0xff] %vm1701, %v1682
        %1717 = vst.msk [vmem:[#allocation3 + $0x78] sm:$0xff] %vm1701, %v1684
        %v1718 = vld [vmem:[%s554] sm:$0xf]
        %v1719 = vld [vmem:[%s554 + $0x4] sm:$0xf]
        %v1720 = vld [vmem:[%s554 + $0x8] sm:$0x1]
        %v1721 = vld [vmem:[%s554 + $0xc] sm:$0xf]
        %v1722 = vld [vmem:[%s554 + $0x10] sm:$0xf]
        %v1723 = vld [vmem:[%s554 + $0x14] sm:$0x1]
        %v1724 = vld [vmem:[%s554 + $0x18] sm:$0xf]
        %v1725 = vld [vmem:[%s554 + $0x1c] sm:$0xf]
        %v1726 = vld [vmem:[%s554 + $0x20] sm:$0x1]
        %v1727 = vld [vmem:[%s554 + $0x24] sm:$0xf]
        %v1728 = vld [vmem:[%s554 + $0x28] sm:$0xf]
        %v1729 = vld [vmem:[%s554 + $0x2c] sm:$0x1]
        %v1730 = vld [vmem:[%s554 + $0x30] sm:$0xf]
        %v1731 = vld [vmem:[%s554 + $0x34] sm:$0xf]
        %v1732 = vld [vmem:[%s554 + $0x38] sm:$0x1]
        %v1733 = vld [vmem:[%s554 + $0x3c] sm:$0xf]
        %v1734 = vld [vmem:[%s554 + $0x40] sm:$0xf]
        %v1735 = vld [vmem:[%s554 + $0x44] sm:$0x1]
        %v1736 = vld [vmem:[%s554 + $0x48] sm:$0xf]
        %v1737 = vld [vmem:[%s554 + $0x4c] sm:$0xf]
        %v1738 = vld [vmem:[%s554 + $0x50] sm:$0x1]
        %v1739 = vld [vmem:[%s554 + $0x54] sm:$0xf]
        %v1740 = vld [vmem:[%s554 + $0x58] sm:$0xf]
        %v1741 = vld [vmem:[%s554 + $0x5c] sm:$0x1]
        %v1742 = vld [vmem:[%s554 + $0x60] sm:$0xf]
        %v1743 = vld [vmem:[%s554 + $0x64] sm:$0xf]
        %v1744 = vld [vmem:[%s554 + $0x68] sm:$0x1]
        %v1745 = vld [vmem:[%s554 + $0x6c] sm:$0xf]
        %v1746 = vld [vmem:[%s554 + $0x70] sm:$0xf]
        %v1747 = vld [vmem:[%s554 + $0x74] sm:$0x1]
        %v1748 = vld [vmem:[%s554 + $0x78] sm:$0xf]
        %v1749 = vld [vmem:[%s554 + $0x7c] sm:$0xf]
        %v1750 = vld [vmem:[%s554 + $0x80] sm:$0x1]
        %v1751 = vld [vmem:[%s554 + $0x84] sm:$0xf]
        %v1752 = vld [vmem:[%s554 + $0x88] sm:$0xf]
        %v1753 = vld [vmem:[%s554 + $0x8c] sm:$0x1]
        %v1754 = vld [vmem:[%s554 + $0x90] sm:$0xf]
        %v1755 = vld [vmem:[%s554 + $0x94] sm:$0xf]
        %v1756 = vld [vmem:[%s554 + $0x98] sm:$0x1]
        %v1757 = vld [vmem:[%s554 + $0x9c] sm:$0xf]
        %v1758 = vld [vmem:[%s554 + $0xa0] sm:$0xf]
        %v1759 = vld [vmem:[%s554 + $0xa4] sm:$0x1]
        %v1760 = vld [vmem:[%s554 + $0xa8] sm:$0xf]
        %v1761 = vld [vmem:[%s554 + $0xac] sm:$0xf]
        %v1762 = vld [vmem:[%s554 + $0xb0] sm:$0x1]
        %v1763 = vld [vmem:[%s554 + $0xb4] sm:$0xf]
        %v1764 = vld [vmem:[%s554 + $0xb8] sm:$0xf]
        %v1765 = vld [vmem:[%s554 + $0xbc] sm:$0x1]
        %v1814 = vunpack.c.l.b16 %v1718
        %v1815 = vunpack.c.l.b16 %v1719
        %v1816 = vunpack.c.l.b16 %v1720
        %v1817 = vunpack.c.l.b16 %v1721
        %v1818 = vunpack.c.l.b16 %v1722
        %v1819 = vunpack.c.l.b16 %v1723
        %v1820 = vunpack.c.l.b16 %v1724
        %v1821 = vunpack.c.l.b16 %v1725
        %v1822 = vunpack.c.l.b16 %v1726
        %v1823 = vunpack.c.l.b16 %v1727
        %v1824 = vunpack.c.l.b16 %v1728
        %v1825 = vunpack.c.l.b16 %v1729
        %v1826 = vunpack.c.l.b16 %v1730
        %v1827 = vunpack.c.l.b16 %v1731
        %v1828 = vunpack.c.l.b16 %v1732
        %v1829 = vunpack.c.l.b16 %v1733
        %v1830 = vunpack.c.l.b16 %v1734
        %v1831 = vunpack.c.l.b16 %v1735
        %v1832 = vunpack.c.l.b16 %v1736
        %v1833 = vunpack.c.l.b16 %v1737
        %v1834 = vunpack.c.l.b16 %v1738
        %v1835 = vunpack.c.l.b16 %v1739
        %v1836 = vunpack.c.l.b16 %v1740
        %v1837 = vunpack.c.l.b16 %v1741
        %v1838 = vunpack.c.l.b16 %v1742
        %v1839 = vunpack.c.l.b16 %v1743
        %v1840 = vunpack.c.l.b16 %v1744
        %v1841 = vunpack.c.l.b16 %v1745
        %v1842 = vunpack.c.l.b16 %v1746
        %v1843 = vunpack.c.l.b16 %v1747
        %v1844 = vunpack.c.l.b16 %v1748
        %v1845 = vunpack.c.l.b16 %v1749
        %v1846 = vunpack.c.l.b16 %v1750
        %v1847 = vunpack.c.l.b16 %v1751
        %v1848 = vunpack.c.l.b16 %v1752
        %v1849 = vunpack.c.l.b16 %v1753
        %v1850 = vunpack.c.l.b16 %v1754
        %v1851 = vunpack.c.l.b16 %v1755
        %v1852 = vunpack.c.l.b16 %v1756
        %v1853 = vunpack.c.l.b16 %v1757
        %v1854 = vunpack.c.l.b16 %v1758
        %v1855 = vunpack.c.l.b16 %v1759
        %v1856 = vunpack.c.l.b16 %v1760
        %v1857 = vunpack.c.l.b16 %v1761
        %v1858 = vunpack.c.l.b16 %v1762
        %v1859 = vunpack.c.l.b16 %v1763
        %v1860 = vunpack.c.l.b16 %v1764
        %v1861 = vunpack.c.l.b16 %v1765
        %v1862 = vpack.c.b16 %v1815, %v1814
        %v1863 = vpack.c.b16 %v1816, %v1816
        %v1864 = vpack.c.b16 %v1818, %v1817
        %v1865 = vpack.c.b16 %v1819, %v1819
        %v1866 = vpack.c.b16 %v1821, %v1820
        %v1867 = vpack.c.b16 %v1822, %v1822
        %v1868 = vpack.c.b16 %v1824, %v1823
        %v1869 = vpack.c.b16 %v1825, %v1825
        %v1870 = vpack.c.b16 %v1827, %v1826
        %v1871 = vpack.c.b16 %v1828, %v1828
        %v1872 = vpack.c.b16 %v1830, %v1829
        %v1873 = vpack.c.b16 %v1831, %v1831
        %v1874 = vpack.c.b16 %v1833, %v1832
        %v1875 = vpack.c.b16 %v1834, %v1834
        %v1876 = vpack.c.b16 %v1836, %v1835
        %v1877 = vpack.c.b16 %v1837, %v1837
        %v1878 = vpack.c.b16 %v1839, %v1838
        %v1879 = vpack.c.b16 %v1840, %v1840
        %v1880 = vpack.c.b16 %v1842, %v1841
        %v1881 = vpack.c.b16 %v1843, %v1843
        %v1882 = vpack.c.b16 %v1845, %v1844
        %v1883 = vpack.c.b16 %v1846, %v1846
        %v1884 = vpack.c.b16 %v1848, %v1847
        %v1885 = vpack.c.b16 %v1849, %v1849
        %v1886 = vpack.c.b16 %v1851, %v1850
        %v1887 = vpack.c.b16 %v1852, %v1852
        %v1888 = vpack.c.b16 %v1854, %v1853
        %v1889 = vpack.c.b16 %v1855, %v1855
        %v1890 = vpack.c.b16 %v1857, %v1856
        %v1891 = vpack.c.b16 %v1858, %v1858
        %v1892 = vpack.c.b16 %v1860, %v1859
        %v1893 = vpack.c.b16 %v1861, %v1861
        %v1895 = vshrl.u32 %v1862, 16
        %v1897 = vshll.u32 %v1862, 16
        %v1899 = vrot.slane %v1897, 1
        %v1900 = vor.u32 %v1895, %v1899
        %v1902 = vshll.u32 %v1863, 16
        %v1904 = vrot.slane %v1902, 1
        %v1905 = vsel %vm993, %v1900, %v1904
        %v1907 = vshrl.u32 %v1864, 16
        %v1909 = vshll.u32 %v1864, 16
        %v1911 = vrot.slane %v1909, 1
        %v1912 = vor.u32 %v1907, %v1911
        %v1914 = vshll.u32 %v1865, 16
        %v1916 = vrot.slane %v1914, 1
        %v1917 = vsel %vm993, %v1912, %v1916
        %v1919 = vshrl.u32 %v1866, 16
        %v1921 = vshll.u32 %v1866, 16
        %v1923 = vrot.slane %v1921, 1
        %v1924 = vor.u32 %v1919, %v1923
        %v1926 = vshll.u32 %v1867, 16
        %v1928 = vrot.slane %v1926, 1
        %v1929 = vsel %vm993, %v1924, %v1928
        %v1931 = vshrl.u32 %v1868, 16
        %v1933 = vshll.u32 %v1868, 16
        %v1935 = vrot.slane %v1933, 1
        %v1936 = vor.u32 %v1931, %v1935
        %v1938 = vshll.u32 %v1869, 16
        %v1940 = vrot.slane %v1938, 1
        %v1941 = vsel %vm993, %v1936, %v1940
        %v1943 = vshrl.u32 %v1870, 16
        %v1945 = vshll.u32 %v1870, 16
        %v1947 = vrot.slane %v1945, 1
        %v1948 = vor.u32 %v1943, %v1947
        %v1950 = vshll.u32 %v1871, 16
        %v1952 = vrot.slane %v1950, 1
        %v1953 = vsel %vm993, %v1948, %v1952
        %v1955 = vshrl.u32 %v1872, 16
        %v1957 = vshll.u32 %v1872, 16
        %v1959 = vrot.slane %v1957, 1
        %v1960 = vor.u32 %v1955, %v1959
        %v1962 = vshll.u32 %v1873, 16
        %v1964 = vrot.slane %v1962, 1
        %v1965 = vsel %vm993, %v1960, %v1964
        %v1967 = vshrl.u32 %v1874, 16
        %v1969 = vshll.u32 %v1874, 16
        %v1971 = vrot.slane %v1969, 1
        %v1972 = vor.u32 %v1967, %v1971
        %v1974 = vshll.u32 %v1875, 16
        %v1976 = vrot.slane %v1974, 1
        %v1977 = vsel %vm993, %v1972, %v1976
        %v1979 = vshrl.u32 %v1876, 16
        %v1981 = vshll.u32 %v1876, 16
        %v1983 = vrot.slane %v1981, 1
        %v1984 = vor.u32 %v1979, %v1983
        %v1986 = vshll.u32 %v1877, 16
        %v1988 = vrot.slane %v1986, 1
        %v1989 = vsel %vm993, %v1984, %v1988
        %v1991 = vshrl.u32 %v1878, 16
        %v1993 = vshll.u32 %v1878, 16
        %v1995 = vrot.slane %v1993, 1
        %v1996 = vor.u32 %v1991, %v1995
        %v1998 = vshll.u32 %v1879, 16
        %v2000 = vrot.slane %v1998, 1
        %v2001 = vsel %vm993, %v1996, %v2000
        %v2003 = vshrl.u32 %v1880, 16
        %v2005 = vshll.u32 %v1880, 16
        %v2007 = vrot.slane %v2005, 1
        %v2008 = vor.u32 %v2003, %v2007
        %v2010 = vshll.u32 %v1881, 16
        %v2012 = vrot.slane %v2010, 1
        %v2013 = vsel %vm993, %v2008, %v2012
        %v2015 = vshrl.u32 %v1882, 16
        %v2017 = vshll.u32 %v1882, 16
        %v2019 = vrot.slane %v2017, 1
        %v2020 = vor.u32 %v2015, %v2019
        %v2022 = vshll.u32 %v1883, 16
        %v2024 = vrot.slane %v2022, 1
        %v2025 = vsel %vm993, %v2020, %v2024
        %v2027 = vshrl.u32 %v1884, 16
        %v2029 = vshll.u32 %v1884, 16
        %v2031 = vrot.slane %v2029, 1
        %v2032 = vor.u32 %v2027, %v2031
        %v2034 = vshll.u32 %v1885, 16
        %v2036 = vrot.slane %v2034, 1
        %v2037 = vsel %vm993, %v2032, %v2036
        %v2039 = vshrl.u32 %v1886, 16
        %v2041 = vshll.u32 %v1886, 16
        %v2043 = vrot.slane %v2041, 1
        %v2044 = vor.u32 %v2039, %v2043
        %v2046 = vshll.u32 %v1887, 16
        %v2048 = vrot.slane %v2046, 1
        %v2049 = vsel %vm993, %v2044, %v2048
        %v2051 = vshrl.u32 %v1888, 16
        %v2053 = vshll.u32 %v1888, 16
        %v2055 = vrot.slane %v2053, 1
        %v2056 = vor.u32 %v2051, %v2055
        %v2058 = vshll.u32 %v1889, 16
        %v2060 = vrot.slane %v2058, 1
        %v2061 = vsel %vm993, %v2056, %v2060
        %v2063 = vshrl.u32 %v1890, 16
        %v2065 = vshll.u32 %v1890, 16
        %v2067 = vrot.slane %v2065, 1
        %v2068 = vor.u32 %v2063, %v2067
        %v2070 = vshll.u32 %v1891, 16
        %v2072 = vrot.slane %v2070, 1
        %v2073 = vsel %vm993, %v2068, %v2072
        %v2075 = vshrl.u32 %v1892, 16
        %v2077 = vshll.u32 %v1892, 16
        %v2079 = vrot.slane %v2077, 1
        %v2080 = vor.u32 %v2075, %v2079
        %v2082 = vshll.u32 %v1893, 16
        %v2084 = vrot.slane %v2082, 1
        %v2085 = vsel %vm993, %v2080, %v2084
        %2086 = vrot.lane.b32.xlu0 %v1905, 32
        %v2087 = vpop.permute.xlu0 %2086
        %2088 = vrot.lane.b32.xlu0 %v1917, 32
        %v2089 = vpop.permute.xlu0 %2088
        %2090 = vrot.lane.b32.xlu0 %v1929, 32
        %v2091 = vpop.permute.xlu0 %2090
        %2092 = vrot.lane.b32.xlu0 %v1941, 32
        %v2093 = vpop.permute.xlu0 %2092
        %2094 = vrot.lane.b32.xlu0 %v1953, 32
        %v2095 = vpop.permute.xlu0 %2094
        %2096 = vrot.lane.b32.xlu0 %v1965, 32
        %v2097 = vpop.permute.xlu0 %2096
        %2098 = vrot.lane.b32.xlu0 %v1977, 32
        %v2099 = vpop.permute.xlu0 %2098
        %2100 = vrot.lane.b32.xlu0 %v1989, 32
        %v2101 = vpop.permute.xlu0 %2100
        %2102 = vrot.lane.b32.xlu0 %v2001, 32
        %v2103 = vpop.permute.xlu0 %2102
        %2104 = vrot.lane.b32.xlu0 %v2013, 32
        %v2105 = vpop.permute.xlu0 %2104
        %2106 = vrot.lane.b32.xlu0 %v2025, 32
        %v2107 = vpop.permute.xlu0 %2106
        %2108 = vrot.lane.b32.xlu0 %v2037, 32
        %v2109 = vpop.permute.xlu0 %2108
        %2110 = vrot.lane.b32.xlu0 %v2049, 32
        %v2111 = vpop.permute.xlu0 %2110
        %2112 = vrot.lane.b32.xlu0 %v2061, 32
        %v2113 = vpop.permute.xlu0 %2112
        %2114 = vrot.lane.b32.xlu0 %v2073, 32
        %v2115 = vpop.permute.xlu0 %2114
        %2116 = vrot.lane.b32.xlu0 %v2085, 32
        %v2117 = vpop.permute.xlu0 %2116
        %vm2134 = vcmask 326912
        %2135 = vst.msk [vmem:[#allocation3] sm:$0xff] %vm2134, %v2087
        %2136 = vst.msk [vmem:[#allocation3 + $0x8] sm:$0xff] %vm2134, %v2089
        %2137 = vst.msk [vmem:[#allocation3 + $0x10] sm:$0xff] %vm2134, %v2091
        %2138 = vst.msk [vmem:[#allocation3 + $0x18] sm:$0xff] %vm2134, %v2093
        %2139 = vst.msk [vmem:[#allocation3 + $0x20] sm:$0xff] %vm2134, %v2095
        %2140 = vst.msk [vmem:[#allocation3 + $0x28] sm:$0xff] %vm2134, %v2097
        %2141 = vst.msk [vmem:[#allocation3 + $0x30] sm:$0xff] %vm2134, %v2099
        %2142 = vst.msk [vmem:[#allocation3 + $0x38] sm:$0xff] %vm2134, %v2101
        %2143 = vst.msk [vmem:[#allocation3 + $0x40] sm:$0xff] %vm2134, %v2103
        %2144 = vst.msk [vmem:[#allocation3 + $0x48] sm:$0xff] %vm2134, %v2105
        %2145 = vst.msk [vmem:[#allocation3 + $0x50] sm:$0xff] %vm2134, %v2107
        %2146 = vst.msk [vmem:[#allocation3 + $0x58] sm:$0xff] %vm2134, %v2109
        %2147 = vst.msk [vmem:[#allocation3 + $0x60] sm:$0xff] %vm2134, %v2111
        %2148 = vst.msk [vmem:[#allocation3 + $0x68] sm:$0xff] %vm2134, %v2113
        %2149 = vst.msk [vmem:[#allocation3 + $0x70] sm:$0xff] %vm2134, %v2115
        %2150 = vst.msk [vmem:[#allocation3 + $0x78] sm:$0xff] %vm2134, %v2117
        %v2151 = vld [vmem:[%s554] sm:$0xe]
        %v2152 = vld [vmem:[%s554 + $0x4] sm:$0xf]
        %v2153 = vld [vmem:[%s554 + $0x8] sm:$0x1]
        %v2154 = vld [vmem:[%s554 + $0xc] sm:$0xe]
        %v2155 = vld [vmem:[%s554 + $0x10] sm:$0xf]
        %v2156 = vld [vmem:[%s554 + $0x14] sm:$0x1]
        %v2157 = vld [vmem:[%s554 + $0x18] sm:$0xe]
        %v2158 = vld [vmem:[%s554 + $0x1c] sm:$0xf]
        %v2159 = vld [vmem:[%s554 + $0x20] sm:$0x1]
        %v2160 = vld [vmem:[%s554 + $0x24] sm:$0xe]
        %v2161 = vld [vmem:[%s554 + $0x28] sm:$0xf]
        %v2162 = vld [vmem:[%s554 + $0x2c] sm:$0x1]
        %v2163 = vld [vmem:[%s554 + $0x30] sm:$0xe]
        %v2164 = vld [vmem:[%s554 + $0x34] sm:$0xf]
        %v2165 = vld [vmem:[%s554 + $0x38] sm:$0x1]
        %v2166 = vld [vmem:[%s554 + $0x3c] sm:$0xe]
        %v2167 = vld [vmem:[%s554 + $0x40] sm:$0xf]
        %v2168 = vld [vmem:[%s554 + $0x44] sm:$0x1]
        %v2169 = vld [vmem:[%s554 + $0x48] sm:$0xe]
        %v2170 = vld [vmem:[%s554 + $0x4c] sm:$0xf]
        %v2171 = vld [vmem:[%s554 + $0x50] sm:$0x1]
        %v2172 = vld [vmem:[%s554 + $0x54] sm:$0xe]
        %v2173 = vld [vmem:[%s554 + $0x58] sm:$0xf]
        %v2174 = vld [vmem:[%s554 + $0x5c] sm:$0x1]
        %v2175 = vld [vmem:[%s554 + $0x60] sm:$0xe]
        %v2176 = vld [vmem:[%s554 + $0x64] sm:$0xf]
        %v2177 = vld [vmem:[%s554 + $0x68] sm:$0x1]
        %v2178 = vld [vmem:[%s554 + $0x6c] sm:$0xe]
        %v2179 = vld [vmem:[%s554 + $0x70] sm:$0xf]
        %v2180 = vld [vmem:[%s554 + $0x74] sm:$0x1]
        %v2181 = vld [vmem:[%s554 + $0x78] sm:$0xe]
        %v2182 = vld [vmem:[%s554 + $0x7c] sm:$0xf]
        %v2183 = vld [vmem:[%s554 + $0x80] sm:$0x1]
        %v2184 = vld [vmem:[%s554 + $0x84] sm:$0xe]
        %v2185 = vld [vmem:[%s554 + $0x88] sm:$0xf]
        %v2186 = vld [vmem:[%s554 + $0x8c] sm:$0x1]
        %v2187 = vld [vmem:[%s554 + $0x90] sm:$0xe]
        %v2188 = vld [vmem:[%s554 + $0x94] sm:$0xf]
        %v2189 = vld [vmem:[%s554 + $0x98] sm:$0x1]
        %v2190 = vld [vmem:[%s554 + $0x9c] sm:$0xe]
        %v2191 = vld [vmem:[%s554 + $0xa0] sm:$0xf]
        %v2192 = vld [vmem:[%s554 + $0xa4] sm:$0x1]
        %v2193 = vld [vmem:[%s554 + $0xa8] sm:$0xe]
        %v2194 = vld [vmem:[%s554 + $0xac] sm:$0xf]
        %v2195 = vld [vmem:[%s554 + $0xb0] sm:$0x1]
        %v2196 = vld [vmem:[%s554 + $0xb4] sm:$0xe]
        %v2197 = vld [vmem:[%s554 + $0xb8] sm:$0xf]
        %v2198 = vld [vmem:[%s554 + $0xbc] sm:$0x1]
        %v2247 = vunpack.c.l.b16 %v2151
        %v2248 = vunpack.c.l.b16 %v2152
        %v2249 = vunpack.c.l.b16 %v2153
        %v2250 = vunpack.c.l.b16 %v2154
        %v2251 = vunpack.c.l.b16 %v2155
        %v2252 = vunpack.c.l.b16 %v2156
        %v2253 = vunpack.c.l.b16 %v2157
        %v2254 = vunpack.c.l.b16 %v2158
        %v2255 = vunpack.c.l.b16 %v2159
        %v2256 = vunpack.c.l.b16 %v2160
        %v2257 = vunpack.c.l.b16 %v2161
        %v2258 = vunpack.c.l.b16 %v2162
        %v2259 = vunpack.c.l.b16 %v2163
        %v2260 = vunpack.c.l.b16 %v2164
        %v2261 = vunpack.c.l.b16 %v2165
        %v2262 = vunpack.c.l.b16 %v2166
        %v2263 = vunpack.c.l.b16 %v2167
        %v2264 = vunpack.c.l.b16 %v2168
        %v2265 = vunpack.c.l.b16 %v2169
        %v2266 = vunpack.c.l.b16 %v2170
        %v2267 = vunpack.c.l.b16 %v2171
        %v2268 = vunpack.c.l.b16 %v2172
        %v2269 = vunpack.c.l.b16 %v2173
        %v2270 = vunpack.c.l.b16 %v2174
        %v2271 = vunpack.c.l.b16 %v2175
        %v2272 = vunpack.c.l.b16 %v2176
        %v2273 = vunpack.c.l.b16 %v2177
        %v2274 = vunpack.c.l.b16 %v2178
        %v2275 = vunpack.c.l.b16 %v2179
        %v2276 = vunpack.c.l.b16 %v2180
        %v2277 = vunpack.c.l.b16 %v2181
        %v2278 = vunpack.c.l.b16 %v2182
        %v2279 = vunpack.c.l.b16 %v2183
        %v2280 = vunpack.c.l.b16 %v2184
        %v2281 = vunpack.c.l.b16 %v2185
        %v2282 = vunpack.c.l.b16 %v2186
        %v2283 = vunpack.c.l.b16 %v2187
        %v2284 = vunpack.c.l.b16 %v2188
        %v2285 = vunpack.c.l.b16 %v2189
        %v2286 = vunpack.c.l.b16 %v2190
        %v2287 = vunpack.c.l.b16 %v2191
        %v2288 = vunpack.c.l.b16 %v2192
        %v2289 = vunpack.c.l.b16 %v2193
        %v2290 = vunpack.c.l.b16 %v2194
        %v2291 = vunpack.c.l.b16 %v2195
        %v2292 = vunpack.c.l.b16 %v2196
        %v2293 = vunpack.c.l.b16 %v2197
        %v2294 = vunpack.c.l.b16 %v2198
        %v2295 = vpack.c.b16 %v2248, %v2247
        %v2296 = vpack.c.b16 %v2249, %v2249
        %v2297 = vpack.c.b16 %v2251, %v2250
        %v2298 = vpack.c.b16 %v2252, %v2252
        %v2299 = vpack.c.b16 %v2254, %v2253
        %v2300 = vpack.c.b16 %v2255, %v2255
        %v2301 = vpack.c.b16 %v2257, %v2256
        %v2302 = vpack.c.b16 %v2258, %v2258
        %v2303 = vpack.c.b16 %v2260, %v2259
        %v2304 = vpack.c.b16 %v2261, %v2261
        %v2305 = vpack.c.b16 %v2263, %v2262
        %v2306 = vpack.c.b16 %v2264, %v2264
        %v2307 = vpack.c.b16 %v2266, %v2265
        %v2308 = vpack.c.b16 %v2267, %v2267
        %v2309 = vpack.c.b16 %v2269, %v2268
        %v2310 = vpack.c.b16 %v2270, %v2270
        %v2311 = vpack.c.b16 %v2272, %v2271
        %v2312 = vpack.c.b16 %v2273, %v2273
        %v2313 = vpack.c.b16 %v2275, %v2274
        %v2314 = vpack.c.b16 %v2276, %v2276
        %v2315 = vpack.c.b16 %v2278, %v2277
        %v2316 = vpack.c.b16 %v2279, %v2279
        %v2317 = vpack.c.b16 %v2281, %v2280
        %v2318 = vpack.c.b16 %v2282, %v2282
        %v2319 = vpack.c.b16 %v2284, %v2283
        %v2320 = vpack.c.b16 %v2285, %v2285
        %v2321 = vpack.c.b16 %v2287, %v2286
        %v2322 = vpack.c.b16 %v2288, %v2288
        %v2323 = vpack.c.b16 %v2290, %v2289
        %v2324 = vpack.c.b16 %v2291, %v2291
        %v2325 = vpack.c.b16 %v2293, %v2292
        %v2326 = vpack.c.b16 %v2294, %v2294
        %v2327 = vrot.slane %v2295, 1
        %v2328 = vrot.slane %v2296, 1
        %v2329 = vsel %vm1427, %v2327, %v2328
        %v2330 = vrot.slane %v2297, 1
        %v2331 = vrot.slane %v2298, 1
        %v2332 = vsel %vm1427, %v2330, %v2331
        %v2333 = vrot.slane %v2299, 1
        %v2334 = vrot.slane %v2300, 1
        %v2335 = vsel %vm1427, %v2333, %v2334
        %v2336 = vrot.slane %v2301, 1
        %v2337 = vrot.slane %v2302, 1
        %v2338 = vsel %vm1427, %v2336, %v2337
        %v2339 = vrot.slane %v2303, 1
        %v2340 = vrot.slane %v2304, 1
        %v2341 = vsel %vm1427, %v2339, %v2340
        %v2342 = vrot.slane %v2305, 1
        %v2343 = vrot.slane %v2306, 1
        %v2344 = vsel %vm1427, %v2342, %v2343
        %v2345 = vrot.slane %v2307, 1
        %v2346 = vrot.slane %v2308, 1
        %v2347 = vsel %vm1427, %v2345, %v2346
        %v2348 = vrot.slane %v2309, 1
        %v2349 = vrot.slane %v2310, 1
        %v2350 = vsel %vm1427, %v2348, %v2349
        %v2351 = vrot.slane %v2311, 1
        %v2352 = vrot.slane %v2312, 1
        %v2353 = vsel %vm1427, %v2351, %v2352
        %v2354 = vrot.slane %v2313, 1
        %v2355 = vrot.slane %v2314, 1
        %v2356 = vsel %vm1427, %v2354, %v2355
        %v2357 = vrot.slane %v2315, 1
        %v2358 = vrot.slane %v2316, 1
        %v2359 = vsel %vm1427, %v2357, %v2358
        %v2360 = vrot.slane %v2317, 1
        %v2361 = vrot.slane %v2318, 1
        %v2362 = vsel %vm1427, %v2360, %v2361
        %v2363 = vrot.slane %v2319, 1
        %v2364 = vrot.slane %v2320, 1
        %v2365 = vsel %vm1427, %v2363, %v2364
        %v2366 = vrot.slane %v2321, 1
        %v2367 = vrot.slane %v2322, 1
        %v2368 = vsel %vm1427, %v2366, %v2367
        %v2369 = vrot.slane %v2323, 1
        %v2370 = vrot.slane %v2324, 1
        %v2371 = vsel %vm1427, %v2369, %v2370
        %v2372 = vrot.slane %v2325, 1
        %v2373 = vrot.slane %v2326, 1
        %v2374 = vsel %vm1427, %v2372, %v2373
        %2375 = vrot.lane.b32.xlu0 %v2329, 40
        %v2376 = vpop.permute.xlu0 %2375
        %2377 = vrot.lane.b32.xlu0 %v2332, 40
        %v2378 = vpop.permute.xlu0 %2377
        %2379 = vrot.lane.b32.xlu0 %v2335, 40
        %v2380 = vpop.permute.xlu0 %2379
        %2381 = vrot.lane.b32.xlu0 %v2338, 40
        %v2382 = vpop.permute.xlu0 %2381
        %2383 = vrot.lane.b32.xlu0 %v2341, 40
        %v2384 = vpop.permute.xlu0 %2383
        %2385 = vrot.lane.b32.xlu0 %v2344, 40
        %v2386 = vpop.permute.xlu0 %2385
        %2387 = vrot.lane.b32.xlu0 %v2347, 40
        %v2388 = vpop.permute.xlu0 %2387
        %2389 = vrot.lane.b32.xlu0 %v2350, 40
        %v2390 = vpop.permute.xlu0 %2389
        %2391 = vrot.lane.b32.xlu0 %v2353, 40
        %v2392 = vpop.permute.xlu0 %2391
        %2393 = vrot.lane.b32.xlu0 %v2356, 40
        %v2394 = vpop.permute.xlu0 %2393
        %2395 = vrot.lane.b32.xlu0 %v2359, 40
        %v2396 = vpop.permute.xlu0 %2395
        %2397 = vrot.lane.b32.xlu0 %v2362, 40
        %v2398 = vpop.permute.xlu0 %2397
        %2399 = vrot.lane.b32.xlu0 %v2365, 40
        %v2400 = vpop.permute.xlu0 %2399
        %2401 = vrot.lane.b32.xlu0 %v2368, 40
        %v2402 = vpop.permute.xlu0 %2401
        %2403 = vrot.lane.b32.xlu0 %v2371, 40
        %v2404 = vpop.permute.xlu0 %2403
        %2405 = vrot.lane.b32.xlu0 %v2374, 40
        %v2406 = vpop.permute.xlu0 %2405
        %vm2423 = vcmask 392512
        %2424 = vst.msk [vmem:[#allocation3] sm:$0xff] %vm2423, %v2376
        %2425 = vst.msk [vmem:[#allocation3 + $0x8] sm:$0xff] %vm2423, %v2378
        %2426 = vst.msk [vmem:[#allocation3 + $0x10] sm:$0xff] %vm2423, %v2380
        %2427 = vst.msk [vmem:[#allocation3 + $0x18] sm:$0xff] %vm2423, %v2382
        %2428 = vst.msk [vmem:[#allocation3 + $0x20] sm:$0xff] %vm2423, %v2384
        %2429 = vst.msk [vmem:[#allocation3 + $0x28] sm:$0xff] %vm2423, %v2386
        %2430 = vst.msk [vmem:[#allocation3 + $0x30] sm:$0xff] %vm2423, %v2388
        %2431 = vst.msk [vmem:[#allocation3 + $0x38] sm:$0xff] %vm2423, %v2390
        %2432 = vst.msk [vmem:[#allocation3 + $0x40] sm:$0xff] %vm2423, %v2392
        %2433 = vst.msk [vmem:[#allocation3 + $0x48] sm:$0xff] %vm2423, %v2394
        %2434 = vst.msk [vmem:[#allocation3 + $0x50] sm:$0xff] %vm2423, %v2396
        %2435 = vst.msk [vmem:[#allocation3 + $0x58] sm:$0xff] %vm2423, %v2398
        %2436 = vst.msk [vmem:[#allocation3 + $0x60] sm:$0xff] %vm2423, %v2400
        %2437 = vst.msk [vmem:[#allocation3 + $0x68] sm:$0xff] %vm2423, %v2402
        %2438 = vst.msk [vmem:[#allocation3 + $0x70] sm:$0xff] %vm2423, %v2404
        %2439 = vst.msk [vmem:[#allocation3 + $0x78] sm:$0xff] %vm2423, %v2406
        %s2440 = scalar_lea.vmem [#allocation2], 24
        %v2441 = vld [vmem:[%s2440] sm:$0xf]
        %v2442 = vld [vmem:[%s2440 + $0x4] sm:$0xf]
        %v2443 = vld [vmem:[%s2440 + $0xc] sm:$0xf]
        %v2444 = vld [vmem:[%s2440 + $0x10] sm:$0xf]
        %v2445 = vld [vmem:[%s2440 + $0x18] sm:$0xf]
        %v2446 = vld [vmem:[%s2440 + $0x1c] sm:$0xf]
        %v2447 = vld [vmem:[%s2440 + $0x24] sm:$0xf]
        %v2448 = vld [vmem:[%s2440 + $0x28] sm:$0xf]
        %v2449 = vld [vmem:[%s2440 + $0x30] sm:$0xf]
        %v2450 = vld [vmem:[%s2440 + $0x34] sm:$0xf]
        %v2451 = vld [vmem:[%s2440 + $0x3c] sm:$0xf]
        %v2452 = vld [vmem:[%s2440 + $0x40] sm:$0xf]
        %v2453 = vld [vmem:[%s2440 + $0x48] sm:$0xf]
        %v2454 = vld [vmem:[%s2440 + $0x4c] sm:$0xf]
        %v2455 = vld [vmem:[%s2440 + $0x54] sm:$0xf]
        %v2456 = vld [vmem:[%s2440 + $0x58] sm:$0xf]
        %v2457 = vld [vmem:[%s2440 + $0x60] sm:$0xf]
        %v2458 = vld [vmem:[%s2440 + $0x64] sm:$0xf]
        %v2459 = vld [vmem:[%s2440 + $0x6c] sm:$0xf]
        %v2460 = vld [vmem:[%s2440 + $0x70] sm:$0xf]
        %v2461 = vld [vmem:[%s2440 + $0x78] sm:$0xf]
        %v2462 = vld [vmem:[%s2440 + $0x7c] sm:$0xf]
        %v2463 = vld [vmem:[%s2440 + $0x84] sm:$0xf]
        %v2464 = vld [vmem:[%s2440 + $0x88] sm:$0xf]
        %v2465 = vld [vmem:[%s2440 + $0x90] sm:$0xf]
        %v2466 = vld [vmem:[%s2440 + $0x94] sm:$0xf]
        %v2467 = vld [vmem:[%s2440 + $0x9c] sm:$0xf]
        %v2468 = vld [vmem:[%s2440 + $0xa0] sm:$0xf]
        %v2469 = vld [vmem:[%s2440 + $0xa8] sm:$0xf]
        %v2470 = vld [vmem:[%s2440 + $0xac] sm:$0xf]
        %v2471 = vld [vmem:[%s2440 + $0xb4] sm:$0xf]
        %v2472 = vld [vmem:[%s2440 + $0xb8] sm:$0xf]
        %v2505 = vunpack.c.l.b16 %v2441
        %v2506 = vunpack.c.l.b16 %v2442
        %v2507 = vunpack.c.l.b16 %v2443
        %v2508 = vunpack.c.l.b16 %v2444
        %v2509 = vunpack.c.l.b16 %v2445
        %v2510 = vunpack.c.l.b16 %v2446
        %v2511 = vunpack.c.l.b16 %v2447
        %v2512 = vunpack.c.l.b16 %v2448
        %v2513 = vunpack.c.l.b16 %v2449
        %v2514 = vunpack.c.l.b16 %v2450
        %v2515 = vunpack.c.l.b16 %v2451
        %v2516 = vunpack.c.l.b16 %v2452
        %v2517 = vunpack.c.l.b16 %v2453
        %v2518 = vunpack.c.l.b16 %v2454
        %v2519 = vunpack.c.l.b16 %v2455
        %v2520 = vunpack.c.l.b16 %v2456
        %v2521 = vunpack.c.l.b16 %v2457
        %v2522 = vunpack.c.l.b16 %v2458
        %v2523 = vunpack.c.l.b16 %v2459
        %v2524 = vunpack.c.l.b16 %v2460
        %v2525 = vunpack.c.l.b16 %v2461
        %v2526 = vunpack.c.l.b16 %v2462
        %v2527 = vunpack.c.l.b16 %v2463
        %v2528 = vunpack.c.l.b16 %v2464
        %v2529 = vunpack.c.l.b16 %v2465
        %v2530 = vunpack.c.l.b16 %v2466
        %v2531 = vunpack.c.l.b16 %v2467
        %v2532 = vunpack.c.l.b16 %v2468
        %v2533 = vunpack.c.l.b16 %v2469
        %v2534 = vunpack.c.l.b16 %v2470
        %v2535 = vunpack.c.l.b16 %v2471
        %v2536 = vunpack.c.l.b16 %v2472
        %v2537 = vpack.c.b16 %v2506, %v2505
        %v2538 = vpack.c.b16 %v2508, %v2507
        %v2539 = vpack.c.b16 %v2510, %v2509
        %v2540 = vpack.c.b16 %v2512, %v2511
        %v2541 = vpack.c.b16 %v2514, %v2513
        %v2542 = vpack.c.b16 %v2516, %v2515
        %v2543 = vpack.c.b16 %v2518, %v2517
        %v2544 = vpack.c.b16 %v2520, %v2519
        %v2545 = vpack.c.b16 %v2522, %v2521
        %v2546 = vpack.c.b16 %v2524, %v2523
        %v2547 = vpack.c.b16 %v2526, %v2525
        %v2548 = vpack.c.b16 %v2528, %v2527
        %v2549 = vpack.c.b16 %v2530, %v2529
        %v2550 = vpack.c.b16 %v2532, %v2531
        %v2551 = vpack.c.b16 %v2534, %v2533
        %v2552 = vpack.c.b16 %v2536, %v2535
        %2553 = vrot.lane.b32.xlu0 %v2537, 48
        %v2554 = vpop.permute.xlu0 %2553
        %2555 = vrot.lane.b32.xlu0 %v2538, 48
        %v2556 = vpop.permute.xlu0 %2555
        %2557 = vrot.lane.b32.xlu0 %v2539, 48
        %v2558 = vpop.permute.xlu0 %2557
        %2559 = vrot.lane.b32.xlu0 %v2540, 48
        %v2560 = vpop.permute.xlu0 %2559
        %2561 = vrot.lane.b32.xlu0 %v2541, 48
        %v2562 = vpop.permute.xlu0 %2561
        %2563 = vrot.lane.b32.xlu0 %v2542, 48
        %v2564 = vpop.permute.xlu0 %2563
        %2565 = vrot.lane.b32.xlu0 %v2543, 48
        %v2566 = vpop.permute.xlu0 %2565
        %2567 = vrot.lane.b32.xlu0 %v2544, 48
        %v2568 = vpop.permute.xlu0 %2567
        %2569 = vrot.lane.b32.xlu0 %v2545, 48
        %v2570 = vpop.permute.xlu0 %2569
        %2571 = vrot.lane.b32.xlu0 %v2546, 48
        %v2572 = vpop.permute.xlu0 %2571
        %2573 = vrot.lane.b32.xlu0 %v2547, 48
        %v2574 = vpop.permute.xlu0 %2573
        %2575 = vrot.lane.b32.xlu0 %v2548, 48
        %v2576 = vpop.permute.xlu0 %2575
        %2577 = vrot.lane.b32.xlu0 %v2549, 48
        %v2578 = vpop.permute.xlu0 %2577
        %2579 = vrot.lane.b32.xlu0 %v2550, 48
        %v2580 = vpop.permute.xlu0 %2579
        %2581 = vrot.lane.b32.xlu0 %v2551, 48
        %v2582 = vpop.permute.xlu0 %2581
        %2583 = vrot.lane.b32.xlu0 %v2552, 48
        %v2584 = vpop.permute.xlu0 %2583
        %vm2601 = vcmask 458112
        %2602 = vst.msk [vmem:[#allocation3] sm:$0xff] %vm2601, %v2554
        %2603 = vst.msk [vmem:[#allocation3 + $0x8] sm:$0xff] %vm2601, %v2556
        %2604 = vst.msk [vmem:[#allocation3 + $0x10] sm:$0xff] %vm2601, %v2558
        %2605 = vst.msk [vmem:[#allocation3 + $0x18] sm:$0xff] %vm2601, %v2560
        %2606 = vst.msk [vmem:[#allocation3 + $0x20] sm:$0xff] %vm2601, %v2562
        %2607 = vst.msk [vmem:[#allocation3 + $0x28] sm:$0xff] %vm2601, %v2564
        %2608 = vst.msk [vmem:[#allocation3 + $0x30] sm:$0xff] %vm2601, %v2566
        %2609 = vst.msk [vmem:[#allocation3 + $0x38] sm:$0xff] %vm2601, %v2568
        %2610 = vst.msk [vmem:[#allocation3 + $0x40] sm:$0xff] %vm2601, %v2570
        %2611 = vst.msk [vmem:[#allocation3 + $0x48] sm:$0xff] %vm2601, %v2572
        %2612 = vst.msk [vmem:[#allocation3 + $0x50] sm:$0xff] %vm2601, %v2574
        %2613 = vst.msk [vmem:[#allocation3 + $0x58] sm:$0xff] %vm2601, %v2576
        %2614 = vst.msk [vmem:[#allocation3 + $0x60] sm:$0xff] %vm2601, %v2578
        %2615 = vst.msk [vmem:[#allocation3 + $0x68] sm:$0xff] %vm2601, %v2580
        %2616 = vst.msk [vmem:[#allocation3 + $0x70] sm:$0xff] %vm2601, %v2582
        %2617 = vst.msk [vmem:[#allocation3 + $0x78] sm:$0xff] %vm2601, %v2584
        %v2618 = vld [vmem:[%s2440] sm:$0xf]
        %v2619 = vld [vmem:[%s2440 + $0x4] sm:$0xf]
        %v2620 = vld [vmem:[%s2440 + $0x8] sm:$0x1]
        %v2621 = vld [vmem:[%s2440 + $0xc] sm:$0xf]
        %v2622 = vld [vmem:[%s2440 + $0x10] sm:$0xf]
        %v2623 = vld [vmem:[%s2440 + $0x14] sm:$0x1]
        %v2624 = vld [vmem:[%s2440 + $0x18] sm:$0xf]
        %v2625 = vld [vmem:[%s2440 + $0x1c] sm:$0xf]
        %v2626 = vld [vmem:[%s2440 + $0x20] sm:$0x1]
        %v2627 = vld [vmem:[%s2440 + $0x24] sm:$0xf]
        %v2628 = vld [vmem:[%s2440 + $0x28] sm:$0xf]
        %v2629 = vld [vmem:[%s2440 + $0x2c] sm:$0x1]
        %v2630 = vld [vmem:[%s2440 + $0x30] sm:$0xf]
        %v2631 = vld [vmem:[%s2440 + $0x34] sm:$0xf]
        %v2632 = vld [vmem:[%s2440 + $0x38] sm:$0x1]
        %v2633 = vld [vmem:[%s2440 + $0x3c] sm:$0xf]
        %v2634 = vld [vmem:[%s2440 + $0x40] sm:$0xf]
        %v2635 = vld [vmem:[%s2440 + $0x44] sm:$0x1]
        %v2636 = vld [vmem:[%s2440 + $0x48] sm:$0xf]
        %v2637 = vld [vmem:[%s2440 + $0x4c] sm:$0xf]
        %v2638 = vld [vmem:[%s2440 + $0x50] sm:$0x1]
        %v2639 = vld [vmem:[%s2440 + $0x54] sm:$0xf]
        %v2640 = vld [vmem:[%s2440 + $0x58] sm:$0xf]
        %v2641 = vld [vmem:[%s2440 + $0x5c] sm:$0x1]
        %v2642 = vld [vmem:[%s2440 + $0x60] sm:$0xf]
        %v2643 = vld [vmem:[%s2440 + $0x64] sm:$0xf]
        %v2644 = vld [vmem:[%s2440 + $0x68] sm:$0x1]
        %v2645 = vld [vmem:[%s2440 + $0x6c] sm:$0xf]
        %v2646 = vld [vmem:[%s2440 + $0x70] sm:$0xf]
        %v2647 = vld [vmem:[%s2440 + $0x74] sm:$0x1]
        %v2648 = vld [vmem:[%s2440 + $0x78] sm:$0xf]
        %v2649 = vld [vmem:[%s2440 + $0x7c] sm:$0xf]
        %v2650 = vld [vmem:[%s2440 + $0x80] sm:$0x1]
        %v2651 = vld [vmem:[%s2440 + $0x84] sm:$0xf]
        %v2652 = vld [vmem:[%s2440 + $0x88] sm:$0xf]
        %v2653 = vld [vmem:[%s2440 + $0x8c] sm:$0x1]
        %v2654 = vld [vmem:[%s2440 + $0x90] sm:$0xf]
        %v2655 = vld [vmem:[%s2440 + $0x94] sm:$0xf]
        %v2656 = vld [vmem:[%s2440 + $0x98] sm:$0x1]
        %v2657 = vld [vmem:[%s2440 + $0x9c] sm:$0xf]
        %v2658 = vld [vmem:[%s2440 + $0xa0] sm:$0xf]
        %v2659 = vld [vmem:[%s2440 + $0xa4] sm:$0x1]
        %v2660 = vld [vmem:[%s2440 + $0xa8] sm:$0xf]
        %v2661 = vld [vmem:[%s2440 + $0xac] sm:$0xf]
        %v2662 = vld [vmem:[%s2440 + $0xb0] sm:$0x1]
        %v2663 = vld [vmem:[%s2440 + $0xb4] sm:$0xf]
        %v2664 = vld [vmem:[%s2440 + $0xb8] sm:$0xf]
        %v2665 = vld [vmem:[%s2440 + $0xbc] sm:$0x1]
        %v2714 = vunpack.c.l.b16 %v2618
        %v2715 = vunpack.c.l.b16 %v2619
        %v2716 = vunpack.c.l.b16 %v2620
        %v2717 = vunpack.c.l.b16 %v2621
        %v2718 = vunpack.c.l.b16 %v2622
        %v2719 = vunpack.c.l.b16 %v2623
        %v2720 = vunpack.c.l.b16 %v2624
        %v2721 = vunpack.c.l.b16 %v2625
        %v2722 = vunpack.c.l.b16 %v2626
        %v2723 = vunpack.c.l.b16 %v2627
        %v2724 = vunpack.c.l.b16 %v2628
        %v2725 = vunpack.c.l.b16 %v2629
        %v2726 = vunpack.c.l.b16 %v2630
        %v2727 = vunpack.c.l.b16 %v2631
        %v2728 = vunpack.c.l.b16 %v2632
        %v2729 = vunpack.c.l.b16 %v2633
        %v2730 = vunpack.c.l.b16 %v2634
        %v2731 = vunpack.c.l.b16 %v2635
        %v2732 = vunpack.c.l.b16 %v2636
        %v2733 = vunpack.c.l.b16 %v2637
        %v2734 = vunpack.c.l.b16 %v2638
        %v2735 = vunpack.c.l.b16 %v2639
        %v2736 = vunpack.c.l.b16 %v2640
        %v2737 = vunpack.c.l.b16 %v2641
        %v2738 = vunpack.c.l.b16 %v2642
        %v2739 = vunpack.c.l.b16 %v2643
        %v2740 = vunpack.c.l.b16 %v2644
        %v2741 = vunpack.c.l.b16 %v2645
        %v2742 = vunpack.c.l.b16 %v2646
        %v2743 = vunpack.c.l.b16 %v2647
        %v2744 = vunpack.c.l.b16 %v2648
        %v2745 = vunpack.c.l.b16 %v2649
        %v2746 = vunpack.c.l.b16 %v2650
        %v2747 = vunpack.c.l.b16 %v2651
        %v2748 = vunpack.c.l.b16 %v2652
        %v2749 = vunpack.c.l.b16 %v2653
        %v2750 = vunpack.c.l.b16 %v2654
        %v2751 = vunpack.c.l.b16 %v2655
        %v2752 = vunpack.c.l.b16 %v2656
        %v2753 = vunpack.c.l.b16 %v2657
        %v2754 = vunpack.c.l.b16 %v2658
        %v2755 = vunpack.c.l.b16 %v2659
        %v2756 = vunpack.c.l.b16 %v2660
        %v2757 = vunpack.c.l.b16 %v2661
        %v2758 = vunpack.c.l.b16 %v2662
        %v2759 = vunpack.c.l.b16 %v2663
        %v2760 = vunpack.c.l.b16 %v2664
        %v2761 = vunpack.c.l.b16 %v2665
        %v2762 = vpack.c.b16 %v2715, %v2714
        %v2763 = vpack.c.b16 %v2716, %v2716
        %v2764 = vpack.c.b16 %v2718, %v2717
        %v2765 = vpack.c.b16 %v2719, %v2719
        %v2766 = vpack.c.b16 %v2721, %v2720
        %v2767 = vpack.c.b16 %v2722, %v2722
        %v2768 = vpack.c.b16 %v2724, %v2723
        %v2769 = vpack.c.b16 %v2725, %v2725
        %v2770 = vpack.c.b16 %v2727, %v2726
        %v2771 = vpack.c.b16 %v2728, %v2728
        %v2772 = vpack.c.b16 %v2730, %v2729
        %v2773 = vpack.c.b16 %v2731, %v2731
        %v2774 = vpack.c.b16 %v2733, %v2732
        %v2775 = vpack.c.b16 %v2734, %v2734
        %v2776 = vpack.c.b16 %v2736, %v2735
        %v2777 = vpack.c.b16 %v2737, %v2737
        %v2778 = vpack.c.b16 %v2739, %v2738
        %v2779 = vpack.c.b16 %v2740, %v2740
        %v2780 = vpack.c.b16 %v2742, %v2741
        %v2781 = vpack.c.b16 %v2743, %v2743
        %v2782 = vpack.c.b16 %v2745, %v2744
        %v2783 = vpack.c.b16 %v2746, %v2746
        %v2784 = vpack.c.b16 %v2748, %v2747
        %v2785 = vpack.c.b16 %v2749, %v2749
        %v2786 = vpack.c.b16 %v2751, %v2750
        %v2787 = vpack.c.b16 %v2752, %v2752
        %v2788 = vpack.c.b16 %v2754, %v2753
        %v2789 = vpack.c.b16 %v2755, %v2755
        %v2790 = vpack.c.b16 %v2757, %v2756
        %v2791 = vpack.c.b16 %v2758, %v2758
        %v2792 = vpack.c.b16 %v2760, %v2759
        %v2793 = vpack.c.b16 %v2761, %v2761
        %v2795 = vshrl.u32 %v2762, 16
        %v2797 = vshll.u32 %v2762, 16
        %v2799 = vrot.slane %v2797, 1
        %v2800 = vor.u32 %v2795, %v2799
        %v2802 = vshll.u32 %v2763, 16
        %v2804 = vrot.slane %v2802, 1
        %v2805 = vsel %vm993, %v2800, %v2804
        %v2807 = vshrl.u32 %v2764, 16
        %v2809 = vshll.u32 %v2764, 16
        %v2811 = vrot.slane %v2809, 1
        %v2812 = vor.u32 %v2807, %v2811
        %v2814 = vshll.u32 %v2765, 16
        %v2816 = vrot.slane %v2814, 1
        %v2817 = vsel %vm993, %v2812, %v2816
        %v2819 = vshrl.u32 %v2766, 16
        %v2821 = vshll.u32 %v2766, 16
        %v2823 = vrot.slane %v2821, 1
        %v2824 = vor.u32 %v2819, %v2823
        %v2826 = vshll.u32 %v2767, 16
        %v2828 = vrot.slane %v2826, 1
        %v2829 = vsel %vm993, %v2824, %v2828
        %v2831 = vshrl.u32 %v2768, 16
        %v2833 = vshll.u32 %v2768, 16
        %v2835 = vrot.slane %v2833, 1
        %v2836 = vor.u32 %v2831, %v2835
        %v2838 = vshll.u32 %v2769, 16
        %v2840 = vrot.slane %v2838, 1
        %v2841 = vsel %vm993, %v2836, %v2840
        %v2843 = vshrl.u32 %v2770, 16
        %v2845 = vshll.u32 %v2770, 16
        %v2847 = vrot.slane %v2845, 1
        %v2848 = vor.u32 %v2843, %v2847
        %v2850 = vshll.u32 %v2771, 16
        %v2852 = vrot.slane %v2850, 1
        %v2853 = vsel %vm993, %v2848, %v2852
        %v2855 = vshrl.u32 %v2772, 16
        %v2857 = vshll.u32 %v2772, 16
        %v2859 = vrot.slane %v2857, 1
        %v2860 = vor.u32 %v2855, %v2859
        %v2862 = vshll.u32 %v2773, 16
        %v2864 = vrot.slane %v2862, 1
        %v2865 = vsel %vm993, %v2860, %v2864
        %v2867 = vshrl.u32 %v2774, 16
        %v2869 = vshll.u32 %v2774, 16
        %v2871 = vrot.slane %v2869, 1
        %v2872 = vor.u32 %v2867, %v2871
        %v2874 = vshll.u32 %v2775, 16
        %v2876 = vrot.slane %v2874, 1
        %v2877 = vsel %vm993, %v2872, %v2876
        %v2879 = vshrl.u32 %v2776, 16
        %v2881 = vshll.u32 %v2776, 16
        %v2883 = vrot.slane %v2881, 1
        %v2884 = vor.u32 %v2879, %v2883
        %v2886 = vshll.u32 %v2777, 16
        %v2888 = vrot.slane %v2886, 1
        %v2889 = vsel %vm993, %v2884, %v2888
        %v2891 = vshrl.u32 %v2778, 16
        %v2893 = vshll.u32 %v2778, 16
        %v2895 = vrot.slane %v2893, 1
        %v2896 = vor.u32 %v2891, %v2895
        %v2898 = vshll.u32 %v2779, 16
        %v2900 = vrot.slane %v2898, 1
        %v2901 = vsel %vm993, %v2896, %v2900
        %v2903 = vshrl.u32 %v2780, 16
        %v2905 = vshll.u32 %v2780, 16
        %v2907 = vrot.slane %v2905, 1
        %v2908 = vor.u32 %v2903, %v2907
        %v2910 = vshll.u32 %v2781, 16
        %v2912 = vrot.slane %v2910, 1
        %v2913 = vsel %vm993, %v2908, %v2912
        %v2915 = vshrl.u32 %v2782, 16
        %v2917 = vshll.u32 %v2782, 16
        %v2919 = vrot.slane %v2917, 1
        %v2920 = vor.u32 %v2915, %v2919
        %v2922 = vshll.u32 %v2783, 16
        %v2924 = vrot.slane %v2922, 1
        %v2925 = vsel %vm993, %v2920, %v2924
        %v2927 = vshrl.u32 %v2784, 16
        %v2929 = vshll.u32 %v2784, 16
        %v2931 = vrot.slane %v2929, 1
        %v2932 = vor.u32 %v2927, %v2931
        %v2934 = vshll.u32 %v2785, 16
        %v2936 = vrot.slane %v2934, 1
        %v2937 = vsel %vm993, %v2932, %v2936
        %v2939 = vshrl.u32 %v2786, 16
        %v2941 = vshll.u32 %v2786, 16
        %v2943 = vrot.slane %v2941, 1
        %v2944 = vor.u32 %v2939, %v2943
        %v2946 = vshll.u32 %v2787, 16
        %v2948 = vrot.slane %v2946, 1
        %v2949 = vsel %vm993, %v2944, %v2948
        %v2951 = vshrl.u32 %v2788, 16
        %v2953 = vshll.u32 %v2788, 16
        %v2955 = vrot.slane %v2953, 1
        %v2956 = vor.u32 %v2951, %v2955
        %v2958 = vshll.u32 %v2789, 16
        %v2960 = vrot.slane %v2958, 1
        %v2961 = vsel %vm993, %v2956, %v2960
        %v2963 = vshrl.u32 %v2790, 16
        %v2965 = vshll.u32 %v2790, 16
        %v2967 = vrot.slane %v2965, 1
        %v2968 = vor.u32 %v2963, %v2967
        %v2970 = vshll.u32 %v2791, 16
        %v2972 = vrot.slane %v2970, 1
        %v2973 = vsel %vm993, %v2968, %v2972
        %v2975 = vshrl.u32 %v2792, 16
        %v2977 = vshll.u32 %v2792, 16
        %v2979 = vrot.slane %v2977, 1
        %v2980 = vor.u32 %v2975, %v2979
        %v2982 = vshll.u32 %v2793, 16
        %v2984 = vrot.slane %v2982, 1
        %v2985 = vsel %vm993, %v2980, %v2984
        %2986 = vrot.lane.b32.xlu0 %v2805, 56
        %v2987 = vpop.permute.xlu0 %2986
        %2988 = vrot.lane.b32.xlu0 %v2817, 56
        %v2989 = vpop.permute.xlu0 %2988
        %2990 = vrot.lane.b32.xlu0 %v2829, 56
        %v2991 = vpop.permute.xlu0 %2990
        %2992 = vrot.lane.b32.xlu0 %v2841, 56
        %v2993 = vpop.permute.xlu0 %2992
        %2994 = vrot.lane.b32.xlu0 %v2853, 56
        %v2995 = vpop.permute.xlu0 %2994
        %2996 = vrot.lane.b32.xlu0 %v2865, 56
        %v2997 = vpop.permute.xlu0 %2996
        %2998 = vrot.lane.b32.xlu0 %v2877, 56
        %v2999 = vpop.permute.xlu0 %2998
        %3000 = vrot.lane.b32.xlu0 %v2889, 56
        %v3001 = vpop.permute.xlu0 %3000
        %3002 = vrot.lane.b32.xlu0 %v2901, 56
        %v3003 = vpop.permute.xlu0 %3002
        %3004 = vrot.lane.b32.xlu0 %v2913, 56
        %v3005 = vpop.permute.xlu0 %3004
        %3006 = vrot.lane.b32.xlu0 %v2925, 56
        %v3007 = vpop.permute.xlu0 %3006
        %3008 = vrot.lane.b32.xlu0 %v2937, 56
        %v3009 = vpop.permute.xlu0 %3008
        %3010 = vrot.lane.b32.xlu0 %v2949, 56
        %v3011 = vpop.permute.xlu0 %3010
        %3012 = vrot.lane.b32.xlu0 %v2961, 56
        %v3013 = vpop.permute.xlu0 %3012
        %3014 = vrot.lane.b32.xlu0 %v2973, 56
        %v3015 = vpop.permute.xlu0 %3014
        %3016 = vrot.lane.b32.xlu0 %v2985, 56
        %v3017 = vpop.permute.xlu0 %3016
        %vm3034 = vcmask 523712
        %3035 = vst.msk [vmem:[#allocation3] sm:$0xff] %vm3034, %v2987
        %3036 = vst.msk [vmem:[#allocation3 + $0x8] sm:$0xff] %vm3034, %v2989
        %3037 = vst.msk [vmem:[#allocation3 + $0x10] sm:$0xff] %vm3034, %v2991
        %3038 = vst.msk [vmem:[#allocation3 + $0x18] sm:$0xff] %vm3034, %v2993
        %3039 = vst.msk [vmem:[#allocation3 + $0x20] sm:$0xff] %vm3034, %v2995
        %3040 = vst.msk [vmem:[#allocation3 + $0x28] sm:$0xff] %vm3034, %v2997
        %3041 = vst.msk [vmem:[#allocation3 + $0x30] sm:$0xff] %vm3034, %v2999
        %3042 = vst.msk [vmem:[#allocation3 + $0x38] sm:$0xff] %vm3034, %v3001
        %3043 = vst.msk [vmem:[#allocation3 + $0x40] sm:$0xff] %vm3034, %v3003
        %3044 = vst.msk [vmem:[#allocation3 + $0x48] sm:$0xff] %vm3034, %v3005
        %3045 = vst.msk [vmem:[#allocation3 + $0x50] sm:$0xff] %vm3034, %v3007
        %3046 = vst.msk [vmem:[#allocation3 + $0x58] sm:$0xff] %vm3034, %v3009
        %3047 = vst.msk [vmem:[#allocation3 + $0x60] sm:$0xff] %vm3034, %v3011
        %3048 = vst.msk [vmem:[#allocation3 + $0x68] sm:$0xff] %vm3034, %v3013
        %3049 = vst.msk [vmem:[#allocation3 + $0x70] sm:$0xff] %vm3034, %v3015
        %3050 = vst.msk [vmem:[#allocation3 + $0x78] sm:$0xff] %vm3034, %v3017
        %v3051 = vld [vmem:[%s2440] sm:$0xe]
        %v3052 = vld [vmem:[%s2440 + $0x4] sm:$0xf]
        %v3053 = vld [vmem:[%s2440 + $0x8] sm:$0x1]
        %v3054 = vld [vmem:[%s2440 + $0xc] sm:$0xe]
        %v3055 = vld [vmem:[%s2440 + $0x10] sm:$0xf]
        %v3056 = vld [vmem:[%s2440 + $0x14] sm:$0x1]
        %v3057 = vld [vmem:[%s2440 + $0x18] sm:$0xe]
        %v3058 = vld [vmem:[%s2440 + $0x1c] sm:$0xf]
        %v3059 = vld [vmem:[%s2440 + $0x20] sm:$0x1]
        %v3060 = vld [vmem:[%s2440 + $0x24] sm:$0xe]
        %v3061 = vld [vmem:[%s2440 + $0x28] sm:$0xf]
        %v3062 = vld [vmem:[%s2440 + $0x2c] sm:$0x1]
        %v3063 = vld [vmem:[%s2440 + $0x30] sm:$0xe]
        %v3064 = vld [vmem:[%s2440 + $0x34] sm:$0xf]
        %v3065 = vld [vmem:[%s2440 + $0x38] sm:$0x1]
        %v3066 = vld [vmem:[%s2440 + $0x3c] sm:$0xe]
        %v3067 = vld [vmem:[%s2440 + $0x40] sm:$0xf]
        %v3068 = vld [vmem:[%s2440 + $0x44] sm:$0x1]
        %v3069 = vld [vmem:[%s2440 + $0x48] sm:$0xe]
        %v3070 = vld [vmem:[%s2440 + $0x4c] sm:$0xf]
        %v3071 = vld [vmem:[%s2440 + $0x50] sm:$0x1]
        %v3072 = vld [vmem:[%s2440 + $0x54] sm:$0xe]
        %v3073 = vld [vmem:[%s2440 + $0x58] sm:$0xf]
        %v3074 = vld [vmem:[%s2440 + $0x5c] sm:$0x1]
        %v3075 = vld [vmem:[%s2440 + $0x60] sm:$0xe]
        %v3076 = vld [vmem:[%s2440 + $0x64] sm:$0xf]
        %v3077 = vld [vmem:[%s2440 + $0x68] sm:$0x1]
        %v3078 = vld [vmem:[%s2440 + $0x6c] sm:$0xe]
        %v3079 = vld [vmem:[%s2440 + $0x70] sm:$0xf]
        %v3080 = vld [vmem:[%s2440 + $0x74] sm:$0x1]
        %v3081 = vld [vmem:[%s2440 + $0x78] sm:$0xe]
        %v3082 = vld [vmem:[%s2440 + $0x7c] sm:$0xf]
        %v3083 = vld [vmem:[%s2440 + $0x80] sm:$0x1]
        %v3084 = vld [vmem:[%s2440 + $0x84] sm:$0xe]
        %v3085 = vld [vmem:[%s2440 + $0x88] sm:$0xf]
        %v3086 = vld [vmem:[%s2440 + $0x8c] sm:$0x1]
        %v3087 = vld [vmem:[%s2440 + $0x90] sm:$0xe]
        %v3088 = vld [vmem:[%s2440 + $0x94] sm:$0xf]
        %v3089 = vld [vmem:[%s2440 + $0x98] sm:$0x1]
        %v3090 = vld [vmem:[%s2440 + $0x9c] sm:$0xe]
        %v3091 = vld [vmem:[%s2440 + $0xa0] sm:$0xf]
        %v3092 = vld [vmem:[%s2440 + $0xa4] sm:$0x1]
        %v3093 = vld [vmem:[%s2440 + $0xa8] sm:$0xe]
        %v3094 = vld [vmem:[%s2440 + $0xac] sm:$0xf]
        %v3095 = vld [vmem:[%s2440 + $0xb0] sm:$0x1]
        %v3096 = vld [vmem:[%s2440 + $0xb4] sm:$0xe]
        %v3097 = vld [vmem:[%s2440 + $0xb8] sm:$0xf]
        %v3098 = vld [vmem:[%s2440 + $0xbc] sm:$0x1]
        %v3147 = vunpack.c.l.b16 %v3051
        %v3148 = vunpack.c.l.b16 %v3052
        %v3149 = vunpack.c.l.b16 %v3053
        %v3150 = vunpack.c.l.b16 %v3054
        %v3151 = vunpack.c.l.b16 %v3055
        %v3152 = vunpack.c.l.b16 %v3056
        %v3153 = vunpack.c.l.b16 %v3057
        %v3154 = vunpack.c.l.b16 %v3058
        %v3155 = vunpack.c.l.b16 %v3059
        %v3156 = vunpack.c.l.b16 %v3060
        %v3157 = vunpack.c.l.b16 %v3061
        %v3158 = vunpack.c.l.b16 %v3062
        %v3159 = vunpack.c.l.b16 %v3063
        %v3160 = vunpack.c.l.b16 %v3064
        %v3161 = vunpack.c.l.b16 %v3065
        %v3162 = vunpack.c.l.b16 %v3066
        %v3163 = vunpack.c.l.b16 %v3067
        %v3164 = vunpack.c.l.b16 %v3068
        %v3165 = vunpack.c.l.b16 %v3069
        %v3166 = vunpack.c.l.b16 %v3070
        %v3167 = vunpack.c.l.b16 %v3071
        %v3168 = vunpack.c.l.b16 %v3072
        %v3169 = vunpack.c.l.b16 %v3073
        %v3170 = vunpack.c.l.b16 %v3074
        %v3171 = vunpack.c.l.b16 %v3075
        %v3172 = vunpack.c.l.b16 %v3076
        %v3173 = vunpack.c.l.b16 %v3077
        %v3174 = vunpack.c.l.b16 %v3078
        %v3175 = vunpack.c.l.b16 %v3079
        %v3176 = vunpack.c.l.b16 %v3080
        %v3177 = vunpack.c.l.b16 %v3081
        %v3178 = vunpack.c.l.b16 %v3082
        %v3179 = vunpack.c.l.b16 %v3083
        %v3180 = vunpack.c.l.b16 %v3084
        %v3181 = vunpack.c.l.b16 %v3085
        %v3182 = vunpack.c.l.b16 %v3086
        %v3183 = vunpack.c.l.b16 %v3087
        %v3184 = vunpack.c.l.b16 %v3088
        %v3185 = vunpack.c.l.b16 %v3089
        %v3186 = vunpack.c.l.b16 %v3090
        %v3187 = vunpack.c.l.b16 %v3091
        %v3188 = vunpack.c.l.b16 %v3092
        %v3189 = vunpack.c.l.b16 %v3093
        %v3190 = vunpack.c.l.b16 %v3094
        %v3191 = vunpack.c.l.b16 %v3095
        %v3192 = vunpack.c.l.b16 %v3096
        %v3193 = vunpack.c.l.b16 %v3097
        %v3194 = vunpack.c.l.b16 %v3098
        %v3195 = vpack.c.b16 %v3148, %v3147
        %v3196 = vpack.c.b16 %v3149, %v3149
        %v3197 = vpack.c.b16 %v3151, %v3150
        %v3198 = vpack.c.b16 %v3152, %v3152
        %v3199 = vpack.c.b16 %v3154, %v3153
        %v3200 = vpack.c.b16 %v3155, %v3155
        %v3201 = vpack.c.b16 %v3157, %v3156
        %v3202 = vpack.c.b16 %v3158, %v3158
        %v3203 = vpack.c.b16 %v3160, %v3159
        %v3204 = vpack.c.b16 %v3161, %v3161
        %v3205 = vpack.c.b16 %v3163, %v3162
        %v3206 = vpack.c.b16 %v3164, %v3164
        %v3207 = vpack.c.b16 %v3166, %v3165
        %v3208 = vpack.c.b16 %v3167, %v3167
        %v3209 = vpack.c.b16 %v3169, %v3168
        %v3210 = vpack.c.b16 %v3170, %v3170
        %v3211 = vpack.c.b16 %v3172, %v3171
        %v3212 = vpack.c.b16 %v3173, %v3173
        %v3213 = vpack.c.b16 %v3175, %v3174
        %v3214 = vpack.c.b16 %v3176, %v3176
        %v3215 = vpack.c.b16 %v3178, %v3177
        %v3216 = vpack.c.b16 %v3179, %v3179
        %v3217 = vpack.c.b16 %v3181, %v3180
        %v3218 = vpack.c.b16 %v3182, %v3182
        %v3219 = vpack.c.b16 %v3184, %v3183
        %v3220 = vpack.c.b16 %v3185, %v3185
        %v3221 = vpack.c.b16 %v3187, %v3186
        %v3222 = vpack.c.b16 %v3188, %v3188
        %v3223 = vpack.c.b16 %v3190, %v3189
        %v3224 = vpack.c.b16 %v3191, %v3191
        %v3225 = vpack.c.b16 %v3193, %v3192
        %v3226 = vpack.c.b16 %v3194, %v3194
        %v3227 = vrot.slane %v3195, 1
        %v3228 = vrot.slane %v3196, 1
        %v3229 = vsel %vm1427, %v3227, %v3228
        %v3230 = vrot.slane %v3197, 1
        %v3231 = vrot.slane %v3198, 1
        %v3232 = vsel %vm1427, %v3230, %v3231
        %v3233 = vrot.slane %v3199, 1
        %v3234 = vrot.slane %v3200, 1
        %v3235 = vsel %vm1427, %v3233, %v3234
        %v3236 = vrot.slane %v3201, 1
        %v3237 = vrot.slane %v3202, 1
        %v3238 = vsel %vm1427, %v3236, %v3237
        %v3239 = vrot.slane %v3203, 1
        %v3240 = vrot.slane %v3204, 1
        %v3241 = vsel %vm1427, %v3239, %v3240
        %v3242 = vrot.slane %v3205, 1
        %v3243 = vrot.slane %v3206, 1
        %v3244 = vsel %vm1427, %v3242, %v3243
        %v3245 = vrot.slane %v3207, 1
        %v3246 = vrot.slane %v3208, 1
        %v3247 = vsel %vm1427, %v3245, %v3246
        %v3248 = vrot.slane %v3209, 1
        %v3249 = vrot.slane %v3210, 1
        %v3250 = vsel %vm1427, %v3248, %v3249
        %v3251 = vrot.slane %v3211, 1
        %v3252 = vrot.slane %v3212, 1
        %v3253 = vsel %vm1427, %v3251, %v3252
        %v3254 = vrot.slane %v3213, 1
        %v3255 = vrot.slane %v3214, 1
        %v3256 = vsel %vm1427, %v3254, %v3255
        %v3257 = vrot.slane %v3215, 1
        %v3258 = vrot.slane %v3216, 1
        %v3259 = vsel %vm1427, %v3257, %v3258
        %v3260 = vrot.slane %v3217, 1
        %v3261 = vrot.slane %v3218, 1
        %v3262 = vsel %vm1427, %v3260, %v3261
        %v3263 = vrot.slane %v3219, 1
        %v3264 = vrot.slane %v3220, 1
        %v3265 = vsel %vm1427, %v3263, %v3264
        %v3266 = vrot.slane %v3221, 1
        %v3267 = vrot.slane %v3222, 1
        %v3268 = vsel %vm1427, %v3266, %v3267
        %v3269 = vrot.slane %v3223, 1
        %v3270 = vrot.slane %v3224, 1
        %v3271 = vsel %vm1427, %v3269, %v3270
        %v3272 = vrot.slane %v3225, 1
        %v3273 = vrot.slane %v3226, 1
        %v3274 = vsel %vm1427, %v3272, %v3273
        %3275 = vrot.lane.b32.xlu0 %v3229, 64
        %v3276 = vpop.permute.xlu0 %3275
        %3277 = vrot.lane.b32.xlu0 %v3232, 64
        %v3278 = vpop.permute.xlu0 %3277
        %3279 = vrot.lane.b32.xlu0 %v3235, 64
        %v3280 = vpop.permute.xlu0 %3279
        %3281 = vrot.lane.b32.xlu0 %v3238, 64
        %v3282 = vpop.permute.xlu0 %3281
        %3283 = vrot.lane.b32.xlu0 %v3241, 64
        %v3284 = vpop.permute.xlu0 %3283
        %3285 = vrot.lane.b32.xlu0 %v3244, 64
        %v3286 = vpop.permute.xlu0 %3285
        %3287 = vrot.lane.b32.xlu0 %v3247, 64
        %v3288 = vpop.permute.xlu0 %3287
        %3289 = vrot.lane.b32.xlu0 %v3250, 64
        %v3290 = vpop.permute.xlu0 %3289
        %3291 = vrot.lane.b32.xlu0 %v3253, 64
        %v3292 = vpop.permute.xlu0 %3291
        %3293 = vrot.lane.b32.xlu0 %v3256, 64
        %v3294 = vpop.permute.xlu0 %3293
        %3295 = vrot.lane.b32.xlu0 %v3259, 64
        %v3296 = vpop.permute.xlu0 %3295
        %3297 = vrot.lane.b32.xlu0 %v3262, 64
        %v3298 = vpop.permute.xlu0 %3297
        %3299 = vrot.lane.b32.xlu0 %v3265, 64
        %v3300 = vpop.permute.xlu0 %3299
        %3301 = vrot.lane.b32.xlu0 %v3268, 64
        %v3302 = vpop.permute.xlu0 %3301
        %3303 = vrot.lane.b32.xlu0 %v3271, 64
        %v3304 = vpop.permute.xlu0 %3303
        %3305 = vrot.lane.b32.xlu0 %v3274, 64
        %v3306 = vpop.permute.xlu0 %3305
        %vm3323 = vcmask 589312
        %3324 = vst.msk [vmem:[#allocation3] sm:$0xff] %vm3323, %v3276
        %3325 = vst.msk [vmem:[#allocation3 + $0x8] sm:$0xff] %vm3323, %v3278
        %3326 = vst.msk [vmem:[#allocation3 + $0x10] sm:$0xff] %vm3323, %v3280
        %3327 = vst.msk [vmem:[#allocation3 + $0x18] sm:$0xff] %vm3323, %v3282
        %3328 = vst.msk [vmem:[#allocation3 + $0x20] sm:$0xff] %vm3323, %v3284
        %3329 = vst.msk [vmem:[#allocation3 + $0x28] sm:$0xff] %vm3323, %v3286
        %3330 = vst.msk [vmem:[#allocation3 + $0x30] sm:$0xff] %vm3323, %v3288
        %3331 = vst.msk [vmem:[#allocation3 + $0x38] sm:$0xff] %vm3323, %v3290
        %3332 = vst.msk [vmem:[#allocation3 + $0x40] sm:$0xff] %vm3323, %v3292
        %3333 = vst.msk [vmem:[#allocation3 + $0x48] sm:$0xff] %vm3323, %v3294
        %3334 = vst.msk [vmem:[#allocation3 + $0x50] sm:$0xff] %vm3323, %v3296
        %3335 = vst.msk [vmem:[#allocation3 + $0x58] sm:$0xff] %vm3323, %v3298
        %3336 = vst.msk [vmem:[#allocation3 + $0x60] sm:$0xff] %vm3323, %v3300
        %3337 = vst.msk [vmem:[#allocation3 + $0x68] sm:$0xff] %vm3323, %v3302
        %3338 = vst.msk [vmem:[#allocation3 + $0x70] sm:$0xff] %vm3323, %v3304
        %3339 = vst.msk [vmem:[#allocation3 + $0x78] sm:$0xff] %vm3323, %v3306
        %v3340 = vld [vmem:[#allocation3] sm:$0xff]
        %v3341 = vld [vmem:[#allocation3 + $0x8] sm:$0xff]
        %v3342 = vld [vmem:[#allocation3 + $0x10] sm:$0xff]
        %v3343 = vld [vmem:[#allocation3 + $0x18] sm:$0xff]
        %v3344 = vld [vmem:[#allocation3 + $0x20] sm:$0xff]
        %v3345 = vld [vmem:[#allocation3 + $0x28] sm:$0xff]
        %v3346 = vld [vmem:[#allocation3 + $0x30] sm:$0xff]
        %v3347 = vld [vmem:[#allocation3 + $0x38] sm:$0xff]
        %v3348 = vld [vmem:[#allocation3 + $0x40] sm:$0xff]
        %v3349 = vld [vmem:[#allocation3 + $0x48] sm:$0xff]
        %v3350 = vld [vmem:[#allocation3 + $0x50] sm:$0xff]
        %v3351 = vld [vmem:[#allocation3 + $0x58] sm:$0xff]
        %v3352 = vld [vmem:[#allocation3 + $0x60] sm:$0xff]
        %v3353 = vld [vmem:[#allocation3 + $0x68] sm:$0xff]
        %v3354 = vld [vmem:[#allocation3 + $0x70] sm:$0xff]
        %v3355 = vld [vmem:[#allocation3 + $0x78] sm:$0xff]
        %v3356 = vld [vmem:[%s1] sm:$0xf]
        %v3357 = vld [vmem:[%s1 + $0x4] sm:$0xf]
        %v3358 = vld [vmem:[%s1 + $0x8] sm:$0xf]
        %v3359 = vld [vmem:[%s1 + $0xc] sm:$0xf]
        %v3360 = vld [vmem:[%s1 + $0x10] sm:$0xf]
        %v3361 = vld [vmem:[%s1 + $0x14] sm:$0xf]
        %v3362 = vld [vmem:[%s1 + $0x18] sm:$0xf]
        %v3363 = vld [vmem:[%s1 + $0x1c] sm:$0xf]
        %v3364 = vld [vmem:[%s1 + $0x20] sm:$0xf]
        %v3374 = vunpack.c.l.b16 %v3356
        %v3375 = vunpack.c.l.b16 %v3357
        %v3376 = vunpack.c.l.b16 %v3358
        %v3377 = vunpack.c.l.b16 %v3359
        %v3378 = vunpack.c.l.b16 %v3360
        %v3379 = vunpack.c.l.b16 %v3361
        %v3380 = vunpack.c.l.b16 %v3362
        %v3381 = vunpack.c.l.b16 %v3363
        %v3382 = vunpack.c.l.b16 %v3364
        %v3383 = vpack.c.b16 %v3375, %v3374
        %v3384 = vpack.c.b16 %v3377, %v3376
        %v3385 = vpack.c.b16 %v3379, %v3378
        %v3386 = vpack.c.b16 %v3381, %v3380
        %v3387 = vpack.c.b16 %v3382, %v3382
        %vm3392 = vcmask 588800
        %v3394 = vsel %vm3392, %v3340, 0
        %v3397 = vsel %vm3392, %v3341, 0
        %v3400 = vsel %vm3392, %v3342, 0
        %v3403 = vsel %vm3392, %v3343, 0
        %v3406 = vsel %vm3392, %v3344, 0
        %v3409 = vsel %vm3392, %v3345, 0
        %v3412 = vsel %vm3392, %v3346, 0
        %v3415 = vsel %vm3392, %v3347, 0
        %v3418 = vsel %vm3392, %v3348, 0
        %v3421 = vsel %vm3392, %v3349, 0
        %v3424 = vsel %vm3392, %v3350, 0
        %v3427 = vsel %vm3392, %v3351, 0
        %v3430 = vsel %vm3392, %v3352, 0
        %v3433 = vsel %vm3392, %v3353, 0
        %v3436 = vsel %vm3392, %v3354, 0
        %v3439 = vsel %vm3392, %v3355, 0
        %vm3441 = vcmask 1043456
        %v3443 = vsel %vm3441, %v3387, 0
        %3445 = vmatprep.subr.bf16.mxu0 0
        %3446 = vmatpush1.bf16.msra.mxu0 %v3383
        %3447 = vmatprep.subr.bf16.mxu0 0
        %3448 = vmatpush1.bf16.msra.mxu0 %v3384
        %3449 = vmatprep.subr.bf16.mxu0 0
        %3450 = vmatpush1.bf16.msra.mxu0 %v3385
        %3451 = vmatprep.subr.bf16.mxu0 0
        %3452 = vmatpush1.bf16.msra.mxu0 %v3386
        %3453 = vmatprep.subr.bf16.mxu0 0
        %3454 = vmatpush1.bf16.msra.mxu0 %v3443
        %3455 = vmatprep.subr.bf16.mxu0 0
        %3456 = vmatpush1.bf16.msra.mxu0 0
        %3457 = vmatprep.subr.bf16.mxu0 0
        %3458 = vmatpush1.bf16.msra.mxu0 0
        %3459 = vmatprep.subr.bf16.mxu0 0
        %3460 = vmatpush1.bf16.msra.mxu0 0
        %3461 = vmatprep.subr.bf16.mxu0 0
        %3462 = vmatpush1.bf16.msra.mxu0 0
        %3463 = vmatprep.subr.bf16.mxu0 0
        %3464 = vmatpush1.bf16.msra.mxu0 0
        %3465 = vmatprep.subr.bf16.mxu0 0
        %3466 = vmatpush1.bf16.msra.mxu0 0
        %3467 = vmatprep.subr.bf16.mxu0 0
        %3468 = vmatpush1.bf16.msra.mxu0 0
        %3469 = vmatprep.subr.bf16.mxu0 0
        %3470 = vmatpush1.bf16.msra.mxu0 0
        %3471 = vmatprep.subr.bf16.mxu0 0
        %3472 = vmatpush1.bf16.msra.mxu0 0
        %3473 = vmatprep.subr.bf16.mxu0 0
        %3474 = vmatpush1.bf16.msra.mxu0 0
        %3475 = vmatprep.subr.bf16.mxu0 0
        %3476 = vmatpush1.bf16.msra.mxu0 0
        %3477 = vmatprep.mubr.bf16.mxu0 0
        %3478 = vmatmul.mubr.bf16.gmra.mrb[0].mxu0 %v3394
        %v3479 = vpop.f32.mrb[0].mxu0
        %v3480 = vadd.f32 0.0, %v3479
        %v3481 = vpop.f32.mrb[0].mxu0
        %v3482 = vpop.f32.mrb[0].mxu0
        %v3483 = vadd.f32 0.0, %v3482
        %v3484 = vpop.f32.mrb[0].mxu0
        %3485 = vmatprep.mubr.bf16.mxu0 0
        %3486 = vmatmul.mubr.bf16.gmra.mrb[0].mxu0 %v3397
        %v3487 = vpop.f32.mrb[0].mxu0
        %v3488 = vadd.f32 0.0, %v3487
        %v3489 = vpop.f32.mrb[0].mxu0
        %v3490 = vpop.f32.mrb[0].mxu0
        %v3491 = vadd.f32 0.0, %v3490
        %v3492 = vpop.f32.mrb[0].mxu0
        %3493 = vmatprep.mubr.bf16.mxu0 0
        %3494 = vmatmul.mubr.bf16.gmra.mrb[0].mxu0 %v3400
        %v3495 = vpop.f32.mrb[0].mxu0
        %v3496 = vadd.f32 0.0, %v3495
        %v3497 = vpop.f32.mrb[0].mxu0
        %v3498 = vpop.f32.mrb[0].mxu0
        %v3499 = vadd.f32 0.0, %v3498
        %v3500 = vpop.f32.mrb[0].mxu0
        %3501 = vmatprep.mubr.bf16.mxu0 0
        %3502 = vmatmul.mubr.bf16.gmra.mrb[0].mxu0 %v3403
        %v3503 = vpop.f32.mrb[0].mxu0
        %v3504 = vadd.f32 0.0, %v3503
        %v3505 = vpop.f32.mrb[0].mxu0
        %v3506 = vpop.f32.mrb[0].mxu0
        %v3507 = vadd.f32 0.0, %v3506
        %v3508 = vpop.f32.mrb[0].mxu0
        %3509 = vmatprep.mubr.bf16.mxu0 0
        %3510 = vmatmul.mubr.bf16.gmra.mrb[0].mxu0 %v3406
        %v3511 = vpop.f32.mrb[0].mxu0
        %v3512 = vadd.f32 0.0, %v3511
        %v3513 = vpop.f32.mrb[0].mxu0
        %v3514 = vpop.f32.mrb[0].mxu0
        %v3515 = vadd.f32 0.0, %v3514
        %v3516 = vpop.f32.mrb[0].mxu0
        %3517 = vmatprep.mubr.bf16.mxu0 0
        %3518 = vmatmul.mubr.bf16.gmra.mrb[0].mxu0 %v3409
        %v3519 = vpop.f32.mrb[0].mxu0
        %v3520 = vadd.f32 0.0, %v3519
        %v3521 = vpop.f32.mrb[0].mxu0
        %v3522 = vpop.f32.mrb[0].mxu0
        %v3523 = vadd.f32 0.0, %v3522
        %v3524 = vpop.f32.mrb[0].mxu0
        %3525 = vmatprep.mubr.bf16.mxu0 0
        %3526 = vmatmul.mubr.bf16.gmra.mrb[0].mxu0 %v3412
        %v3527 = vpop.f32.mrb[0].mxu0
        %v3528 = vadd.f32 0.0, %v3527
        %v3529 = vpop.f32.mrb[0].mxu0
        %v3530 = vpop.f32.mrb[0].mxu0
        %v3531 = vadd.f32 0.0, %v3530
        %v3532 = vpop.f32.mrb[0].mxu0
        %3533 = vmatprep.mubr.bf16.mxu0 0
        %3534 = vmatmul.mubr.bf16.gmra.mrb[0].mxu0 %v3415
        %v3535 = vpop.f32.mrb[0].mxu0
        %v3536 = vadd.f32 0.0, %v3535
        %v3537 = vpop.f32.mrb[0].mxu0
        %v3538 = vpop.f32.mrb[0].mxu0
        %v3539 = vadd.f32 0.0, %v3538
        %v3540 = vpop.f32.mrb[0].mxu0
        %3541 = vmatprep.mubr.bf16.mxu0 0
        %3542 = vmatmul.mubr.bf16.gmra.mrb[0].mxu0 %v3418
        %v3543 = vpop.f32.mrb[0].mxu0
        %v3544 = vadd.f32 0.0, %v3543
        %v3545 = vpop.f32.mrb[0].mxu0
        %v3546 = vpop.f32.mrb[0].mxu0
        %v3547 = vadd.f32 0.0, %v3546
        %v3548 = vpop.f32.mrb[0].mxu0
        %3549 = vmatprep.mubr.bf16.mxu0 0
        %3550 = vmatmul.mubr.bf16.gmra.mrb[0].mxu0 %v3421
        %v3551 = vpop.f32.mrb[0].mxu0
        %v3552 = vadd.f32 0.0, %v3551
        %v3553 = vpop.f32.mrb[0].mxu0
        %v3554 = vpop.f32.mrb[0].mxu0
        %v3555 = vadd.f32 0.0, %v3554
        %v3556 = vpop.f32.mrb[0].mxu0
        %3557 = vmatprep.mubr.bf16.mxu0 0
        %3558 = vmatmul.mubr.bf16.gmra.mrb[0].mxu0 %v3424
        %v3559 = vpop.f32.mrb[0].mxu0
        %v3560 = vadd.f32 0.0, %v3559
        %v3561 = vpop.f32.mrb[0].mxu0
        %v3562 = vpop.f32.mrb[0].mxu0
        %v3563 = vadd.f32 0.0, %v3562
        %v3564 = vpop.f32.mrb[0].mxu0
        %3565 = vmatprep.mubr.bf16.mxu0 0
        %3566 = vmatmul.mubr.bf16.gmra.mrb[0].mxu0 %v3427
        %v3567 = vpop.f32.mrb[0].mxu0
        %v3568 = vadd.f32 0.0, %v3567
        %v3569 = vpop.f32.mrb[0].mxu0
        %v3570 = vpop.f32.mrb[0].mxu0
        %v3571 = vadd.f32 0.0, %v3570
        %v3572 = vpop.f32.mrb[0].mxu0
        %3573 = vmatprep.mubr.bf16.mxu0 0
        %3574 = vmatmul.mubr.bf16.gmra.mrb[0].mxu0 %v3430
        %v3575 = vpop.f32.mrb[0].mxu0
        %v3576 = vadd.f32 0.0, %v3575
        %v3577 = vpop.f32.mrb[0].mxu0
        %v3578 = vpop.f32.mrb[0].mxu0
        %v3579 = vadd.f32 0.0, %v3578
        %v3580 = vpop.f32.mrb[0].mxu0
        %3581 = vmatprep.mubr.bf16.mxu0 0
        %3582 = vmatmul.mubr.bf16.gmra.mrb[0].mxu0 %v3433
        %v3583 = vpop.f32.mrb[0].mxu0
        %v3584 = vadd.f32 0.0, %v3583
        %v3585 = vpop.f32.mrb[0].mxu0
        %v3586 = vpop.f32.mrb[0].mxu0
        %v3587 = vadd.f32 0.0, %v3586
        %v3588 = vpop.f32.mrb[0].mxu0
        %3589 = vmatprep.mubr.bf16.mxu0 0
        %3590 = vmatmul.mubr.bf16.gmra.mrb[0].mxu0 %v3436
        %v3591 = vpop.f32.mrb[0].mxu0
        %v3592 = vadd.f32 0.0, %v3591
        %v3593 = vpop.f32.mrb[0].mxu0
        %v3594 = vpop.f32.mrb[0].mxu0
        %v3595 = vadd.f32 0.0, %v3594
        %v3596 = vpop.f32.mrb[0].mxu0
        %3597 = vmatprep.mubr.bf16.mxu0 0
        %3598 = vmatmul.mubr.bf16.gmra.mrb[0].mxu0 %v3439
        %v3599 = vpop.f32.mrb[0].mxu0
        %v3600 = vadd.f32 0.0, %v3599
        %v3601 = vpop.f32.mrb[0].mxu0
        %v3602 = vpop.f32.mrb[0].mxu0
        %v3603 = vadd.f32 0.0, %v3602
        %v3604 = vpop.f32.mrb[0].mxu0
        %3605 = vdwg.mxu0
        %v3606 = vmax.f32 %v3480, 0.0
        %v3607 = vmax.f32 %v3483, 0.0
        %v3608 = vmax.f32 %v3488, 0.0
        %v3609 = vmax.f32 %v3491, 0.0
        %v3610 = vmax.f32 %v3496, 0.0
        %v3611 = vmax.f32 %v3499, 0.0
        %v3612 = vmax.f32 %v3504, 0.0
        %v3613 = vmax.f32 %v3507, 0.0
        %v3614 = vmax.f32 %v3512, 0.0
        %v3615 = vmax.f32 %v3515, 0.0
        %v3616 = vmax.f32 %v3520, 0.0
        %v3617 = vmax.f32 %v3523, 0.0
        %v3618 = vmax.f32 %v3528, 0.0
        %v3619 = vmax.f32 %v3531, 0.0
        %v3620 = vmax.f32 %v3536, 0.0
        %v3621 = vmax.f32 %v3539, 0.0
        %v3622 = vmax.f32 %v3544, 0.0
        %v3623 = vmax.f32 %v3547, 0.0
        %v3624 = vmax.f32 %v3552, 0.0
        %v3625 = vmax.f32 %v3555, 0.0
        %v3626 = vmax.f32 %v3560, 0.0
        %v3627 = vmax.f32 %v3563, 0.0
        %v3628 = vmax.f32 %v3568, 0.0
        %v3629 = vmax.f32 %v3571, 0.0
        %v3630 = vmax.f32 %v3576, 0.0
        %v3631 = vmax.f32 %v3579, 0.0
        %v3632 = vmax.f32 %v3584, 0.0
        %v3633 = vmax.f32 %v3587, 0.0
        %v3634 = vmax.f32 %v3592, 0.0
        %v3635 = vmax.f32 %v3595, 0.0
        %v3636 = vmax.f32 %v3600, 0.0
        %v3637 = vmax.f32 %v3603, 0.0
        %v3638 = vmax.f32 %v3606, %v3608
        %v3639 = vmax.f32 %v3607, %v3609
        %v3640 = vmax.f32 %v3610, %v3612
        %v3641 = vmax.f32 %v3611, %v3613
        %v3642 = vmax.f32 %v3614, %v3616
        %v3643 = vmax.f32 %v3615, %v3617
        %v3644 = vmax.f32 %v3618, %v3620
        %v3645 = vmax.f32 %v3619, %v3621
        %v3646 = vmax.f32 %v3622, %v3624
        %v3647 = vmax.f32 %v3623, %v3625
        %v3648 = vmax.f32 %v3626, %v3628
        %v3649 = vmax.f32 %v3627, %v3629
        %v3650 = vmax.f32 %v3630, %v3632
        %v3651 = vmax.f32 %v3631, %v3633
        %v3652 = vmax.f32 %v3634, %v3636
        %v3653 = vmax.f32 %v3635, %v3637
        %v3670 = vcombine.high %v3638, %v3638
        %v3672 = vunpack.c.l.s4 1983009808
        %v3673 = vunpack.c.0.s8 %v3672
        %v3674 = vlaneseq
        %v3675 = vshrl.u32 %v3674, 7
        %v3676 = vsub.s32 %v3673, %v3675
        %v3677 = vrot.slane %v3638, %v3676
        %v3679 = vunpack.c.l.s4 1983009808
        %v3680 = vunpack.c.0.s8 %v3679
        %v3681 = vlaneseq
        %v3682 = vshrl.u32 %v3681, 7
        %v3683 = vsub.s32 %v3680, %v3682
        %v3684 = vrot.slane %v3670, %v3683
        %v3685 = vcombine.high %v3677, %v3677
        %v3686 = vcombine.high %v3684, %v3684
        %v3687 = vcombine.high %v3639, %v3639
        %v3689 = vunpack.c.l.s4 1983009808
        %v3690 = vunpack.c.0.s8 %v3689
        %v3691 = vlaneseq
        %v3692 = vshrl.u32 %v3691, 7
        %v3693 = vsub.s32 %v3690, %v3692
        %v3694 = vrot.slane %v3639, %v3693
        %v3696 = vunpack.c.l.s4 1983009808
        %v3697 = vunpack.c.0.s8 %v3696
        %v3698 = vlaneseq
        %v3699 = vshrl.u32 %v3698, 7
        %v3700 = vsub.s32 %v3697, %v3699
        %v3701 = vrot.slane %v3687, %v3700
        %v3702 = vcombine.high %v3694, %v3694
        %v3703 = vcombine.high %v3701, %v3701
        %v3704 = vcombine.high %v3640, %v3640
        %v3706 = vunpack.c.l.s4 1983009808
        %v3707 = vunpack.c.0.s8 %v3706
        %v3708 = vlaneseq
        %v3709 = vshrl.u32 %v3708, 7
        %v3710 = vsub.s32 %v3707, %v3709
        %v3711 = vrot.slane %v3640, %v3710
        %v3713 = vunpack.c.l.s4 1983009808
        %v3714 = vunpack.c.0.s8 %v3713
        %v3715 = vlaneseq
        %v3716 = vshrl.u32 %v3715, 7
        %v3717 = vsub.s32 %v3714, %v3716
        %v3718 = vrot.slane %v3704, %v3717
        %v3719 = vcombine.high %v3711, %v3711
        %v3720 = vcombine.high %v3718, %v3718
        %v3721 = vcombine.high %v3641, %v3641
        %v3723 = vunpack.c.l.s4 1983009808
        %v3724 = vunpack.c.0.s8 %v3723
        %v3725 = vlaneseq
        %v3726 = vshrl.u32 %v3725, 7
        %v3727 = vsub.s32 %v3724, %v3726
        %v3728 = vrot.slane %v3641, %v3727
        %v3730 = vunpack.c.l.s4 1983009808
        %v3731 = vunpack.c.0.s8 %v3730
        %v3732 = vlaneseq
        %v3733 = vshrl.u32 %v3732, 7
        %v3734 = vsub.s32 %v3731, %v3733
        %v3735 = vrot.slane %v3721, %v3734
        %v3736 = vcombine.high %v3728, %v3728
        %v3737 = vcombine.high %v3735, %v3735
        %v3738 = vcombine.high %v3642, %v3642
        %v3740 = vunpack.c.l.s4 1983009808
        %v3741 = vunpack.c.0.s8 %v3740
        %v3742 = vlaneseq
        %v3743 = vshrl.u32 %v3742, 7
        %v3744 = vsub.s32 %v3741, %v3743
        %v3745 = vrot.slane %v3642, %v3744
        %v3747 = vunpack.c.l.s4 1983009808
        %v3748 = vunpack.c.0.s8 %v3747
        %v3749 = vlaneseq
        %v3750 = vshrl.u32 %v3749, 7
        %v3751 = vsub.s32 %v3748, %v3750
        %v3752 = vrot.slane %v3738, %v3751
        %v3753 = vcombine.high %v3745, %v3745
        %v3754 = vcombine.high %v3752, %v3752
        %v3755 = vcombine.high %v3643, %v3643
        %v3757 = vunpack.c.l.s4 1983009808
        %v3758 = vunpack.c.0.s8 %v3757
        %v3759 = vlaneseq
        %v3760 = vshrl.u32 %v3759, 7
        %v3761 = vsub.s32 %v3758, %v3760
        %v3762 = vrot.slane %v3643, %v3761
        %v3764 = vunpack.c.l.s4 1983009808
        %v3765 = vunpack.c.0.s8 %v3764
        %v3766 = vlaneseq
        %v3767 = vshrl.u32 %v3766, 7
        %v3768 = vsub.s32 %v3765, %v3767
        %v3769 = vrot.slane %v3755, %v3768
        %v3770 = vcombine.high %v3762, %v3762
        %v3771 = vcombine.high %v3769, %v3769
        %v3772 = vcombine.high %v3644, %v3644
        %v3774 = vunpack.c.l.s4 1983009808
        %v3775 = vunpack.c.0.s8 %v3774
        %v3776 = vlaneseq
        %v3777 = vshrl.u32 %v3776, 7
        %v3778 = vsub.s32 %v3775, %v3777
        %v3779 = vrot.slane %v3644, %v3778
        %v3781 = vunpack.c.l.s4 1983009808
        %v3782 = vunpack.c.0.s8 %v3781
        %v3783 = vlaneseq
        %v3784 = vshrl.u32 %v3783, 7
        %v3785 = vsub.s32 %v3782, %v3784
        %v3786 = vrot.slane %v3772, %v3785
        %v3787 = vcombine.high %v3779, %v3779
        %v3788 = vcombine.high %v3786, %v3786
        %v3789 = vcombine.high %v3645, %v3645
        %v3791 = vunpack.c.l.s4 1983009808
        %v3792 = vunpack.c.0.s8 %v3791
        %v3793 = vlaneseq
        %v3794 = vshrl.u32 %v3793, 7
        %v3795 = vsub.s32 %v3792, %v3794
        %v3796 = vrot.slane %v3645, %v3795
        %v3798 = vunpack.c.l.s4 1983009808
        %v3799 = vunpack.c.0.s8 %v3798
        %v3800 = vlaneseq
        %v3801 = vshrl.u32 %v3800, 7
        %v3802 = vsub.s32 %v3799, %v3801
        %v3803 = vrot.slane %v3789, %v3802
        %v3804 = vcombine.high %v3796, %v3796
        %v3805 = vcombine.high %v3803, %v3803
        %v3806 = vcombine.high %v3646, %v3646
        %v3808 = vunpack.c.l.s4 1983009808
        %v3809 = vunpack.c.0.s8 %v3808
        %v3810 = vlaneseq
        %v3811 = vshrl.u32 %v3810, 7
        %v3812 = vsub.s32 %v3809, %v3811
        %v3813 = vrot.slane %v3646, %v3812
        %v3815 = vunpack.c.l.s4 1983009808
        %v3816 = vunpack.c.0.s8 %v3815
        %v3817 = vlaneseq
        %v3818 = vshrl.u32 %v3817, 7
        %v3819 = vsub.s32 %v3816, %v3818
        %v3820 = vrot.slane %v3806, %v3819
        %v3821 = vcombine.high %v3813, %v3813
        %v3822 = vcombine.high %v3820, %v3820
        %v3823 = vcombine.high %v3647, %v3647
        %v3825 = vunpack.c.l.s4 1983009808
        %v3826 = vunpack.c.0.s8 %v3825
        %v3827 = vlaneseq
        %v3828 = vshrl.u32 %v3827, 7
        %v3829 = vsub.s32 %v3826, %v3828
        %v3830 = vrot.slane %v3647, %v3829
        %v3832 = vunpack.c.l.s4 1983009808
        %v3833 = vunpack.c.0.s8 %v3832
        %v3834 = vlaneseq
        %v3835 = vshrl.u32 %v3834, 7
        %v3836 = vsub.s32 %v3833, %v3835
        %v3837 = vrot.slane %v3823, %v3836
        %v3838 = vcombine.high %v3830, %v3830
        %v3839 = vcombine.high %v3837, %v3837
        %v3840 = vcombine.high %v3648, %v3648
        %v3842 = vunpack.c.l.s4 1983009808
        %v3843 = vunpack.c.0.s8 %v3842
        %v3844 = vlaneseq
        %v3845 = vshrl.u32 %v3844, 7
        %v3846 = vsub.s32 %v3843, %v3845
        %v3847 = vrot.slane %v3648, %v3846
        %v3849 = vunpack.c.l.s4 1983009808
        %v3850 = vunpack.c.0.s8 %v3849
        %v3851 = vlaneseq
        %v3852 = vshrl.u32 %v3851, 7
        %v3853 = vsub.s32 %v3850, %v3852
        %v3854 = vrot.slane %v3840, %v3853
        %v3855 = vcombine.high %v3847, %v3847
        %v3856 = vcombine.high %v3854, %v3854
        %v3857 = vcombine.high %v3649, %v3649
        %v3859 = vunpack.c.l.s4 1983009808
        %v3860 = vunpack.c.0.s8 %v3859
        %v3861 = vlaneseq
        %v3862 = vshrl.u32 %v3861, 7
        %v3863 = vsub.s32 %v3860, %v3862
        %v3864 = vrot.slane %v3649, %v3863
        %v3866 = vunpack.c.l.s4 1983009808
        %v3867 = vunpack.c.0.s8 %v3866
        %v3868 = vlaneseq
        %v3869 = vshrl.u32 %v3868, 7
        %v3870 = vsub.s32 %v3867, %v3869
        %v3871 = vrot.slane %v3857, %v3870
        %v3872 = vcombine.high %v3864, %v3864
        %v3873 = vcombine.high %v3871, %v3871
        %v3874 = vcombine.high %v3650, %v3650
        %v3876 = vunpack.c.l.s4 1983009808
        %v3877 = vunpack.c.0.s8 %v3876
        %v3878 = vlaneseq
        %v3879 = vshrl.u32 %v3878, 7
        %v3880 = vsub.s32 %v3877, %v3879
        %v3881 = vrot.slane %v3650, %v3880
        %v3883 = vunpack.c.l.s4 1983009808
        %v3884 = vunpack.c.0.s8 %v3883
        %v3885 = vlaneseq
        %v3886 = vshrl.u32 %v3885, 7
        %v3887 = vsub.s32 %v3884, %v3886
        %v3888 = vrot.slane %v3874, %v3887
        %v3889 = vcombine.high %v3881, %v3881
        %v3890 = vcombine.high %v3888, %v3888
        %v3891 = vcombine.high %v3651, %v3651
        %v3893 = vunpack.c.l.s4 1983009808
        %v3894 = vunpack.c.0.s8 %v3893
        %v3895 = vlaneseq
        %v3896 = vshrl.u32 %v3895, 7
        %v3897 = vsub.s32 %v3894, %v3896
        %v3898 = vrot.slane %v3651, %v3897
        %v3900 = vunpack.c.l.s4 1983009808
        %v3901 = vunpack.c.0.s8 %v3900
        %v3902 = vlaneseq
        %v3903 = vshrl.u32 %v3902, 7
        %v3904 = vsub.s32 %v3901, %v3903
        %v3905 = vrot.slane %v3891, %v3904
        %v3906 = vcombine.high %v3898, %v3898
        %v3907 = vcombine.high %v3905, %v3905
        %v3908 = vcombine.high %v3652, %v3652
        %v3910 = vunpack.c.l.s4 1983009808
        %v3911 = vunpack.c.0.s8 %v3910
        %v3912 = vlaneseq
        %v3913 = vshrl.u32 %v3912, 7
        %v3914 = vsub.s32 %v3911, %v3913
        %v3915 = vrot.slane %v3652, %v3914
        %v3917 = vunpack.c.l.s4 1983009808
        %v3918 = vunpack.c.0.s8 %v3917
        %v3919 = vlaneseq
        %v3920 = vshrl.u32 %v3919, 7
        %v3921 = vsub.s32 %v3918, %v3920
        %v3922 = vrot.slane %v3908, %v3921
        %v3923 = vcombine.high %v3915, %v3915
        %v3924 = vcombine.high %v3922, %v3922
        %v3925 = vcombine.high %v3653, %v3653
        %v3927 = vunpack.c.l.s4 1983009808
        %v3928 = vunpack.c.0.s8 %v3927
        %v3929 = vlaneseq
        %v3930 = vshrl.u32 %v3929, 7
        %v3931 = vsub.s32 %v3928, %v3930
        %v3932 = vrot.slane %v3653, %v3931
        %v3934 = vunpack.c.l.s4 1983009808
        %v3935 = vunpack.c.0.s8 %v3934
        %v3936 = vlaneseq
        %v3937 = vshrl.u32 %v3936, 7
        %v3938 = vsub.s32 %v3935, %v3937
        %v3939 = vrot.slane %v3925, %v3938
        %v3940 = vcombine.high %v3932, %v3932
        %v3941 = vcombine.high %v3939, %v3939
        %vm4006 = vcmask 1041408
        %v4007 = vsel %vm4006, %v3677, -inf
        %v4008 = vrot.slane %v4007, 4
        %v4009 = vmax.f32 %v4007, %v4008
        %v4010 = vrot.slane %v4009, 2
        %v4011 = vmax.f32 %v4009, %v4010
        %v4012 = vrot.slane %v4011, 1
        %v4013 = vmax.f32 %v4011, %v4012
        %v4014 = vsel %vm4006, %v3685, -inf
        %v4015 = vrot.slane %v4014, 4
        %v4016 = vmax.f32 %v4014, %v4015
        %v4017 = vrot.slane %v4016, 2
        %v4018 = vmax.f32 %v4016, %v4017
        %v4019 = vrot.slane %v4018, 1
        %v4020 = vmax.f32 %v4018, %v4019
        %v4021 = vsel %vm4006, %v3684, -inf
        %v4022 = vrot.slane %v4021, 4
        %v4023 = vmax.f32 %v4021, %v4022
        %v4024 = vrot.slane %v4023, 2
        %v4025 = vmax.f32 %v4023, %v4024
        %v4026 = vrot.slane %v4025, 1
        %v4027 = vmax.f32 %v4025, %v4026
        %v4028 = vsel %vm4006, %v3686, -inf
        %v4029 = vrot.slane %v4028, 4
        %v4030 = vmax.f32 %v4028, %v4029
        %v4031 = vrot.slane %v4030, 2
        %v4032 = vmax.f32 %v4030, %v4031
        %v4033 = vrot.slane %v4032, 1
        %v4034 = vmax.f32 %v4032, %v4033
        %v4035 = vsel %vm4006, %v3694, -inf
        %v4036 = vrot.slane %v4035, 4
        %v4037 = vmax.f32 %v4035, %v4036
        %v4038 = vrot.slane %v4037, 2
        %v4039 = vmax.f32 %v4037, %v4038
        %v4040 = vrot.slane %v4039, 1
        %v4041 = vmax.f32 %v4039, %v4040
        %v4042 = vsel %vm4006, %v3702, -inf
        %v4043 = vrot.slane %v4042, 4
        %v4044 = vmax.f32 %v4042, %v4043
        %v4045 = vrot.slane %v4044, 2
        %v4046 = vmax.f32 %v4044, %v4045
        %v4047 = vrot.slane %v4046, 1
        %v4048 = vmax.f32 %v4046, %v4047
        %v4049 = vsel %vm4006, %v3701, -inf
        %v4050 = vrot.slane %v4049, 4
        %v4051 = vmax.f32 %v4049, %v4050
        %v4052 = vrot.slane %v4051, 2
        %v4053 = vmax.f32 %v4051, %v4052
        %v4054 = vrot.slane %v4053, 1
        %v4055 = vmax.f32 %v4053, %v4054
        %v4056 = vsel %vm4006, %v3703, -inf
        %v4057 = vrot.slane %v4056, 4
        %v4058 = vmax.f32 %v4056, %v4057
        %v4059 = vrot.slane %v4058, 2
        %v4060 = vmax.f32 %v4058, %v4059
        %v4061 = vrot.slane %v4060, 1
        %v4062 = vmax.f32 %v4060, %v4061
        %v4063 = vsel %vm4006, %v3711, -inf
        %v4064 = vrot.slane %v4063, 4
        %v4065 = vmax.f32 %v4063, %v4064
        %v4066 = vrot.slane %v4065, 2
        %v4067 = vmax.f32 %v4065, %v4066
        %v4068 = vrot.slane %v4067, 1
        %v4069 = vmax.f32 %v4067, %v4068
        %v4070 = vsel %vm4006, %v3719, -inf
        %v4071 = vrot.slane %v4070, 4
        %v4072 = vmax.f32 %v4070, %v4071
        %v4073 = vrot.slane %v4072, 2
        %v4074 = vmax.f32 %v4072, %v4073
        %v4075 = vrot.slane %v4074, 1
        %v4076 = vmax.f32 %v4074, %v4075
        %v4077 = vsel %vm4006, %v3718, -inf
        %v4078 = vrot.slane %v4077, 4
        %v4079 = vmax.f32 %v4077, %v4078
        %v4080 = vrot.slane %v4079, 2
        %v4081 = vmax.f32 %v4079, %v4080
        %v4082 = vrot.slane %v4081, 1
        %v4083 = vmax.f32 %v4081, %v4082
        %v4084 = vsel %vm4006, %v3720, -inf
        %v4085 = vrot.slane %v4084, 4
        %v4086 = vmax.f32 %v4084, %v4085
        %v4087 = vrot.slane %v4086, 2
        %v4088 = vmax.f32 %v4086, %v4087
        %v4089 = vrot.slane %v4088, 1
        %v4090 = vmax.f32 %v4088, %v4089
        %v4091 = vsel %vm4006, %v3728, -inf
        %v4092 = vrot.slane %v4091, 4
        %v4093 = vmax.f32 %v4091, %v4092
        %v4094 = vrot.slane %v4093, 2
        %v4095 = vmax.f32 %v4093, %v4094
        %v4096 = vrot.slane %v4095, 1
        %v4097 = vmax.f32 %v4095, %v4096
        %v4098 = vsel %vm4006, %v3736, -inf
        %v4099 = vrot.slane %v4098, 4
        %v4100 = vmax.f32 %v4098, %v4099
        %v4101 = vrot.slane %v4100, 2
        %v4102 = vmax.f32 %v4100, %v4101
        %v4103 = vrot.slane %v4102, 1
        %v4104 = vmax.f32 %v4102, %v4103
        %v4105 = vsel %vm4006, %v3735, -inf
        %v4106 = vrot.slane %v4105, 4
        %v4107 = vmax.f32 %v4105, %v4106
        %v4108 = vrot.slane %v4107, 2
        %v4109 = vmax.f32 %v4107, %v4108
        %v4110 = vrot.slane %v4109, 1
        %v4111 = vmax.f32 %v4109, %v4110
        %v4112 = vsel %vm4006, %v3737, -inf
        %v4113 = vrot.slane %v4112, 4
        %v4114 = vmax.f32 %v4112, %v4113
        %v4115 = vrot.slane %v4114, 2
        %v4116 = vmax.f32 %v4114, %v4115
        %v4117 = vrot.slane %v4116, 1
        %v4118 = vmax.f32 %v4116, %v4117
        %v4119 = vsel %vm4006, %v3745, -inf
        %v4120 = vrot.slane %v4119, 4
        %v4121 = vmax.f32 %v4119, %v4120
        %v4122 = vrot.slane %v4121, 2
        %v4123 = vmax.f32 %v4121, %v4122
        %v4124 = vrot.slane %v4123, 1
        %v4125 = vmax.f32 %v4123, %v4124
        %v4126 = vsel %vm4006, %v3753, -inf
        %v4127 = vrot.slane %v4126, 4
        %v4128 = vmax.f32 %v4126, %v4127
        %v4129 = vrot.slane %v4128, 2
        %v4130 = vmax.f32 %v4128, %v4129
        %v4131 = vrot.slane %v4130, 1
        %v4132 = vmax.f32 %v4130, %v4131
        %v4133 = vsel %vm4006, %v3752, -inf
        %v4134 = vrot.slane %v4133, 4
        %v4135 = vmax.f32 %v4133, %v4134
        %v4136 = vrot.slane %v4135, 2
        %v4137 = vmax.f32 %v4135, %v4136
        %v4138 = vrot.slane %v4137, 1
        %v4139 = vmax.f32 %v4137, %v4138
        %v4140 = vsel %vm4006, %v3754, -inf
        %v4141 = vrot.slane %v4140, 4
        %v4142 = vmax.f32 %v4140, %v4141
        %v4143 = vrot.slane %v4142, 2
        %v4144 = vmax.f32 %v4142, %v4143
        %v4145 = vrot.slane %v4144, 1
        %v4146 = vmax.f32 %v4144, %v4145
        %v4147 = vsel %vm4006, %v3762, -inf
        %v4148 = vrot.slane %v4147, 4
        %v4149 = vmax.f32 %v4147, %v4148
        %v4150 = vrot.slane %v4149, 2
        %v4151 = vmax.f32 %v4149, %v4150
        %v4152 = vrot.slane %v4151, 1
        %v4153 = vmax.f32 %v4151, %v4152
        %v4154 = vsel %vm4006, %v3770, -inf
        %v4155 = vrot.slane %v4154, 4
        %v4156 = vmax.f32 %v4154, %v4155
        %v4157 = vrot.slane %v4156, 2
        %v4158 = vmax.f32 %v4156, %v4157
        %v4159 = vrot.slane %v4158, 1
        %v4160 = vmax.f32 %v4158, %v4159
        %v4161 = vsel %vm4006, %v3769, -inf
        %v4162 = vrot.slane %v4161, 4
        %v4163 = vmax.f32 %v4161, %v4162
        %v4164 = vrot.slane %v4163, 2
        %v4165 = vmax.f32 %v4163, %v4164
        %v4166 = vrot.slane %v4165, 1
        %v4167 = vmax.f32 %v4165, %v4166
        %v4168 = vsel %vm4006, %v3771, -inf
        %v4169 = vrot.slane %v4168, 4
        %v4170 = vmax.f32 %v4168, %v4169
        %v4171 = vrot.slane %v4170, 2
        %v4172 = vmax.f32 %v4170, %v4171
        %v4173 = vrot.slane %v4172, 1
        %v4174 = vmax.f32 %v4172, %v4173
        %v4175 = vsel %vm4006, %v3779, -inf
        %v4176 = vrot.slane %v4175, 4
        %v4177 = vmax.f32 %v4175, %v4176
        %v4178 = vrot.slane %v4177, 2
        %v4179 = vmax.f32 %v4177, %v4178
        %v4180 = vrot.slane %v4179, 1
        %v4181 = vmax.f32 %v4179, %v4180
        %v4182 = vsel %vm4006, %v3787, -inf
        %v4183 = vrot.slane %v4182, 4
        %v4184 = vmax.f32 %v4182, %v4183
        %v4185 = vrot.slane %v4184, 2
        %v4186 = vmax.f32 %v4184, %v4185
        %v4187 = vrot.slane %v4186, 1
        %v4188 = vmax.f32 %v4186, %v4187
        %v4189 = vsel %vm4006, %v3786, -inf
        %v4190 = vrot.slane %v4189, 4
        %v4191 = vmax.f32 %v4189, %v4190
        %v4192 = vrot.slane %v4191, 2
        %v4193 = vmax.f32 %v4191, %v4192
        %v4194 = vrot.slane %v4193, 1
        %v4195 = vmax.f32 %v4193, %v4194
        %v4196 = vsel %vm4006, %v3788, -inf
        %v4197 = vrot.slane %v4196, 4
        %v4198 = vmax.f32 %v4196, %v4197
        %v4199 = vrot.slane %v4198, 2
        %v4200 = vmax.f32 %v4198, %v4199
        %v4201 = vrot.slane %v4200, 1
        %v4202 = vmax.f32 %v4200, %v4201
        %v4203 = vsel %vm4006, %v3796, -inf
        %v4204 = vrot.slane %v4203, 4
        %v4205 = vmax.f32 %v4203, %v4204
        %v4206 = vrot.slane %v4205, 2
        %v4207 = vmax.f32 %v4205, %v4206
        %v4208 = vrot.slane %v4207, 1
        %v4209 = vmax.f32 %v4207, %v4208
        %v4210 = vsel %vm4006, %v3804, -inf
        %v4211 = vrot.slane %v4210, 4
        %v4212 = vmax.f32 %v4210, %v4211
        %v4213 = vrot.slane %v4212, 2
        %v4214 = vmax.f32 %v4212, %v4213
        %v4215 = vrot.slane %v4214, 1
        %v4216 = vmax.f32 %v4214, %v4215
        %v4217 = vsel %vm4006, %v3803, -inf
        %v4218 = vrot.slane %v4217, 4
        %v4219 = vmax.f32 %v4217, %v4218
        %v4220 = vrot.slane %v4219, 2
        %v4221 = vmax.f32 %v4219, %v4220
        %v4222 = vrot.slane %v4221, 1
        %v4223 = vmax.f32 %v4221, %v4222
        %v4224 = vsel %vm4006, %v3805, -inf
        %v4225 = vrot.slane %v4224, 4
        %v4226 = vmax.f32 %v4224, %v4225
        %v4227 = vrot.slane %v4226, 2
        %v4228 = vmax.f32 %v4226, %v4227
        %v4229 = vrot.slane %v4228, 1
        %v4230 = vmax.f32 %v4228, %v4229
        %v4231 = vsel %vm4006, %v3813, -inf
        %v4232 = vrot.slane %v4231, 4
        %v4233 = vmax.f32 %v4231, %v4232
        %v4234 = vrot.slane %v4233, 2
        %v4235 = vmax.f32 %v4233, %v4234
        %v4236 = vrot.slane %v4235, 1
        %v4237 = vmax.f32 %v4235, %v4236
        %v4238 = vsel %vm4006, %v3821, -inf
        %v4239 = vrot.slane %v4238, 4
        %v4240 = vmax.f32 %v4238, %v4239
        %v4241 = vrot.slane %v4240, 2
        %v4242 = vmax.f32 %v4240, %v4241
        %v4243 = vrot.slane %v4242, 1
        %v4244 = vmax.f32 %v4242, %v4243
        %v4245 = vsel %vm4006, %v3820, -inf
        %v4246 = vrot.slane %v4245, 4
        %v4247 = vmax.f32 %v4245, %v4246
        %v4248 = vrot.slane %v4247, 2
        %v4249 = vmax.f32 %v4247, %v4248
        %v4250 = vrot.slane %v4249, 1
        %v4251 = vmax.f32 %v4249, %v4250
        %v4252 = vsel %vm4006, %v3822, -inf
        %v4253 = vrot.slane %v4252, 4
        %v4254 = vmax.f32 %v4252, %v4253
        %v4255 = vrot.slane %v4254, 2
        %v4256 = vmax.f32 %v4254, %v4255
        %v4257 = vrot.slane %v4256, 1
        %v4258 = vmax.f32 %v4256, %v4257
        %v4259 = vsel %vm4006, %v3830, -inf
        %v4260 = vrot.slane %v4259, 4
        %v4261 = vmax.f32 %v4259, %v4260
        %v4262 = vrot.slane %v4261, 2
        %v4263 = vmax.f32 %v4261, %v4262
        %v4264 = vrot.slane %v4263, 1
        %v4265 = vmax.f32 %v4263, %v4264
        %v4266 = vsel %vm4006, %v3838, -inf
        %v4267 = vrot.slane %v4266, 4
        %v4268 = vmax.f32 %v4266, %v4267
        %v4269 = vrot.slane %v4268, 2
        %v4270 = vmax.f32 %v4268, %v4269
        %v4271 = vrot.slane %v4270, 1
        %v4272 = vmax.f32 %v4270, %v4271
        %v4273 = vsel %vm4006, %v3837, -inf
        %v4274 = vrot.slane %v4273, 4
        %v4275 = vmax.f32 %v4273, %v4274
        %v4276 = vrot.slane %v4275, 2
        %v4277 = vmax.f32 %v4275, %v4276
        %v4278 = vrot.slane %v4277, 1
        %v4279 = vmax.f32 %v4277, %v4278
        %v4280 = vsel %vm4006, %v3839, -inf
        %v4281 = vrot.slane %v4280, 4
        %v4282 = vmax.f32 %v4280, %v4281
        %v4283 = vrot.slane %v4282, 2
        %v4284 = vmax.f32 %v4282, %v4283
        %v4285 = vrot.slane %v4284, 1
        %v4286 = vmax.f32 %v4284, %v4285
        %v4287 = vsel %vm4006, %v3847, -inf
        %v4288 = vrot.slane %v4287, 4
        %v4289 = vmax.f32 %v4287, %v4288
        %v4290 = vrot.slane %v4289, 2
        %v4291 = vmax.f32 %v4289, %v4290
        %v4292 = vrot.slane %v4291, 1
        %v4293 = vmax.f32 %v4291, %v4292
        %v4294 = vsel %vm4006, %v3855, -inf
        %v4295 = vrot.slane %v4294, 4
        %v4296 = vmax.f32 %v4294, %v4295
        %v4297 = vrot.slane %v4296, 2
        %v4298 = vmax.f32 %v4296, %v4297
        %v4299 = vrot.slane %v4298, 1
        %v4300 = vmax.f32 %v4298, %v4299
        %v4301 = vsel %vm4006, %v3854, -inf
        %v4302 = vrot.slane %v4301, 4
        %v4303 = vmax.f32 %v4301, %v4302
        %v4304 = vrot.slane %v4303, 2
        %v4305 = vmax.f32 %v4303, %v4304
        %v4306 = vrot.slane %v4305, 1
        %v4307 = vmax.f32 %v4305, %v4306
        %v4308 = vsel %vm4006, %v3856, -inf
        %v4309 = vrot.slane %v4308, 4
        %v4310 = vmax.f32 %v4308, %v4309
        %v4311 = vrot.slane %v4310, 2
        %v4312 = vmax.f32 %v4310, %v4311
        %v4313 = vrot.slane %v4312, 1
        %v4314 = vmax.f32 %v4312, %v4313
        %v4315 = vsel %vm4006, %v3864, -inf
        %v4316 = vrot.slane %v4315, 4
        %v4317 = vmax.f32 %v4315, %v4316
        %v4318 = vrot.slane %v4317, 2
        %v4319 = vmax.f32 %v4317, %v4318
        %v4320 = vrot.slane %v4319, 1
        %v4321 = vmax.f32 %v4319, %v4320
        %v4322 = vsel %vm4006, %v3872, -inf
        %v4323 = vrot.slane %v4322, 4
        %v4324 = vmax.f32 %v4322, %v4323
        %v4325 = vrot.slane %v4324, 2
        %v4326 = vmax.f32 %v4324, %v4325
        %v4327 = vrot.slane %v4326, 1
        %v4328 = vmax.f32 %v4326, %v4327
        %v4329 = vsel %vm4006, %v3871, -inf
        %v4330 = vrot.slane %v4329, 4
        %v4331 = vmax.f32 %v4329, %v4330
        %v4332 = vrot.slane %v4331, 2
        %v4333 = vmax.f32 %v4331, %v4332
        %v4334 = vrot.slane %v4333, 1
        %v4335 = vmax.f32 %v4333, %v4334
        %v4336 = vsel %vm4006, %v3873, -inf
        %v4337 = vrot.slane %v4336, 4
        %v4338 = vmax.f32 %v4336, %v4337
        %v4339 = vrot.slane %v4338, 2
        %v4340 = vmax.f32 %v4338, %v4339
        %v4341 = vrot.slane %v4340, 1
        %v4342 = vmax.f32 %v4340, %v4341
        %v4343 = vsel %vm4006, %v3881, -inf
        %v4344 = vrot.slane %v4343, 4
        %v4345 = vmax.f32 %v4343, %v4344
        %v4346 = vrot.slane %v4345, 2
        %v4347 = vmax.f32 %v4345, %v4346
        %v4348 = vrot.slane %v4347, 1
        %v4349 = vmax.f32 %v4347, %v4348
        %v4350 = vsel %vm4006, %v3889, -inf
        %v4351 = vrot.slane %v4350, 4
        %v4352 = vmax.f32 %v4350, %v4351
        %v4353 = vrot.slane %v4352, 2
        %v4354 = vmax.f32 %v4352, %v4353
        %v4355 = vrot.slane %v4354, 1
        %v4356 = vmax.f32 %v4354, %v4355
        %v4357 = vsel %vm4006, %v3888, -inf
        %v4358 = vrot.slane %v4357, 4
        %v4359 = vmax.f32 %v4357, %v4358
        %v4360 = vrot.slane %v4359, 2
        %v4361 = vmax.f32 %v4359, %v4360
        %v4362 = vrot.slane %v4361, 1
        %v4363 = vmax.f32 %v4361, %v4362
        %v4364 = vsel %vm4006, %v3890, -inf
        %v4365 = vrot.slane %v4364, 4
        %v4366 = vmax.f32 %v4364, %v4365
        %v4367 = vrot.slane %v4366, 2
        %v4368 = vmax.f32 %v4366, %v4367
        %v4369 = vrot.slane %v4368, 1
        %v4370 = vmax.f32 %v4368, %v4369
        %v4371 = vsel %vm4006, %v3898, -inf
        %v4372 = vrot.slane %v4371, 4
        %v4373 = vmax.f32 %v4371, %v4372
        %v4374 = vrot.slane %v4373, 2
        %v4375 = vmax.f32 %v4373, %v4374
        %v4376 = vrot.slane %v4375, 1
        %v4377 = vmax.f32 %v4375, %v4376
        %v4378 = vsel %vm4006, %v3906, -inf
        %v4379 = vrot.slane %v4378, 4
        %v4380 = vmax.f32 %v4378, %v4379
        %v4381 = vrot.slane %v4380, 2
        %v4382 = vmax.f32 %v4380, %v4381
        %v4383 = vrot.slane %v4382, 1
        %v4384 = vmax.f32 %v4382, %v4383
        %v4385 = vsel %vm4006, %v3905, -inf
        %v4386 = vrot.slane %v4385, 4
        %v4387 = vmax.f32 %v4385, %v4386
        %v4388 = vrot.slane %v4387, 2
        %v4389 = vmax.f32 %v4387, %v4388
        %v4390 = vrot.slane %v4389, 1
        %v4391 = vmax.f32 %v4389, %v4390
        %v4392 = vsel %vm4006, %v3907, -inf
        %v4393 = vrot.slane %v4392, 4
        %v4394 = vmax.f32 %v4392, %v4393
        %v4395 = vrot.slane %v4394, 2
        %v4396 = vmax.f32 %v4394, %v4395
        %v4397 = vrot.slane %v4396, 1
        %v4398 = vmax.f32 %v4396, %v4397
        %v4399 = vsel %vm4006, %v3915, -inf
        %v4400 = vrot.slane %v4399, 4
        %v4401 = vmax.f32 %v4399, %v4400
        %v4402 = vrot.slane %v4401, 2
        %v4403 = vmax.f32 %v4401, %v4402
        %v4404 = vrot.slane %v4403, 1
        %v4405 = vmax.f32 %v4403, %v4404
        %v4406 = vsel %vm4006, %v3923, -inf
        %v4407 = vrot.slane %v4406, 4
        %v4408 = vmax.f32 %v4406, %v4407
        %v4409 = vrot.slane %v4408, 2
        %v4410 = vmax.f32 %v4408, %v4409
        %v4411 = vrot.slane %v4410, 1
        %v4412 = vmax.f32 %v4410, %v4411
        %v4413 = vsel %vm4006, %v3922, -inf
        %v4414 = vrot.slane %v4413, 4
        %v4415 = vmax.f32 %v4413, %v4414
        %v4416 = vrot.slane %v4415, 2
        %v4417 = vmax.f32 %v4415, %v4416
        %v4418 = vrot.slane %v4417, 1
        %v4419 = vmax.f32 %v4417, %v4418
        %v4420 = vsel %vm4006, %v3924, -inf
        %v4421 = vrot.slane %v4420, 4
        %v4422 = vmax.f32 %v4420, %v4421
        %v4423 = vrot.slane %v4422, 2
        %v4424 = vmax.f32 %v4422, %v4423
        %v4425 = vrot.slane %v4424, 1
        %v4426 = vmax.f32 %v4424, %v4425
        %v4427 = vsel %vm4006, %v3932, -inf
        %v4428 = vrot.slane %v4427, 4
        %v4429 = vmax.f32 %v4427, %v4428
        %v4430 = vrot.slane %v4429, 2
        %v4431 = vmax.f32 %v4429, %v4430
        %v4432 = vrot.slane %v4431, 1
        %v4433 = vmax.f32 %v4431, %v4432
        %v4434 = vsel %vm4006, %v3940, -inf
        %v4435 = vrot.slane %v4434, 4
        %v4436 = vmax.f32 %v4434, %v4435
        %v4437 = vrot.slane %v4436, 2
        %v4438 = vmax.f32 %v4436, %v4437
        %v4439 = vrot.slane %v4438, 1
        %v4440 = vmax.f32 %v4438, %v4439
        %v4441 = vsel %vm4006, %v3939, -inf
        %v4442 = vrot.slane %v4441, 4
        %v4443 = vmax.f32 %v4441, %v4442
        %v4444 = vrot.slane %v4443, 2
        %v4445 = vmax.f32 %v4443, %v4444
        %v4446 = vrot.slane %v4445, 1
        %v4447 = vmax.f32 %v4445, %v4446
        %v4448 = vsel %vm4006, %v3941, -inf
        %v4449 = vrot.slane %v4448, 4
        %v4450 = vmax.f32 %v4448, %v4449
        %v4451 = vrot.slane %v4450, 2
        %v4452 = vmax.f32 %v4450, %v4451
        %v4453 = vrot.slane %v4452, 1
        %v4454 = vmax.f32 %v4452, %v4453
        %vm4519 = vcmask 1041409
        %v4520 = vsel %vm4519, %v4020, %v4013
        %vm4521 = vcmask 1042434
        %v4522 = vsel %vm4521, %v4027, %v4520
        %vm4523 = vcmask 1043459
        %v4524 = vsel %vm4523, %v4034, %v4522
        %vm4525 = vcmask 1044484
        %v4526 = vsel %vm4525, %v4041, %v4524
        %vm4527 = vcmask 1045509
        %v4528 = vsel %vm4527, %v4048, %v4526
        %vm4529 = vcmask 1046534
        %v4530 = vsel %vm4529, %v4055, %v4528
        %vm4531 = vcmask 1047559
        %v4532 = vsel %vm4531, %v4062, %v4530
        %v4533 = vsel %vm4519, %v4076, %v4069
        %v4534 = vsel %vm4521, %v4083, %v4533
        %v4535 = vsel %vm4523, %v4090, %v4534
        %v4536 = vsel %vm4525, %v4097, %v4535
        %v4537 = vsel %vm4527, %v4104, %v4536
        %v4538 = vsel %vm4529, %v4111, %v4537
        %v4539 = vsel %vm4531, %v4118, %v4538
        %v4540 = vsel %vm4519, %v4132, %v4125
        %v4541 = vsel %vm4521, %v4139, %v4540
        %v4542 = vsel %vm4523, %v4146, %v4541
        %v4543 = vsel %vm4525, %v4153, %v4542
        %v4544 = vsel %vm4527, %v4160, %v4543
        %v4545 = vsel %vm4529, %v4167, %v4544
        %v4546 = vsel %vm4531, %v4174, %v4545
        %v4547 = vsel %vm4519, %v4188, %v4181
        %v4548 = vsel %vm4521, %v4195, %v4547
        %v4549 = vsel %vm4523, %v4202, %v4548
        %v4550 = vsel %vm4525, %v4209, %v4549
        %v4551 = vsel %vm4527, %v4216, %v4550
        %v4552 = vsel %vm4529, %v4223, %v4551
        %v4553 = vsel %vm4531, %v4230, %v4552
        %v4554 = vsel %vm4519, %v4244, %v4237
        %v4555 = vsel %vm4521, %v4251, %v4554
        %v4556 = vsel %vm4523, %v4258, %v4555
        %v4557 = vsel %vm4525, %v4265, %v4556
        %v4558 = vsel %vm4527, %v4272, %v4557
        %v4559 = vsel %vm4529, %v4279, %v4558
        %v4560 = vsel %vm4531, %v4286, %v4559
        %v4561 = vsel %vm4519, %v4300, %v4293
        %v4562 = vsel %vm4521, %v4307, %v4561
        %v4563 = vsel %vm4523, %v4314, %v4562
        %v4564 = vsel %vm4525, %v4321, %v4563
        %v4565 = vsel %vm4527, %v4328, %v4564
        %v4566 = vsel %vm4529, %v4335, %v4565
        %v4567 = vsel %vm4531, %v4342, %v4566
        %v4568 = vsel %vm4519, %v4356, %v4349
        %v4569 = vsel %vm4521, %v4363, %v4568
        %v4570 = vsel %vm4523, %v4370, %v4569
        %v4571 = vsel %vm4525, %v4377, %v4570
        %v4572 = vsel %vm4527, %v4384, %v4571
        %v4573 = vsel %vm4529, %v4391, %v4572
        %v4574 = vsel %vm4531, %v4398, %v4573
        %v4575 = vsel %vm4519, %v4412, %v4405
        %v4576 = vsel %vm4521, %v4419, %v4575
        %v4577 = vsel %vm4523, %v4426, %v4576
        %v4578 = vsel %vm4525, %v4433, %v4577
        %v4579 = vsel %vm4527, %v4440, %v4578
        %v4580 = vsel %vm4529, %v4447, %v4579
        %v4581 = vsel %vm4531, %v4454, %v4580
        %4590 = vst [vmem:[%s136] sm:$0xff] %v4532
        %4591 = vst [vmem:[%s136 + $0x8] sm:$0xff] %v4539
        %4592 = vst [vmem:[%s136 + $0x10] sm:$0xff] %v4546
        %4593 = vst [vmem:[%s136 + $0x18] sm:$0xff] %v4553
        %4594 = vst [vmem:[%s136 + $0x20] sm:$0xff] %v4560
        %4595 = vst [vmem:[%s136 + $0x28] sm:$0xff] %v4567
        %4596 = vst [vmem:[%s136 + $0x30] sm:$0xff] %v4574
        %4597 = vst [vmem:[%s136 + $0x38] sm:$0xff] %v4581
        %s4598 = sand.u32 %s71, 1
        %s4599 = scalar_lea.sflag [#allocation5], %s4598
        %s4600 = sand.u32 %s71, 1
        %s4601 = smul.addr %s4600, 64
        %s4602 = scalar_lea.vmem [#allocation4], %s4601
        // Predicated region
        $region29: #{convbn_forward.1} parent=27 // pred_check
          %p4603 = pneg %p81
        $region30: #{convbn_forward.1} parent=27 // pred_check_branch
          %4605 = sbr.rel (%p4603) target = $region32
        $region31: #{convbn_forward.1} parent=27 // pred_region
          %s4607 = ssub.s32 1024, 1024
          %4608 = vsyncadd %s4599, %s4607
          %s4609 = smul.addr %s16, 8
          %s4610 = smul.addr %s4609, 128
          %s4611 = scalar_lea.hbm %s2, %s4610
          %s4612 = sshll.u32 %s4602, 4
          %s4613 = int_to_ptr.vmem [resolvable:$true] %s4612
          %4618 = dma.vmem_to_hbm [thread:$0]  %s4613, 1024, %s4611, %s4599, 128, 128, 8
        $region32: #{convbn_forward.1} parent=27 // pred_fallthru
          _
      $region28: #{convbn_forward.1} parent=5 // pred_fallthru
        _
      %p4619 = scmp.le.s32.totalorder 2, %s11
      // Predicated region
      $region33: #{convbn_forward.1} parent=5 // pred_check
        %p4620 = pneg %p4619
      $region34: #{convbn_forward.1} parent=5 // pred_check_branch
        %4622 = sbr.rel (%p4620) target = $region36
      $region35: #{convbn_forward.1} parent=5 // pred_region
        %s4623 = ssub.s32 %s11, 2
        // Predicated region
        $region37: #{convbn_forward.1} parent=35 // pred_check
          %p4624 = pneg %p87
        $region38: #{convbn_forward.1} parent=35 // pred_check_branch
          %4626 = sbr.rel (%p4624) target = $region40
        $region39: #{convbn_forward.1} parent=35 // pred_region
          %s4627 = sand.u32 %s72, 1
          %s4628 = scalar_lea.sflag [#allocation5], %s4627
          %s4629 = sand.u32 %s72, 1
          %s4630 = smul.addr %s4629, 64
          %s4631 = scalar_lea.vmem [#allocation4], %s4630
          %4632 = dma.done %s4628, 1024
        $region40: #{convbn_forward.1} parent=35 // pred_fallthru
          _
      $region36: #{convbn_forward.1} parent=5 // pred_fallthru
        _
    $region6: #{convbn_forward.1} parent=1 // loop_footer
      %s15 = sadd.s32 1, %s11
    $region7: #{convbn_forward.1} parent=1 // loop_footer_branch
      %10 = sbr.rel target = $region3
    $region8: #{convbn_forward.1} parent=1 // loop_exit
      _
    %4633 = vsyncpa [#allocation5], 1
    %s4634 = scalar_lea.sflag [#allocation5], 1
    %4635 = vsyncpa %s4634, 1

</llo_original>
